<compile_context>
chip_gen: v6e
topology: v6e:2x2x1
jax: 0.10.0
libtpu: 0.0.40
codegen_flags: <defaults>
</compile_context>

<pallas_src>
import functools

import jax
import jax.numpy as jnp
from jax.experimental import pallas as pl
from jax.experimental.pallas import tpu as pltpu


# --------------------------------------------------------------------------
# Pallas kernel: NB batch samples per grid step, fully flattened rows.
# --------------------------------------------------------------------------
def _routing_kernel(u_ref, b0_ref, ce0_ref, e_ref, et_ref, sel_ref, selt_ref,
                    v_ref, c_ref, *, n_iter):
    """Agreement routing for one block of NB samples.

    u_ref   : (1, NB*I, JK)  predictions, samples*input-caps flattened on rows,
                             (J, D) fused on lanes
    b0_ref  : (NB*I, J)      routing-logit prior b, tiled over the NB samples (resident)
    ce0_ref : (NB*I, JK)     softmax(b) lane-expanded with E and batch-tiled (resident)
    e_ref   : (J, JK)   bf16 0/1 expansion matrix  E[j, j*D + d] = 1      (resident)
    et_ref  : (JK, J)   bf16 E^T                                          (resident)
    sel_ref : (NB, NB*I) bf16 0/1 per-sample row selector                 (resident)
    selt_ref: (NB*I, NB) bf16 Sel^T                                       (resident)
    v_ref   : (1, NB, JK)    output capsules (fused lanes)
    c_ref   : (1, NB*I, J)   final coupling coefficients
    """
    bf16 = jnp.bfloat16
    U = u_ref[0]                                    # (NB*I, JK) f32
    E16 = e_ref[...]                                # (J, JK)    bf16 (exact 0/1)
    Et16 = et_ref[...]                              # (JK, J)    bf16
    Sel16 = sel_ref[...]                            # (NB, NB*I) bf16
    Selt16 = selt_ref[...]                          # (NB*I, NB) bf16

    def squash(S):                                  # S: (NB, JK), per-class groups on lanes
        # group L2 per class via E^T (exact 0/1 contraction over the class's D lanes)
        l2 = jnp.dot((S * S).astype(bf16), Et16,
                     preferred_element_type=jnp.float32)                    # (NB, J)
        # l2/(1+l2)/sqrt(l2) == sqrt(l2)/(1+l2): EUP sqrt + EUP recip, no 0/0 hazard.
        fac = jnp.sqrt(l2) * pl.reciprocal(1.0 + l2, approx=True)           # (NB, J)
        # lane-expand the per-class factor (exact copy through 0/1 E)
        return S * jnp.dot(fac.astype(bf16), E16,
                           preferred_element_type=jnp.float32)              # (NB, JK)

    # ---- initial step: c0 = softmax(b) hoisted to the wrapper (batch-invariant) ----
    # per-sample sum over input caps as one MXU contraction against the 0/1 selector
    S = jnp.dot(Sel16, (ce0_ref[...] * U).astype(bf16),
                preferred_element_type=jnp.float32)                         # (NB, JK)
    V = squash(S)

    # ---- routing iterations (tiny static trip count -> unrolled) ----
    b_flat = b0_ref[...]                                                    # (NB*I, J) f32
    C = jnp.zeros_like(b_flat)
    for _ in range(n_iter):
        # broadcast v to every input-capsule row of its sample (MXU, 0/1 Sel^T)
        V_exp = jnp.dot(Selt16, V.astype(bf16),
                        preferred_element_type=jnp.float32)                 # (NB*I, JK)
        # agreement update: b += sum_d u_predict * v  (grouped per class via E^T)
        b_flat = b_flat + jnp.dot((U * V_exp).astype(bf16), Et16,
                                  preferred_element_type=jnp.float32)       # (NB*I, J)
        # softmax over output_caps (f32 VPU/EUP; exact division for the returned c)
        m = jnp.max(b_flat, axis=-1, keepdims=True)
        e = jnp.exp(b_flat - m)
        C = e / jnp.sum(e, axis=-1, keepdims=True)                          # (NB*I, J)
        # lane-expand c, weight the predictions, per-sample sum over input caps (MXU)
        cE = jnp.dot(C.astype(bf16), E16,
                     preferred_element_type=jnp.float32)                    # (NB*I, JK)
        S = jnp.dot(Sel16, (cE * U).astype(bf16),
                    preferred_element_type=jnp.float32)                     # (NB, JK)
        V = squash(S)

    v_ref[0] = V                                                            # (NB, JK)
    c_ref[0] = C                                                            # (NB*I, J)


# --------------------------------------------------------------------------
# Wrapper: layout plumbing + pallas_call with a blocked batch grid.
# --------------------------------------------------------------------------
def agreement_routing(b_param, u_predict, n_iterations, *, max_nb=8):
    B, I, J, D = u_predict.shape
    JK = J * D
    # TODO(synk): n_iterations == 0 branch (returns the unbatched softmax(b)) is
    # not implemented in the kernel; the module is used with n_iterations >= 1.
    assert n_iterations >= 1

    # Samples per grid step: largest divisor of B (<= max_nb) that still leaves
    # >= 2 grid steps when B > 1, so a v7x megacore can shard the batch axis.
    NB = 1
    for nb in range(1, min(B, max_nb) + 1):
        if B % nb == 0 and B // nb >= 2:
            NB = nb
    if B == 1:
        NB = 1
    G = B // NB

    # Flatten (samples-per-step, input_caps) on rows and (J, D) on lanes in the
    # wrapper so the kernel never reshapes.
    u_flat = u_predict.astype(jnp.float32).reshape(G, NB * I, JK)
    b_param = b_param.astype(jnp.float32)

    # 0/1 expansion matrix for the fused lane layout: E[j, j*D + d] = 1 (exact in bf16).
    E = jnp.kron(jnp.eye(J, dtype=jnp.float32), jnp.ones((1, D), jnp.float32))    # (J, JK)
    E16 = E.astype(jnp.bfloat16)
    Et16 = E.T.astype(jnp.bfloat16)

    # 0/1 per-sample row selector over the flattened (NB*I) rows (exact in bf16).
    Sel = jnp.kron(jnp.eye(NB, dtype=jnp.float32), jnp.ones((1, I), jnp.float32))  # (NB, NB*I)
    Sel16 = Sel.astype(jnp.bfloat16)
    Selt16 = Sel.T.astype(jnp.bfloat16)

    # Batch-invariant initial coupling softmax(b): hoisted, lane-expanded, batch-tiled.
    cE0 = jnp.dot(jax.nn.softmax(b_param, axis=1), E)                              # (I, JK)
    cE0_t = jnp.tile(cE0, (NB, 1))                                                 # (NB*I, JK)
    b0_t = jnp.tile(b_param, (NB, 1))                                              # (NB*I, J)

    kernel = functools.partial(_routing_kernel, n_iter=n_iterations)

    v_blk, c_blk = pl.pallas_call(
        kernel,
        grid=(G,),
        in_specs=[
            pl.BlockSpec((1, NB * I, JK), lambda g: (g, 0, 0)),   # u tile (pipelined per step)
            pl.BlockSpec((NB * I, J),  lambda g: (0, 0)),         # tiled b prior   (resident)
            pl.BlockSpec((NB * I, JK), lambda g: (0, 0)),         # tiled softmax(b) @ E (resident)
            pl.BlockSpec((J, JK),      lambda g: (0, 0)),         # E    bf16 (resident)
            pl.BlockSpec((JK, J),      lambda g: (0, 0)),         # E^T  bf16 (resident)
            pl.BlockSpec((NB, NB * I), lambda g: (0, 0)),         # Sel  bf16 (resident)
            pl.BlockSpec((NB * I, NB), lambda g: (0, 0)),         # Sel^T bf16 (resident)
        ],
        out_specs=(
            pl.BlockSpec((1, NB, JK),    lambda g: (g, 0, 0)),
            pl.BlockSpec((1, NB * I, J), lambda g: (g, 0, 0)),
        ),
        out_shape=(
            jax.ShapeDtypeStruct((G, NB, JK), jnp.float32),
            jax.ShapeDtypeStruct((G, NB * I, J), jnp.float32),
        ),
        compiler_params=pltpu.CompilerParams(
            # batch axis is embarrassingly parallel; harmless on 1-TC chips.
            dimension_semantics=("parallel",),
        ),
    )(u_flat, b0_t, cE0_t, E16, Et16, Sel16, Selt16)

    v = v_blk.reshape(B, J, D)
    c = c_blk.reshape(B, I, J, 1)    # PyTorch returns c with a trailing singleton dim
    return v, c


# --------------------------------------------------------------------------
# Pure-JAX reference (mirrors the PyTorch module, no matmul tricks).
# --------------------------------------------------------------------------
def _routing_reference(b, u_predict, n_iterations):
    B, I, J, D = u_predict.shape

    def squash(x):                                   # (B, J, D), norm over last dim
        l2 = jnp.sum(x * x, axis=2, keepdims=True)
        return x * (jnp.sqrt(l2) / (1.0 + l2))       # == l2/(1+l2)/sqrt(l2)

    c0 = jax.nn.softmax(b, axis=1)                                  # (I, J)
    s = jnp.sum(c0[None, :, :, None] * u_predict, axis=1)           # (B, J, D)
    v = squash(s)
    b_batch = jnp.broadcast_to(b[None], (B, I, J))
    c = None
    for _ in range(n_iterations):
        b_batch = b_batch + jnp.sum(u_predict * v[:, None, :, :], axis=-1)
        c = jax.nn.softmax(b_batch, axis=-1)                        # (B, I, J)
        s = jnp.sum(c[..., None] * u_predict, axis=1)
        v = squash(s)
    return v, c[..., None]


if __name__ == "__main__":
    key = jax.random.PRNGKey(0)
    # Small shapes consistent with the module's forward signature:
    # u_predict: (batch, input_caps, output_caps, output_dim)
    B, I, J, D = 4, 128, 10, 16
    N_ITER = 3

    u_predict = 0.1 * jax.random.normal(jax.random.fold_in(key, 1), (B, I, J, D), jnp.float32)
    # Module initializes b to zeros; use a small random b to exercise the general path.
    b_param = 0.5 * jax.random.normal(jax.random.fold_in(key, 2), (I, J), jnp.float32)

    fwd = jax.jit(functools.partial(agreement_routing, n_iterations=N_ITER))
    v, c = fwd(b_param, u_predict)
    jax.block_until_ready((v, c))

    assert v.shape == (B, J, D)
    assert c.shape == (B, I, J, 1)

    v_exp, c_exp = _routing_reference(b_param, u_predict, N_ITER)
    # Tolerance covers bf16 MXU operands (f32 accumulation) + approx EUP reciprocal
    # vs. the pure-f32 reference.
    assert bool(jnp.allclose(v, v_exp, rtol=3e-2, atol=3e-3)), float(jnp.max(jnp.abs(v - v_exp)))
    assert bool(jnp.allclose(c, c_exp, rtol=3e-2, atol=3e-3)), float(jnp.max(jnp.abs(c - c_exp)))

    print("KERNEL_OK")
</pallas_src>

<mosaic_0001>
module attributes {stable_mosaic.version = 11 : i64} {
  func.func @_routing_kernel(%arg0: i32, %arg1: memref<1x256x160xf32, #tpu.memory_space<vmem>>, %arg2: memref<256x10xf32, #tpu.memory_space<vmem>>, %arg3: memref<256x160xf32, #tpu.memory_space<vmem>>, %arg4: memref<10x160xbf16, #tpu.memory_space<vmem>>, %arg5: memref<160x10xbf16, #tpu.memory_space<vmem>>, %arg6: memref<2x256xbf16, #tpu.memory_space<vmem>>, %arg7: memref<256x2xbf16, #tpu.memory_space<vmem>>, %arg8: memref<1x2x160xf32, #tpu.memory_space<vmem>>, %arg9: memref<1x256x10xf32, #tpu.memory_space<vmem>>) attributes {dimension_semantics = [#tpu.dimension_semantics<parallel>], iteration_bounds = array<i64: 2>, scalar_prefetch = 0 : i64, scratch_operands = 0 : i64, tpu.core_type = #tpu.core_type<tc>, window_params = [{transform_indices = @transform_0, window_bounds = array<i64: 1, 256, 160>}, {pipeline_mode = #tpu.pipeline_mode<synchronous>, transform_indices = @transform_1, window_bounds = array<i64: 256, 10>}, {pipeline_mode = #tpu.pipeline_mode<synchronous>, transform_indices = @transform_2, window_bounds = array<i64: 256, 160>}, {pipeline_mode = #tpu.pipeline_mode<synchronous>, transform_indices = @transform_3, window_bounds = array<i64: 10, 160>}, {pipeline_mode = #tpu.pipeline_mode<synchronous>, transform_indices = @transform_4, window_bounds = array<i64: 160, 10>}, {pipeline_mode = #tpu.pipeline_mode<synchronous>, transform_indices = @transform_5, window_bounds = array<i64: 2, 256>}, {pipeline_mode = #tpu.pipeline_mode<synchronous>, transform_indices = @transform_6, window_bounds = array<i64: 256, 2>}, {transform_indices = @transform_7, window_bounds = array<i64: 1, 2, 160>}, {transform_indices = @transform_8, window_bounds = array<i64: 1, 256, 10>}]} {
    %c0 = arith.constant 0 : index
    %c0_0 = arith.constant 0 : index
    %c0_1 = arith.constant 0 : index
    %0 = vector.load %arg1[%c0, %c0_0, %c0_1] : memref<1x256x160xf32, #tpu.memory_space<vmem>>, vector<1x256x160xf32>
    %1 = vector.shape_cast %0 : vector<1x256x160xf32> to vector<256x160xf32>
    %c0_2 = arith.constant 0 : index
    %c0_3 = arith.constant 0 : index
    %2 = vector.load %arg4[%c0_2, %c0_3] : memref<10x160xbf16, #tpu.memory_space<vmem>>, vector<10x160xbf16>
    %c0_4 = arith.constant 0 : index
    %c0_5 = arith.constant 0 : index
    %3 = vector.load %arg5[%c0_4, %c0_5] : memref<160x10xbf16, #tpu.memory_space<vmem>>, vector<160x10xbf16>
    %c0_6 = arith.constant 0 : index
    %c0_7 = arith.constant 0 : index
    %4 = vector.load %arg6[%c0_6, %c0_7] : memref<2x256xbf16, #tpu.memory_space<vmem>>, vector<2x256xbf16>
    %c0_8 = arith.constant 0 : index
    %c0_9 = arith.constant 0 : index
    %5 = vector.load %arg7[%c0_8, %c0_9] : memref<256x2xbf16, #tpu.memory_space<vmem>>, vector<256x2xbf16>
    %c0_10 = arith.constant 0 : index
    %c0_11 = arith.constant 0 : index
    %6 = vector.load %arg3[%c0_10, %c0_11] : memref<256x160xf32, #tpu.memory_space<vmem>>, vector<256x160xf32>
    %7 = arith.mulf %6, %1 : vector<256x160xf32>
    %8 = arith.truncf %7 : vector<256x160xf32> to vector<256x160xbf16>
    %cst = arith.constant dense<0.000000e+00> : vector<2x160xf32>
    %9 = tpu.matmul %4, %8, %cst {dimension_numbers = #tpu.dot_dimension_numbers<[1], [0], [0], [1], [0, 0, 1, 1], [], []>} : vector<2x256xbf16>, vector<256x160xbf16>, vector<2x160xf32> -> vector<2x160xf32>
    %10 = arith.mulf %9, %9 : vector<2x160xf32>
    %11 = arith.truncf %10 : vector<2x160xf32> to vector<2x160xbf16>
    %cst_12 = arith.constant dense<0.000000e+00> : vector<2x10xf32>
    %12 = tpu.matmul %11, %3, %cst_12 {dimension_numbers = #tpu.dot_dimension_numbers<[1], [0], [0], [1], [0, 0, 1, 1], [], []>} : vector<2x160xbf16>, vector<160x10xbf16>, vector<2x10xf32> -> vector<2x10xf32>
    %13 = math.sqrt %12 : vector<2x10xf32>
    %cst_13 = arith.constant 1.000000e+00 : f32
    %14 = vector.broadcast %cst_13 : f32 to vector<2x10xf32>
    %15 = arith.addf %14, %12 : vector<2x10xf32>
    %16 = tpu.reciprocal %15 {approx = true} : vector<2x10xf32> -> vector<2x10xf32>
    %17 = arith.mulf %13, %16 : vector<2x10xf32>
    %18 = arith.truncf %17 : vector<2x10xf32> to vector<2x10xbf16>
    %cst_14 = arith.constant dense<0.000000e+00> : vector<2x160xf32>
    %19 = tpu.matmul %18, %2, %cst_14 {dimension_numbers = #tpu.dot_dimension_numbers<[1], [0], [0], [1], [0, 0, 1, 1], [], []>} : vector<2x10xbf16>, vector<10x160xbf16>, vector<2x160xf32> -> vector<2x160xf32>
    %20 = arith.mulf %9, %19 : vector<2x160xf32>
    %c0_15 = arith.constant 0 : index
    %c0_16 = arith.constant 0 : index
    %21 = vector.load %arg2[%c0_15, %c0_16] : memref<256x10xf32, #tpu.memory_space<vmem>>, vector<256x10xf32>
    %22 = arith.truncf %20 : vector<2x160xf32> to vector<2x160xbf16>
    %cst_17 = arith.constant dense<0.000000e+00> : vector<256x160xf32>
    %23 = tpu.matmul %5, %22, %cst_17 {dimension_numbers = #tpu.dot_dimension_numbers<[1], [0], [0], [1], [0, 0, 1, 1], [], []>} : vector<256x2xbf16>, vector<2x160xbf16>, vector<256x160xf32> -> vector<256x160xf32>
    %24 = arith.mulf %1, %23 : vector<256x160xf32>
    %25 = arith.truncf %24 : vector<256x160xf32> to vector<256x160xbf16>
    %cst_18 = arith.constant dense<0.000000e+00> : vector<256x10xf32>
    %26 = tpu.matmul %25, %3, %cst_18 {dimension_numbers = #tpu.dot_dimension_numbers<[1], [0], [0], [1], [0, 0, 1, 1], [], []>} : vector<256x160xbf16>, vector<160x10xbf16>, vector<256x10xf32> -> vector<256x10xf32>
    %27 = arith.addf %21, %26 : vector<256x10xf32>
    %cst_19 = arith.constant dense<0xFF800000> : vector<256xf32>
    %28 = vector.multi_reduction <maximumf>, %27, %cst_19 [1] : vector<256x10xf32> to vector<256xf32>
    %29 = vector.shape_cast %28 : vector<256xf32> to vector<256x1xf32>
    %30 = vector.broadcast %29 : vector<256x1xf32> to vector<256x10xf32>
    %31 = arith.subf %27, %30 : vector<256x10xf32>
    %32 = math.exp %31 : vector<256x10xf32>
    %cst_20 = arith.constant dense<0.000000e+00> : vector<256xf32>
    %33 = vector.multi_reduction <add>, %32, %cst_20 [1] : vector<256x10xf32> to vector<256xf32>
    %34 = vector.shape_cast %33 : vector<256xf32> to vector<256x1xf32>
    %35 = vector.broadcast %34 : vector<256x1xf32> to vector<256x10xf32>
    %36 = arith.divf %32, %35 : vector<256x10xf32>
    %37 = arith.truncf %36 : vector<256x10xf32> to vector<256x10xbf16>
    %cst_21 = arith.constant dense<0.000000e+00> : vector<256x160xf32>
    %38 = tpu.matmul %37, %2, %cst_21 {dimension_numbers = #tpu.dot_dimension_numbers<[1], [0], [0], [1], [0, 0, 1, 1], [], []>} : vector<256x10xbf16>, vector<10x160xbf16>, vector<256x160xf32> -> vector<256x160xf32>
    %39 = arith.mulf %38, %1 : vector<256x160xf32>
    %40 = arith.truncf %39 : vector<256x160xf32> to vector<256x160xbf16>
    %cst_22 = arith.constant dense<0.000000e+00> : vector<2x160xf32>
    %41 = tpu.matmul %4, %40, %cst_22 {dimension_numbers = #tpu.dot_dimension_numbers<[1], [0], [0], [1], [0, 0, 1, 1], [], []>} : vector<2x256xbf16>, vector<256x160xbf16>, vector<2x160xf32> -> vector<2x160xf32>
    %42 = arith.mulf %41, %41 : vector<2x160xf32>
    %43 = arith.truncf %42 : vector<2x160xf32> to vector<2x160xbf16>
    %cst_23 = arith.constant dense<0.000000e+00> : vector<2x10xf32>
    %44 = tpu.matmul %43, %3, %cst_23 {dimension_numbers = #tpu.dot_dimension_numbers<[1], [0], [0], [1], [0, 0, 1, 1], [], []>} : vector<2x160xbf16>, vector<160x10xbf16>, vector<2x10xf32> -> vector<2x10xf32>
    %45 = math.sqrt %44 : vector<2x10xf32>
    %cst_24 = arith.constant 1.000000e+00 : f32
    %46 = vector.broadcast %cst_24 : f32 to vector<2x10xf32>
    %47 = arith.addf %46, %44 : vector<2x10xf32>
    %48 = tpu.reciprocal %47 {approx = true} : vector<2x10xf32> -> vector<2x10xf32>
    %49 = arith.mulf %45, %48 : vector<2x10xf32>
    %50 = arith.truncf %49 : vector<2x10xf32> to vector<2x10xbf16>
    %cst_25 = arith.constant dense<0.000000e+00> : vector<2x160xf32>
    %51 = tpu.matmul %50, %2, %cst_25 {dimension_numbers = #tpu.dot_dimension_numbers<[1], [0], [0], [1], [0, 0, 1, 1], [], []>} : vector<2x10xbf16>, vector<10x160xbf16>, vector<2x160xf32> -> vector<2x160xf32>
    %52 = arith.mulf %41, %51 : vector<2x160xf32>
    %53 = arith.truncf %52 : vector<2x160xf32> to vector<2x160xbf16>
    %cst_26 = arith.constant dense<0.000000e+00> : vector<256x160xf32>
    %54 = tpu.matmul %5, %53, %cst_26 {dimension_numbers = #tpu.dot_dimension_numbers<[1], [0], [0], [1], [0, 0, 1, 1], [], []>} : vector<256x2xbf16>, vector<2x160xbf16>, vector<256x160xf32> -> vector<256x160xf32>
    %55 = arith.mulf %1, %54 : vector<256x160xf32>
    %56 = arith.truncf %55 : vector<256x160xf32> to vector<256x160xbf16>
    %cst_27 = arith.constant dense<0.000000e+00> : vector<256x10xf32>
    %57 = tpu.matmul %56, %3, %cst_27 {dimension_numbers = #tpu.dot_dimension_numbers<[1], [0], [0], [1], [0, 0, 1, 1], [], []>} : vector<256x160xbf16>, vector<160x10xbf16>, vector<256x10xf32> -> vector<256x10xf32>
    %58 = arith.addf %27, %57 : vector<256x10xf32>
    %cst_28 = arith.constant dense<0xFF800000> : vector<256xf32>
    %59 = vector.multi_reduction <maximumf>, %58, %cst_28 [1] : vector<256x10xf32> to vector<256xf32>
    %60 = vector.shape_cast %59 : vector<256xf32> to vector<256x1xf32>
    %61 = vector.broadcast %60 : vector<256x1xf32> to vector<256x10xf32>
    %62 = arith.subf %58, %61 : vector<256x10xf32>
    %63 = math.exp %62 : vector<256x10xf32>
    %cst_29 = arith.constant dense<0.000000e+00> : vector<256xf32>
    %64 = vector.multi_reduction <add>, %63, %cst_29 [1] : vector<256x10xf32> to vector<256xf32>
    %65 = vector.shape_cast %64 : vector<256xf32> to vector<256x1xf32>
    %66 = vector.broadcast %65 : vector<256x1xf32> to vector<256x10xf32>
    %67 = arith.divf %63, %66 : vector<256x10xf32>
    %68 = arith.truncf %67 : vector<256x10xf32> to vector<256x10xbf16>
    %cst_30 = arith.constant dense<0.000000e+00> : vector<256x160xf32>
    %69 = tpu.matmul %68, %2, %cst_30 {dimension_numbers = #tpu.dot_dimension_numbers<[1], [0], [0], [1], [0, 0, 1, 1], [], []>} : vector<256x10xbf16>, vector<10x160xbf16>, vector<256x160xf32> -> vector<256x160xf32>
    %70 = arith.mulf %69, %1 : vector<256x160xf32>
    %71 = arith.truncf %70 : vector<256x160xf32> to vector<256x160xbf16>
    %cst_31 = arith.constant dense<0.000000e+00> : vector<2x160xf32>
    %72 = tpu.matmul %4, %71, %cst_31 {dimension_numbers = #tpu.dot_dimension_numbers<[1], [0], [0], [1], [0, 0, 1, 1], [], []>} : vector<2x256xbf16>, vector<256x160xbf16>, vector<2x160xf32> -> vector<2x160xf32>
    %73 = arith.mulf %72, %72 : vector<2x160xf32>
    %74 = arith.truncf %73 : vector<2x160xf32> to vector<2x160xbf16>
    %cst_32 = arith.constant dense<0.000000e+00> : vector<2x10xf32>
    %75 = tpu.matmul %74, %3, %cst_32 {dimension_numbers = #tpu.dot_dimension_numbers<[1], [0], [0], [1], [0, 0, 1, 1], [], []>} : vector<2x160xbf16>, vector<160x10xbf16>, vector<2x10xf32> -> vector<2x10xf32>
    %76 = math.sqrt %75 : vector<2x10xf32>
    %cst_33 = arith.constant 1.000000e+00 : f32
    %77 = vector.broadcast %cst_33 : f32 to vector<2x10xf32>
    %78 = arith.addf %77, %75 : vector<2x10xf32>
    %79 = tpu.reciprocal %78 {approx = true} : vector<2x10xf32> -> vector<2x10xf32>
    %80 = arith.mulf %76, %79 : vector<2x10xf32>
    %81 = arith.truncf %80 : vector<2x10xf32> to vector<2x10xbf16>
    %cst_34 = arith.constant dense<0.000000e+00> : vector<2x160xf32>
    %82 = tpu.matmul %81, %2, %cst_34 {dimension_numbers = #tpu.dot_dimension_numbers<[1], [0], [0], [1], [0, 0, 1, 1], [], []>} : vector<2x10xbf16>, vector<10x160xbf16>, vector<2x160xf32> -> vector<2x160xf32>
    %83 = arith.mulf %72, %82 : vector<2x160xf32>
    %84 = arith.truncf %83 : vector<2x160xf32> to vector<2x160xbf16>
    %cst_35 = arith.constant dense<0.000000e+00> : vector<256x160xf32>
    %85 = tpu.matmul %5, %84, %cst_35 {dimension_numbers = #tpu.dot_dimension_numbers<[1], [0], [0], [1], [0, 0, 1, 1], [], []>} : vector<256x2xbf16>, vector<2x160xbf16>, vector<256x160xf32> -> vector<256x160xf32>
    %86 = arith.mulf %1, %85 : vector<256x160xf32>
    %87 = arith.truncf %86 : vector<256x160xf32> to vector<256x160xbf16>
    %cst_36 = arith.constant dense<0.000000e+00> : vector<256x10xf32>
    %88 = tpu.matmul %87, %3, %cst_36 {dimension_numbers = #tpu.dot_dimension_numbers<[1], [0], [0], [1], [0, 0, 1, 1], [], []>} : vector<256x160xbf16>, vector<160x10xbf16>, vector<256x10xf32> -> vector<256x10xf32>
    %89 = arith.addf %58, %88 : vector<256x10xf32>
    %cst_37 = arith.constant dense<0xFF800000> : vector<256xf32>
    %90 = vector.multi_reduction <maximumf>, %89, %cst_37 [1] : vector<256x10xf32> to vector<256xf32>
    %91 = vector.shape_cast %90 : vector<256xf32> to vector<256x1xf32>
    %92 = vector.broadcast %91 : vector<256x1xf32> to vector<256x10xf32>
    %93 = arith.subf %89, %92 : vector<256x10xf32>
    %94 = math.exp %93 : vector<256x10xf32>
    %cst_38 = arith.constant dense<0.000000e+00> : vector<256xf32>
    %95 = vector.multi_reduction <add>, %94, %cst_38 [1] : vector<256x10xf32> to vector<256xf32>
    %96 = vector.shape_cast %95 : vector<256xf32> to vector<256x1xf32>
    %97 = vector.broadcast %96 : vector<256x1xf32> to vector<256x10xf32>
    %98 = arith.divf %94, %97 : vector<256x10xf32>
    %99 = arith.truncf %98 : vector<256x10xf32> to vector<256x10xbf16>
    %cst_39 = arith.constant dense<0.000000e+00> : vector<256x160xf32>
    %100 = tpu.matmul %99, %2, %cst_39 {dimension_numbers = #tpu.dot_dimension_numbers<[1], [0], [0], [1], [0, 0, 1, 1], [], []>} : vector<256x10xbf16>, vector<10x160xbf16>, vector<256x160xf32> -> vector<256x160xf32>
    %101 = arith.mulf %100, %1 : vector<256x160xf32>
    %102 = arith.truncf %101 : vector<256x160xf32> to vector<256x160xbf16>
    %cst_40 = arith.constant dense<0.000000e+00> : vector<2x160xf32>
    %103 = tpu.matmul %4, %102, %cst_40 {dimension_numbers = #tpu.dot_dimension_numbers<[1], [0], [0], [1], [0, 0, 1, 1], [], []>} : vector<2x256xbf16>, vector<256x160xbf16>, vector<2x160xf32> -> vector<2x160xf32>
    %104 = arith.mulf %103, %103 : vector<2x160xf32>
    %105 = arith.truncf %104 : vector<2x160xf32> to vector<2x160xbf16>
    %cst_41 = arith.constant dense<0.000000e+00> : vector<2x10xf32>
    %106 = tpu.matmul %105, %3, %cst_41 {dimension_numbers = #tpu.dot_dimension_numbers<[1], [0], [0], [1], [0, 0, 1, 1], [], []>} : vector<2x160xbf16>, vector<160x10xbf16>, vector<2x10xf32> -> vector<2x10xf32>
    %107 = math.sqrt %106 : vector<2x10xf32>
    %cst_42 = arith.constant 1.000000e+00 : f32
    %108 = vector.broadcast %cst_42 : f32 to vector<2x10xf32>
    %109 = arith.addf %108, %106 : vector<2x10xf32>
    %110 = tpu.reciprocal %109 {approx = true} : vector<2x10xf32> -> vector<2x10xf32>
    %111 = arith.mulf %107, %110 : vector<2x10xf32>
    %112 = arith.truncf %111 : vector<2x10xf32> to vector<2x10xbf16>
    %cst_43 = arith.constant dense<0.000000e+00> : vector<2x160xf32>
    %113 = tpu.matmul %112, %2, %cst_43 {dimension_numbers = #tpu.dot_dimension_numbers<[1], [0], [0], [1], [0, 0, 1, 1], [], []>} : vector<2x10xbf16>, vector<10x160xbf16>, vector<2x160xf32> -> vector<2x160xf32>
    %114 = arith.mulf %103, %113 : vector<2x160xf32>
    %c0_44 = arith.constant 0 : index
    %c0_45 = arith.constant 0 : index
    %c0_46 = arith.constant 0 : index
    %115 = vector.load %arg8[%c0_44, %c0_45, %c0_46] : memref<1x2x160xf32, #tpu.memory_space<vmem>>, vector<1x2x160xf32>
    %116 = vector.shape_cast %115 : vector<1x2x160xf32> to vector<2x160xf32>
    %117 = vector.shape_cast %114 : vector<2x160xf32> to vector<1x2x160xf32>
    tpu.vector_store %arg8[%c0_44, %c0_45, %c0_46], %117 {strides = array<i32>} : memref<1x2x160xf32, #tpu.memory_space<vmem>>, vector<1x2x160xf32>,
    %c0_47 = arith.constant 0 : index
    %c0_48 = arith.constant 0 : index
    %c0_49 = arith.constant 0 : index
    %118 = vector.load %arg9[%c0_47, %c0_48, %c0_49] : memref<1x256x10xf32, #tpu.memory_space<vmem>>, vector<1x256x10xf32>
    %119 = vector.shape_cast %118 : vector<1x256x10xf32> to vector<256x10xf32>
    %120 = vector.shape_cast %98 : vector<256x10xf32> to vector<1x256x10xf32>
    tpu.vector_store %arg9[%c0_47, %c0_48, %c0_49], %120 {strides = array<i32>} : memref<1x256x10xf32, #tpu.memory_space<vmem>>, vector<1x256x10xf32>,
    return
  }
  func.func @transform_0(%arg0: i32) -> (i32, i32, i32) {
    %c0_i32 = arith.constant 0 : i32
    %c0_i32_0 = arith.constant 0 : i32
    %c0_i32_1 = arith.constant 0 : i32
    return %arg0, %c0_i32, %c0_i32_0 : i32, i32, i32
  }
  func.func @transform_1(%arg0: i32) -> (i32, i32) {
    %c0_i32 = arith.constant 0 : i32
    %c0_i32_0 = arith.constant 0 : i32
    %c0_i32_1 = arith.constant 0 : i32
    return %c0_i32, %c0_i32_0 : i32, i32
  }
  func.func @transform_2(%arg0: i32) -> (i32, i32) {
    %c0_i32 = arith.constant 0 : i32
    %c0_i32_0 = arith.constant 0 : i32
    %c0_i32_1 = arith.constant 0 : i32
    return %c0_i32, %c0_i32_0 : i32, i32
  }
  func.func @transform_3(%arg0: i32) -> (i32, i32) {
    %c0_i32 = arith.constant 0 : i32
    %c0_i32_0 = arith.constant 0 : i32
    %c0_i32_1 = arith.constant 0 : i32
    return %c0_i32, %c0_i32_0 : i32, i32
  }
  func.func @transform_4(%arg0: i32) -> (i32, i32) {
    %c0_i32 = arith.constant 0 : i32
    %c0_i32_0 = arith.constant 0 : i32
    %c0_i32_1 = arith.constant 0 : i32
    return %c0_i32, %c0_i32_0 : i32, i32
  }
  func.func @transform_5(%arg0: i32) -> (i32, i32) {
    %c0_i32 = arith.constant 0 : i32
    %c0_i32_0 = arith.constant 0 : i32
    %c0_i32_1 = arith.constant 0 : i32
    return %c0_i32, %c0_i32_0 : i32, i32
  }
  func.func @transform_6(%arg0: i32) -> (i32, i32) {
    %c0_i32 = arith.constant 0 : i32
    %c0_i32_0 = arith.constant 0 : i32
    %c0_i32_1 = arith.constant 0 : i32
    return %c0_i32, %c0_i32_0 : i32, i32
  }
  func.func @transform_7(%arg0: i32) -> (i32, i32, i32) {
    %c0_i32 = arith.constant 0 : i32
    %c0_i32_0 = arith.constant 0 : i32
    %c0_i32_1 = arith.constant 0 : i32
    return %arg0, %c0_i32, %c0_i32_0 : i32, i32, i32
  }
  func.func @transform_8(%arg0: i32) -> (i32, i32, i32) {
    %c0_i32 = arith.constant 0 : i32
    %c0_i32_0 = arith.constant 0 : i32
    %c0_i32_1 = arith.constant 0 : i32
    return %arg0, %c0_i32, %c0_i32_0 : i32, i32, i32
  }
}

</mosaic_0001>

<llo_original>
// kernel: agreement_routing.1
$region0: #{agreement_routing.1}
  #allocation0 [shape = 'u32[]', space=smem, size = 0x4, offset = 0x4, fixed_abs, tag = 'smem constant byte address 0x4 - core index']
  #allocation1 [shape = 'u32[144,128]{1,0:T(1,128)}', space=vmem, size = 0x12000, scoped, tag = 'internal scratch']
  %s0 = inlined_call_operand.vmem [shape: f32[2,256,160], index: 0, kind: input, shape index: {}]
  %s1 = inlined_call_operand.vmem [shape: f32[256,10], index: 1, kind: input, shape index: {}]
  %s2 = inlined_call_operand.vmem [shape: f32[256,160], index: 2, kind: input, shape index: {}]
  %s3 = inlined_call_operand.vmem [shape: bf16[10,160], index: 3, kind: input, shape index: {}]
  %s4 = inlined_call_operand.vmem [shape: bf16[160,10], index: 4, kind: input, shape index: {}]
  %s5 = inlined_call_operand.vmem [shape: bf16[2,256], index: 5, kind: input, shape index: {}]
  %s6 = inlined_call_operand.vmem [shape: bf16[256,2], index: 6, kind: input, shape index: {}]
  %s7 = inlined_call_operand.vmem [shape: f32[2,2,160], index: 7, kind: output, shape index: {0}]
  %s8 = inlined_call_operand.vmem [shape: f32[2,256,10], index: 8, kind: output, shape index: {1}]
  %9 = xla_tuple %s7, %s8
  %s10 = sld [smem:[#allocation0]]
  $region69: #{agreement_routing.1} parent=0
    _
  %s12 = ssub.s32 1, %s10
  %s13 = scalar_select 0, %s12, %s10
  loop: start=0, step=1, limit=4
  $region2: #{agreement_routing.1} parent=0 // loop_pre_header
    _
  $region3: #{agreement_routing.1} parent=0 // loop_header
    %s15 = sphi 0, %s19
    %p16 = scmp.ge.s32.totalorder %s15, 4
    %s25 = sphi 0, %s27
    %s28 = sphi 0, %s25
    %s29 = sphi 0, %s28
    %s45 = sphi 0, %s29
    %s49 = sphi 0, %s49
    %s51 = sphi 0, %s49
    %s52 = sphi 0, %s51
    %s66 = sphi 0, %s52
    %s70 = sphi 0, %s70
    %s72 = sphi 0, %s70
    %s73 = sphi 0, %s72
    %s87 = sphi 0, %s73
    %s91 = sphi 0, %s91
    %s93 = sphi 0, %s91
    %s94 = sphi 0, %s93
    %s108 = sphi 0, %s94
    %s112 = sphi 0, %s112
    %s114 = sphi 0, %s112
    %s115 = sphi 0, %s114
    %s129 = sphi 0, %s115
    %s133 = sphi 0, %s133
    %s135 = sphi 0, %s133
    %s136 = sphi 0, %s135
    %s150 = sphi 0, %s136
    %s154 = sphi 0, %s154
    %s156 = sphi 0, %s154
    %s157 = sphi 0, %s156
    %s171 = sphi 0, %s157
    %s177 = sphi 0, %s179
    %s180 = sphi 0, %s177
    %s181 = sphi 0, %s180
    %s197 = sphi 0, %s181
    %s203 = sphi 0, %s205
    %s206 = sphi 0, %s203
    %s207 = sphi 0, %s206
    %s223 = sphi 0, %s207
  $region4: #{agreement_routing.1} parent=0 // loop_header_branch
    %18 = sbr.rel (%p16) target = $region8
  $region5: #{agreement_routing.1} parent=0 // loop_body
    %s20 = ssub.s32 %s15, 1
    %s21 = ssub.s32 %s15, 2
    %s22 = sadd.s32 %s15, 1
    %s23 = ssub.s32 %s15, %s22
    %p24 = scmp.eq.s32.totalorder %s23, 0
    %s26 = sadd.s32 %s25, 1
    %s27 = scalar_select %p24, %s25, %s26
    %p30 = pneg %p24
    %p31 = scmp.eq.s32.totalorder %s15, 1
    %p32 = por %p30, %p31
    %p33 = scmp.ne.s32.totalorder %s25, %s28
    %p34 = scmp.eq.s32.totalorder %s15, 0
    %p35 = por %p33, %p34
    %p36 = scmp.ne.s32.totalorder %s25, %s28
    %p37 = scmp.eq.s32.totalorder %s20, 1
    %p38 = por %p36, %p37
    %p39 = scmp.ne.s32.totalorder %s28, %s29
    %p40 = scmp.eq.s32.totalorder %s20, 0
    %p41 = por %p39, %p40
    %p42 = scmp.ne.s32.totalorder %s28, %s29
    %p43 = scmp.eq.s32.totalorder %s21, 1
    %p44 = por %p42, %p43
    %p46 = scmp.ne.s32.totalorder %s29, %s45
    %p47 = scmp.eq.s32.totalorder %s21, 0
    %p48 = por %p46, %p47
    %s50 = sadd.s32 %s49, 1
    %p53 = scmp.eq.s32.totalorder %s15, 1
    %p54 = scmp.ne.s32.totalorder %s49, %s51
    %p55 = scmp.eq.s32.totalorder %s15, 0
    %p56 = por %p54, %p55
    %p57 = scmp.ne.s32.totalorder %s49, %s51
    %p58 = scmp.eq.s32.totalorder %s20, 1
    %p59 = por %p57, %p58
    %p60 = scmp.ne.s32.totalorder %s51, %s52
    %p61 = scmp.eq.s32.totalorder %s20, 0
    %p62 = por %p60, %p61
    %p63 = scmp.ne.s32.totalorder %s51, %s52
    %p64 = scmp.eq.s32.totalorder %s21, 1
    %p65 = por %p63, %p64
    %p67 = scmp.ne.s32.totalorder %s52, %s66
    %p68 = scmp.eq.s32.totalorder %s21, 0
    %p69 = por %p67, %p68
    %s71 = sadd.s32 %s70, 1
    %p74 = scmp.eq.s32.totalorder %s15, 1
    %p75 = scmp.ne.s32.totalorder %s70, %s72
    %p76 = scmp.eq.s32.totalorder %s15, 0
    %p77 = por %p75, %p76
    %p78 = scmp.ne.s32.totalorder %s70, %s72
    %p79 = scmp.eq.s32.totalorder %s20, 1
    %p80 = por %p78, %p79
    %p81 = scmp.ne.s32.totalorder %s72, %s73
    %p82 = scmp.eq.s32.totalorder %s20, 0
    %p83 = por %p81, %p82
    %p84 = scmp.ne.s32.totalorder %s72, %s73
    %p85 = scmp.eq.s32.totalorder %s21, 1
    %p86 = por %p84, %p85
    %p88 = scmp.ne.s32.totalorder %s73, %s87
    %p89 = scmp.eq.s32.totalorder %s21, 0
    %p90 = por %p88, %p89
    %s92 = sadd.s32 %s91, 1
    %p95 = scmp.eq.s32.totalorder %s15, 1
    %p96 = scmp.ne.s32.totalorder %s91, %s93
    %p97 = scmp.eq.s32.totalorder %s15, 0
    %p98 = por %p96, %p97
    %p99 = scmp.ne.s32.totalorder %s91, %s93
    %p100 = scmp.eq.s32.totalorder %s20, 1
    %p101 = por %p99, %p100
    %p102 = scmp.ne.s32.totalorder %s93, %s94
    %p103 = scmp.eq.s32.totalorder %s20, 0
    %p104 = por %p102, %p103
    %p105 = scmp.ne.s32.totalorder %s93, %s94
    %p106 = scmp.eq.s32.totalorder %s21, 1
    %p107 = por %p105, %p106
    %p109 = scmp.ne.s32.totalorder %s94, %s108
    %p110 = scmp.eq.s32.totalorder %s21, 0
    %p111 = por %p109, %p110
    %s113 = sadd.s32 %s112, 1
    %p116 = scmp.eq.s32.totalorder %s15, 1
    %p117 = scmp.ne.s32.totalorder %s112, %s114
    %p118 = scmp.eq.s32.totalorder %s15, 0
    %p119 = por %p117, %p118
    %p120 = scmp.ne.s32.totalorder %s112, %s114
    %p121 = scmp.eq.s32.totalorder %s20, 1
    %p122 = por %p120, %p121
    %p123 = scmp.ne.s32.totalorder %s114, %s115
    %p124 = scmp.eq.s32.totalorder %s20, 0
    %p125 = por %p123, %p124
    %p126 = scmp.ne.s32.totalorder %s114, %s115
    %p127 = scmp.eq.s32.totalorder %s21, 1
    %p128 = por %p126, %p127
    %p130 = scmp.ne.s32.totalorder %s115, %s129
    %p131 = scmp.eq.s32.totalorder %s21, 0
    %p132 = por %p130, %p131
    %s134 = sadd.s32 %s133, 1
    %p137 = scmp.eq.s32.totalorder %s15, 1
    %p138 = scmp.ne.s32.totalorder %s133, %s135
    %p139 = scmp.eq.s32.totalorder %s15, 0
    %p140 = por %p138, %p139
    %p141 = scmp.ne.s32.totalorder %s133, %s135
    %p142 = scmp.eq.s32.totalorder %s20, 1
    %p143 = por %p141, %p142
    %p144 = scmp.ne.s32.totalorder %s135, %s136
    %p145 = scmp.eq.s32.totalorder %s20, 0
    %p146 = por %p144, %p145
    %p147 = scmp.ne.s32.totalorder %s135, %s136
    %p148 = scmp.eq.s32.totalorder %s21, 1
    %p149 = por %p147, %p148
    %p151 = scmp.ne.s32.totalorder %s136, %s150
    %p152 = scmp.eq.s32.totalorder %s21, 0
    %p153 = por %p151, %p152
    %s155 = sadd.s32 %s154, 1
    %p158 = scmp.eq.s32.totalorder %s15, 1
    %p159 = scmp.ne.s32.totalorder %s154, %s156
    %p160 = scmp.eq.s32.totalorder %s15, 0
    %p161 = por %p159, %p160
    %p162 = scmp.ne.s32.totalorder %s154, %s156
    %p163 = scmp.eq.s32.totalorder %s20, 1
    %p164 = por %p162, %p163
    %p165 = scmp.ne.s32.totalorder %s156, %s157
    %p166 = scmp.eq.s32.totalorder %s20, 0
    %p167 = por %p165, %p166
    %p168 = scmp.ne.s32.totalorder %s156, %s157
    %p169 = scmp.eq.s32.totalorder %s21, 1
    %p170 = por %p168, %p169
    %p172 = scmp.ne.s32.totalorder %s157, %s171
    %p173 = scmp.eq.s32.totalorder %s21, 0
    %p174 = por %p172, %p173
    %s175 = ssub.s32 %s15, %s22
    %p176 = scmp.eq.s32.totalorder %s175, 0
    %s178 = sadd.s32 %s177, 1
    %s179 = scalar_select %p176, %s177, %s178
    %p182 = pneg %p176
    %p183 = scmp.eq.s32.totalorder %s15, 1
    %p184 = por %p182, %p183
    %p185 = scmp.ne.s32.totalorder %s177, %s180
    %p186 = scmp.eq.s32.totalorder %s15, 0
    %p187 = por %p185, %p186
    %p188 = scmp.ne.s32.totalorder %s177, %s180
    %p189 = scmp.eq.s32.totalorder %s20, 1
    %p190 = por %p188, %p189
    %p191 = scmp.ne.s32.totalorder %s180, %s181
    %p192 = scmp.eq.s32.totalorder %s20, 0
    %p193 = por %p191, %p192
    %p194 = scmp.ne.s32.totalorder %s180, %s181
    %p195 = scmp.eq.s32.totalorder %s21, 1
    %p196 = por %p194, %p195
    %p198 = scmp.ne.s32.totalorder %s181, %s197
    %p199 = scmp.eq.s32.totalorder %s21, 0
    %p200 = por %p198, %p199
    %s201 = ssub.s32 %s15, %s22
    %p202 = scmp.eq.s32.totalorder %s201, 0
    %s204 = sadd.s32 %s203, 1
    %s205 = scalar_select %p202, %s203, %s204
    %p208 = pneg %p202
    %p209 = scmp.eq.s32.totalorder %s15, 1
    %p210 = por %p208, %p209
    %p211 = scmp.ne.s32.totalorder %s203, %s206
    %p212 = scmp.eq.s32.totalorder %s15, 0
    %p213 = por %p211, %p212
    %p214 = scmp.ne.s32.totalorder %s203, %s206
    %p215 = scmp.eq.s32.totalorder %s20, 1
    %p216 = por %p214, %p215
    %p217 = scmp.ne.s32.totalorder %s206, %s207
    %p218 = scmp.eq.s32.totalorder %s20, 0
    %p219 = por %p217, %p218
    %p220 = scmp.ne.s32.totalorder %s206, %s207
    %p221 = scmp.eq.s32.totalorder %s21, 1
    %p222 = por %p220, %p221
    %p224 = scmp.ne.s32.totalorder %s207, %s223
    %p225 = scmp.eq.s32.totalorder %s21, 0
    %p226 = por %p224, %p225
    %p227 = scmp.le.s32.totalorder 1, %s15
    %p228 = scmp.lt.s32.totalorder %s15, 3
    %p229 = pnand %p227, %p228
    %p230 = pneg %p229
    // Predicated region
    $region9: #{agreement_routing.1} parent=5 // pred_check
      _
    $region10: #{agreement_routing.1} parent=5 // pred_check_branch
      %232 = sbr.rel (%p229) target = $region12
    $region11: #{agreement_routing.1} parent=5 // pred_region
      %s233 = ssub.s32 %s15, 1
      // Predicated region
      $region13: #{agreement_routing.1} parent=11 // pred_check
        %p234 = pneg %p62
      $region14: #{agreement_routing.1} parent=11 // pred_check_branch
        %236 = sbr.rel (%p234) target = $region16
      $region15: #{agreement_routing.1} parent=11 // pred_region
        _
      $region16: #{agreement_routing.1} parent=11 // pred_fallthru
        _
      // Predicated region
      $region17: #{agreement_routing.1} parent=11 // pred_check
        %p237 = pneg %p83
      $region18: #{agreement_routing.1} parent=11 // pred_check_branch
        %239 = sbr.rel (%p237) target = $region20
      $region19: #{agreement_routing.1} parent=11 // pred_region
        _
      $region20: #{agreement_routing.1} parent=11 // pred_fallthru
        _
      // Predicated region
      $region21: #{agreement_routing.1} parent=11 // pred_check
        %p240 = pneg %p104
      $region22: #{agreement_routing.1} parent=11 // pred_check_branch
        %242 = sbr.rel (%p240) target = $region24
      $region23: #{agreement_routing.1} parent=11 // pred_region
        _
      $region24: #{agreement_routing.1} parent=11 // pred_fallthru
        _
      // Predicated region
      $region25: #{agreement_routing.1} parent=11 // pred_check
        %p243 = pneg %p125
      $region26: #{agreement_routing.1} parent=11 // pred_check_branch
        %245 = sbr.rel (%p243) target = $region28
      $region27: #{agreement_routing.1} parent=11 // pred_region
        _
      $region28: #{agreement_routing.1} parent=11 // pred_fallthru
        _
      // Predicated region
      $region29: #{agreement_routing.1} parent=11 // pred_check
        %p246 = pneg %p146
      $region30: #{agreement_routing.1} parent=11 // pred_check_branch
        %248 = sbr.rel (%p246) target = $region32
      $region31: #{agreement_routing.1} parent=11 // pred_region
        _
      $region32: #{agreement_routing.1} parent=11 // pred_fallthru
        _
      // Predicated region
      $region33: #{agreement_routing.1} parent=11 // pred_check
        %p249 = pneg %p167
      $region34: #{agreement_routing.1} parent=11 // pred_check_branch
        %251 = sbr.rel (%p249) target = $region36
      $region35: #{agreement_routing.1} parent=11 // pred_region
        _
      $region36: #{agreement_routing.1} parent=11 // pred_fallthru
        _
    $region12: #{agreement_routing.1} parent=5 // pred_fallthru
      _
    %p252 = scmp.lt.s32.totalorder %s15, 2
    // Predicated region
    $region37: #{agreement_routing.1} parent=5 // pred_check
      %p253 = pneg %p252
    $region38: #{agreement_routing.1} parent=5 // pred_check_branch
      %255 = sbr.rel (%p253) target = $region40
    $region39: #{agreement_routing.1} parent=5 // pred_region
      // Predicated region
      $region41: #{agreement_routing.1} parent=39 // pred_check
        %p256 = pneg %p35
      $region42: #{agreement_routing.1} parent=39 // pred_check_branch
        %258 = sbr.rel (%p256) target = $region44
      $region43: #{agreement_routing.1} parent=39 // pred_region
        %p259 = scmp.lt.s32.totalorder %s15, 1
        %s260 = scalar_select %p259, %s15, 1
        %s261 = smul.addr %s260, 64
        %s262 = smul.addr %s261, 8
        %s263 = scalar_lea.vmem %s0, %s262
      $region44: #{agreement_routing.1} parent=39 // pred_fallthru
        _
    $region40: #{agreement_routing.1} parent=5 // pred_fallthru
      _
    %p264 = scmp.le.s32.totalorder 1, %s15
    %p265 = scmp.lt.s32.totalorder %s15, 3
    %p266 = pnand %p264, %p265
    %p267 = pneg %p266
    // Predicated region
    $region45: #{agreement_routing.1} parent=5 // pred_check
      _
    $region46: #{agreement_routing.1} parent=5 // pred_check_branch
      %269 = sbr.rel (%p266) target = $region48
    $region47: #{agreement_routing.1} parent=5 // pred_region
      %s270 = ssub.s32 %s15, 1
      %p271 = scmp.lt.s32.totalorder %s20, 1
      %s272 = scalar_select %p271, %s20, 1
      %s273 = smul.addr %s272, 64
      %s274 = smul.addr %s273, 8
      %s275 = scalar_lea.vmem %s0, %s274
      %p276 = pneg %p41
      %p277 = pneg %p38
      %p278 = pneg %p62
      %p279 = pneg %p59
      %p280 = pneg %p83
      %p281 = pneg %p80
      %p282 = pneg %p104
      %p283 = pneg %p101
      %p284 = pneg %p125
      %p285 = pneg %p122
      %p286 = pneg %p146
      %p287 = pneg %p143
      %p288 = pneg %p167
      %p289 = pneg %p164
      %p290 = pneg %p193
      %p291 = pneg %p190
      %p292 = scmp.lt.s32.totalorder %s20, 1
      %s293 = scalar_select %p292, %s20, 1
      %s294 = smul.addr %s293, 2
      %s295 = smul.addr %s294, 2
      %s296 = scalar_lea.vmem %s7, %s295
      %p297 = pneg %p219
      %p298 = pneg %p216
      %p299 = scmp.lt.s32.totalorder %s20, 1
      %s300 = scalar_select %p299, %s20, 1
      %s301 = smul.addr %s300, 32
      %s302 = smul.addr %s301, 8
      %s303 = scalar_lea.vmem %s8, %s302
      %p304 = scmp.lt.s32.totalorder %s20, 1
      %s305 = scalar_select %p304, %s20, 1
      %s306 = smul.addr %s305, 64
      %s307 = smul.addr %s306, 8
      %s308 = scalar_lea.vmem %s0, %s307
      %p309 = scmp.lt.s32.totalorder %s20, 1
      %s310 = scalar_select %p309, %s20, 1
      %s311 = smul.addr %s310, 2
      %s312 = smul.addr %s311, 2
      %s313 = scalar_lea.vmem %s7, %s312
      %p314 = scmp.lt.s32.totalorder %s20, 1
      %s315 = scalar_select %p314, %s20, 1
      %s316 = smul.addr %s315, 32
      %s317 = smul.addr %s316, 8
      %s318 = scalar_lea.vmem %s8, %s317
      %v320 = vld [vmem:[%s308] sm:$0xff]
      %v321 = vld [vmem:[%s308 + $0x8] sm:$0xff]
      %v322 = vld [vmem:[%s308 + $0x10] sm:$0xff]
      %v323 = vld [vmem:[%s308 + $0x18] sm:$0xff]
      %v324 = vld [vmem:[%s308 + $0x20] sm:$0xff]
      %v325 = vld [vmem:[%s308 + $0x28] sm:$0xff]
      %v326 = vld [vmem:[%s308 + $0x30] sm:$0xff]
      %v327 = vld [vmem:[%s308 + $0x38] sm:$0xff]
      %v328 = vld [vmem:[%s308 + $0x40] sm:$0xff]
      %v329 = vld [vmem:[%s308 + $0x48] sm:$0xff]
      %v330 = vld [vmem:[%s308 + $0x50] sm:$0xff]
      %v331 = vld [vmem:[%s308 + $0x58] sm:$0xff]
      %v332 = vld [vmem:[%s308 + $0x60] sm:$0xff]
      %v333 = vld [vmem:[%s308 + $0x68] sm:$0xff]
      %v334 = vld [vmem:[%s308 + $0x70] sm:$0xff]
      %v335 = vld [vmem:[%s308 + $0x78] sm:$0xff]
      %v336 = vld [vmem:[%s308 + $0x80] sm:$0xff]
      %v337 = vld [vmem:[%s308 + $0x88] sm:$0xff]
      %v338 = vld [vmem:[%s308 + $0x90] sm:$0xff]
      %v339 = vld [vmem:[%s308 + $0x98] sm:$0xff]
      %v340 = vld [vmem:[%s308 + $0xa0] sm:$0xff]
      %v341 = vld [vmem:[%s308 + $0xa8] sm:$0xff]
      %v342 = vld [vmem:[%s308 + $0xb0] sm:$0xff]
      %v343 = vld [vmem:[%s308 + $0xb8] sm:$0xff]
      %v344 = vld [vmem:[%s308 + $0xc0] sm:$0xff]
      %v345 = vld [vmem:[%s308 + $0xc8] sm:$0xff]
      %v346 = vld [vmem:[%s308 + $0xd0] sm:$0xff]
      %v347 = vld [vmem:[%s308 + $0xd8] sm:$0xff]
      %v348 = vld [vmem:[%s308 + $0xe0] sm:$0xff]
      %v349 = vld [vmem:[%s308 + $0xe8] sm:$0xff]
      %v350 = vld [vmem:[%s308 + $0xf0] sm:$0xff]
      %v351 = vld [vmem:[%s308 + $0xf8] sm:$0xff]
      %v352 = vld [vmem:[%s308 + $0x100] sm:$0xff]
      %v353 = vld [vmem:[%s308 + $0x108] sm:$0xff]
      %v354 = vld [vmem:[%s308 + $0x110] sm:$0xff]
      %v355 = vld [vmem:[%s308 + $0x118] sm:$0xff]
      %v356 = vld [vmem:[%s308 + $0x120] sm:$0xff]
      %v357 = vld [vmem:[%s308 + $0x128] sm:$0xff]
      %v358 = vld [vmem:[%s308 + $0x130] sm:$0xff]
      %v359 = vld [vmem:[%s308 + $0x138] sm:$0xff]
      %v360 = vld [vmem:[%s308 + $0x140] sm:$0xff]
      %v361 = vld [vmem:[%s308 + $0x148] sm:$0xff]
      %v362 = vld [vmem:[%s308 + $0x150] sm:$0xff]
      %v363 = vld [vmem:[%s308 + $0x158] sm:$0xff]
      %v364 = vld [vmem:[%s308 + $0x160] sm:$0xff]
      %v365 = vld [vmem:[%s308 + $0x168] sm:$0xff]
      %v366 = vld [vmem:[%s308 + $0x170] sm:$0xff]
      %v367 = vld [vmem:[%s308 + $0x178] sm:$0xff]
      %v368 = vld [vmem:[%s308 + $0x180] sm:$0xff]
      %v369 = vld [vmem:[%s308 + $0x188] sm:$0xff]
      %v370 = vld [vmem:[%s308 + $0x190] sm:$0xff]
      %v371 = vld [vmem:[%s308 + $0x198] sm:$0xff]
      %v372 = vld [vmem:[%s308 + $0x1a0] sm:$0xff]
      %v373 = vld [vmem:[%s308 + $0x1a8] sm:$0xff]
      %v374 = vld [vmem:[%s308 + $0x1b0] sm:$0xff]
      %v375 = vld [vmem:[%s308 + $0x1b8] sm:$0xff]
      %v376 = vld [vmem:[%s308 + $0x1c0] sm:$0xff]
      %v377 = vld [vmem:[%s308 + $0x1c8] sm:$0xff]
      %v378 = vld [vmem:[%s308 + $0x1d0] sm:$0xff]
      %v379 = vld [vmem:[%s308 + $0x1d8] sm:$0xff]
      %v380 = vld [vmem:[%s308 + $0x1e0] sm:$0xff]
      %v381 = vld [vmem:[%s308 + $0x1e8] sm:$0xff]
      %v382 = vld [vmem:[%s308 + $0x1f0] sm:$0xff]
      %v383 = vld [vmem:[%s308 + $0x1f8] sm:$0xff]
      %v384 = vld [vmem:[%s3] sm:$0xff]
      %v385 = vld [vmem:[%s3 + $0x8] sm:$0x11]
      %v386 = vld [vmem:[%s4] sm:$0xf]
      %v387 = vld [vmem:[%s4 + $0x4] sm:$0xf]
      %v388 = vld [vmem:[%s4 + $0x8] sm:$0xf]
      %v389 = vld [vmem:[%s4 + $0xc] sm:$0xf]
      %v390 = vld [vmem:[%s4 + $0x10] sm:$0xf]
      %v391 = vld [vmem:[%s4 + $0x14] sm:$0xf]
      %v392 = vld [vmem:[%s4 + $0x18] sm:$0xf]
      %v393 = vld [vmem:[%s4 + $0x1c] sm:$0xf]
      %v394 = vld [vmem:[%s4 + $0x20] sm:$0xf]
      %v395 = vld [vmem:[%s4 + $0x24] sm:$0xf]
      %v396 = vld [vmem:[%s4 + $0x28] sm:$0xf]
      %v397 = vld [vmem:[%s4 + $0x2c] sm:$0xf]
      %v398 = vld [vmem:[%s4 + $0x30] sm:$0xf]
      %v399 = vld [vmem:[%s4 + $0x34] sm:$0xf]
      %v400 = vld [vmem:[%s4 + $0x38] sm:$0xf]
      %v401 = vld [vmem:[%s4 + $0x3c] sm:$0xf]
      %v402 = vld [vmem:[%s4 + $0x40] sm:$0xf]
      %v403 = vld [vmem:[%s4 + $0x44] sm:$0xf]
      %v404 = vld [vmem:[%s4 + $0x48] sm:$0xf]
      %v405 = vld [vmem:[%s4 + $0x4c] sm:$0xf]
      %v406 = vld [vmem:[%s5] sm:$0x3]
      %v407 = vld [vmem:[%s6] sm:$0xf]
      %v408 = vld [vmem:[%s6 + $0x4] sm:$0xf]
      %v409 = vld [vmem:[%s6 + $0x8] sm:$0xf]
      %v410 = vld [vmem:[%s6 + $0xc] sm:$0xf]
      %v411 = vld [vmem:[%s6 + $0x10] sm:$0xf]
      %v412 = vld [vmem:[%s6 + $0x14] sm:$0xf]
      %v413 = vld [vmem:[%s6 + $0x18] sm:$0xf]
      %v414 = vld [vmem:[%s6 + $0x1c] sm:$0xf]
      %v415 = vld [vmem:[%s6 + $0x20] sm:$0xf]
      %v416 = vld [vmem:[%s6 + $0x24] sm:$0xf]
      %v417 = vld [vmem:[%s6 + $0x28] sm:$0xf]
      %v418 = vld [vmem:[%s6 + $0x2c] sm:$0xf]
      %v419 = vld [vmem:[%s6 + $0x30] sm:$0xf]
      %v420 = vld [vmem:[%s6 + $0x34] sm:$0xf]
      %v421 = vld [vmem:[%s6 + $0x38] sm:$0xf]
      %v422 = vld [vmem:[%s6 + $0x3c] sm:$0xf]
      %v423 = vld [vmem:[%s6 + $0x40] sm:$0xf]
      %v424 = vld [vmem:[%s6 + $0x44] sm:$0xf]
      %v425 = vld [vmem:[%s6 + $0x48] sm:$0xf]
      %v426 = vld [vmem:[%s6 + $0x4c] sm:$0xf]
      %v427 = vld [vmem:[%s6 + $0x50] sm:$0xf]
      %v428 = vld [vmem:[%s6 + $0x54] sm:$0xf]
      %v429 = vld [vmem:[%s6 + $0x58] sm:$0xf]
      %v430 = vld [vmem:[%s6 + $0x5c] sm:$0xf]
      %v431 = vld [vmem:[%s6 + $0x60] sm:$0xf]
      %v432 = vld [vmem:[%s6 + $0x64] sm:$0xf]
      %v433 = vld [vmem:[%s6 + $0x68] sm:$0xf]
      %v434 = vld [vmem:[%s6 + $0x6c] sm:$0xf]
      %v435 = vld [vmem:[%s6 + $0x70] sm:$0xf]
      %v436 = vld [vmem:[%s6 + $0x74] sm:$0xf]
      %v437 = vld [vmem:[%s6 + $0x78] sm:$0xf]
      %v438 = vld [vmem:[%s6 + $0x7c] sm:$0xf]
      %v439 = vld [vmem:[%s2] sm:$0xff]
      %v440 = vld [vmem:[%s2 + $0x8] sm:$0xff]
      %v441 = vld [vmem:[%s2 + $0x10] sm:$0xff]
      %v442 = vld [vmem:[%s2 + $0x18] sm:$0xff]
      %v443 = vld [vmem:[%s2 + $0x20] sm:$0xff]
      %v444 = vld [vmem:[%s2 + $0x28] sm:$0xff]
      %v445 = vld [vmem:[%s2 + $0x30] sm:$0xff]
      %v446 = vld [vmem:[%s2 + $0x38] sm:$0xff]
      %v447 = vld [vmem:[%s2 + $0x40] sm:$0xff]
      %v448 = vld [vmem:[%s2 + $0x48] sm:$0xff]
      %v449 = vld [vmem:[%s2 + $0x50] sm:$0xff]
      %v450 = vld [vmem:[%s2 + $0x58] sm:$0xff]
      %v451 = vld [vmem:[%s2 + $0x60] sm:$0xff]
      %v452 = vld [vmem:[%s2 + $0x68] sm:$0xff]
      %v453 = vld [vmem:[%s2 + $0x70] sm:$0xff]
      %v454 = vld [vmem:[%s2 + $0x78] sm:$0xff]
      %v455 = vld [vmem:[%s2 + $0x80] sm:$0xff]
      %v456 = vld [vmem:[%s2 + $0x88] sm:$0xff]
      %v457 = vld [vmem:[%s2 + $0x90] sm:$0xff]
      %v458 = vld [vmem:[%s2 + $0x98] sm:$0xff]
      %v459 = vld [vmem:[%s2 + $0xa0] sm:$0xff]
      %v460 = vld [vmem:[%s2 + $0xa8] sm:$0xff]
      %v461 = vld [vmem:[%s2 + $0xb0] sm:$0xff]
      %v462 = vld [vmem:[%s2 + $0xb8] sm:$0xff]
      %v463 = vld [vmem:[%s2 + $0xc0] sm:$0xff]
      %v464 = vld [vmem:[%s2 + $0xc8] sm:$0xff]
      %v465 = vld [vmem:[%s2 + $0xd0] sm:$0xff]
      %v466 = vld [vmem:[%s2 + $0xd8] sm:$0xff]
      %v467 = vld [vmem:[%s2 + $0xe0] sm:$0xff]
      %v468 = vld [vmem:[%s2 + $0xe8] sm:$0xff]
      %v469 = vld [vmem:[%s2 + $0xf0] sm:$0xff]
      %v470 = vld [vmem:[%s2 + $0xf8] sm:$0xff]
      %v471 = vld [vmem:[%s2 + $0x100] sm:$0xff]
      %v472 = vld [vmem:[%s2 + $0x108] sm:$0xff]
      %v473 = vld [vmem:[%s2 + $0x110] sm:$0xff]
      %v474 = vld [vmem:[%s2 + $0x118] sm:$0xff]
      %v475 = vld [vmem:[%s2 + $0x120] sm:$0xff]
      %v476 = vld [vmem:[%s2 + $0x128] sm:$0xff]
      %v477 = vld [vmem:[%s2 + $0x130] sm:$0xff]
      %v478 = vld [vmem:[%s2 + $0x138] sm:$0xff]
      %v479 = vld [vmem:[%s2 + $0x140] sm:$0xff]
      %v480 = vld [vmem:[%s2 + $0x148] sm:$0xff]
      %v481 = vld [vmem:[%s2 + $0x150] sm:$0xff]
      %v482 = vld [vmem:[%s2 + $0x158] sm:$0xff]
      %v483 = vld [vmem:[%s2 + $0x160] sm:$0xff]
      %v484 = vld [vmem:[%s2 + $0x168] sm:$0xff]
      %v485 = vld [vmem:[%s2 + $0x170] sm:$0xff]
      %v486 = vld [vmem:[%s2 + $0x178] sm:$0xff]
      %v487 = vld [vmem:[%s2 + $0x180] sm:$0xff]
      %v488 = vld [vmem:[%s2 + $0x188] sm:$0xff]
      %v489 = vld [vmem:[%s2 + $0x190] sm:$0xff]
      %v490 = vld [vmem:[%s2 + $0x198] sm:$0xff]
      %v491 = vld [vmem:[%s2 + $0x1a0] sm:$0xff]
      %v492 = vld [vmem:[%s2 + $0x1a8] sm:$0xff]
      %v493 = vld [vmem:[%s2 + $0x1b0] sm:$0xff]
      %v494 = vld [vmem:[%s2 + $0x1b8] sm:$0xff]
      %v495 = vld [vmem:[%s2 + $0x1c0] sm:$0xff]
      %v496 = vld [vmem:[%s2 + $0x1c8] sm:$0xff]
      %v497 = vld [vmem:[%s2 + $0x1d0] sm:$0xff]
      %v498 = vld [vmem:[%s2 + $0x1d8] sm:$0xff]
      %v499 = vld [vmem:[%s2 + $0x1e0] sm:$0xff]
      %v500 = vld [vmem:[%s2 + $0x1e8] sm:$0xff]
      %v501 = vld [vmem:[%s2 + $0x1f0] sm:$0xff]
      %v502 = vld [vmem:[%s2 + $0x1f8] sm:$0xff]
      %v503 = vmul.f32 %v439, %v320
      %v504 = vmul.f32 %v440, %v321
      %v505 = vmul.f32 %v441, %v322
      %v506 = vmul.f32 %v442, %v323
      %v507 = vmul.f32 %v443, %v324
      %v508 = vmul.f32 %v444, %v325
      %v509 = vmul.f32 %v445, %v326
      %v510 = vmul.f32 %v446, %v327
      %v511 = vmul.f32 %v447, %v328
      %v512 = vmul.f32 %v448, %v329
      %v513 = vmul.f32 %v449, %v330
      %v514 = vmul.f32 %v450, %v331
      %v515 = vmul.f32 %v451, %v332
      %v516 = vmul.f32 %v452, %v333
      %v517 = vmul.f32 %v453, %v334
      %v518 = vmul.f32 %v454, %v335
      %v519 = vmul.f32 %v455, %v336
      %v520 = vmul.f32 %v456, %v337
      %v521 = vmul.f32 %v457, %v338
      %v522 = vmul.f32 %v458, %v339
      %v523 = vmul.f32 %v459, %v340
      %v524 = vmul.f32 %v460, %v341
      %v525 = vmul.f32 %v461, %v342
      %v526 = vmul.f32 %v462, %v343
      %v527 = vmul.f32 %v463, %v344
      %v528 = vmul.f32 %v464, %v345
      %v529 = vmul.f32 %v465, %v346
      %v530 = vmul.f32 %v466, %v347
      %v531 = vmul.f32 %v467, %v348
      %v532 = vmul.f32 %v468, %v349
      %v533 = vmul.f32 %v469, %v350
      %v534 = vmul.f32 %v470, %v351
      %v535 = vmul.f32 %v471, %v352
      %v536 = vmul.f32 %v472, %v353
      %v537 = vmul.f32 %v473, %v354
      %v538 = vmul.f32 %v474, %v355
      %v539 = vmul.f32 %v475, %v356
      %v540 = vmul.f32 %v476, %v357
      %v541 = vmul.f32 %v477, %v358
      %v542 = vmul.f32 %v478, %v359
      %v543 = vmul.f32 %v479, %v360
      %v544 = vmul.f32 %v480, %v361
      %v545 = vmul.f32 %v481, %v362
      %v546 = vmul.f32 %v482, %v363
      %v547 = vmul.f32 %v483, %v364
      %v548 = vmul.f32 %v484, %v365
      %v549 = vmul.f32 %v485, %v366
      %v550 = vmul.f32 %v486, %v367
      %v551 = vmul.f32 %v487, %v368
      %v552 = vmul.f32 %v488, %v369
      %v553 = vmul.f32 %v489, %v370
      %v554 = vmul.f32 %v490, %v371
      %v555 = vmul.f32 %v491, %v372
      %v556 = vmul.f32 %v492, %v373
      %v557 = vmul.f32 %v493, %v374
      %v558 = vmul.f32 %v494, %v375
      %v559 = vmul.f32 %v495, %v376
      %v560 = vmul.f32 %v496, %v377
      %v561 = vmul.f32 %v497, %v378
      %v562 = vmul.f32 %v498, %v379
      %v563 = vmul.f32 %v499, %v380
      %v564 = vmul.f32 %v500, %v381
      %v565 = vmul.f32 %v501, %v382
      %v566 = vmul.f32 %v502, %v383
      %v567 = vpack.c.bf16 %v505, %v503
      %v568 = vpack.c.bf16 %v506, %v504
      %v569 = vpack.c.bf16 %v509, %v507
      %v570 = vpack.c.bf16 %v510, %v508
      %v571 = vpack.c.bf16 %v513, %v511
      %v572 = vpack.c.bf16 %v514, %v512
      %v573 = vpack.c.bf16 %v517, %v515
      %v574 = vpack.c.bf16 %v518, %v516
      %v575 = vpack.c.bf16 %v521, %v519
      %v576 = vpack.c.bf16 %v522, %v520
      %v577 = vpack.c.bf16 %v525, %v523
      %v578 = vpack.c.bf16 %v526, %v524
      %v579 = vpack.c.bf16 %v529, %v527
      %v580 = vpack.c.bf16 %v530, %v528
      %v581 = vpack.c.bf16 %v533, %v531
      %v582 = vpack.c.bf16 %v534, %v532
      %v583 = vpack.c.bf16 %v537, %v535
      %v584 = vpack.c.bf16 %v538, %v536
      %v585 = vpack.c.bf16 %v541, %v539
      %v586 = vpack.c.bf16 %v542, %v540
      %v587 = vpack.c.bf16 %v545, %v543
      %v588 = vpack.c.bf16 %v546, %v544
      %v589 = vpack.c.bf16 %v549, %v547
      %v590 = vpack.c.bf16 %v550, %v548
      %v591 = vpack.c.bf16 %v553, %v551
      %v592 = vpack.c.bf16 %v554, %v552
      %v593 = vpack.c.bf16 %v557, %v555
      %v594 = vpack.c.bf16 %v558, %v556
      %v595 = vpack.c.bf16 %v561, %v559
      %v596 = vpack.c.bf16 %v562, %v560
      %v597 = vpack.c.bf16 %v565, %v563
      %v598 = vpack.c.bf16 %v566, %v564
      %v601 = vunpack.c.l.s4 1966171168
      %v602 = vunpack.c.0.s8 %v601
      %v603 = vlaneseq
      %v604 = vshrl.u32 %v603, 7
      %v605 = vsub.s32 %v602, %v604
      %v606 = vrot.slane %v406, %v605
      %v607 = vcombine.high %v606, %v606
      %v609 = vunpack.c.l.s4 1966171168
      %v610 = vunpack.c.0.s8 %v609
      %v611 = vlaneseq
      %v612 = vshrl.u32 %v611, 7
      %v613 = vsub.s32 %v610, %v612
      %v614 = vrot.slane %v606, %v613
      %v616 = vunpack.c.l.s4 1966171168
      %v617 = vunpack.c.0.s8 %v616
      %v618 = vlaneseq
      %v619 = vshrl.u32 %v618, 7
      %v620 = vsub.s32 %v617, %v619
      %v621 = vrot.slane %v607, %v620
      %624 = vmatprep.subr.bf16.mxu0 %v582
      %625 = vmatpush1.bf16.msra.mxu0 %v581
      %626 = vmatprep.subr.bf16.mxu0 %v580
      %627 = vmatpush1.bf16.msra.mxu0 %v579
      %628 = vmatprep.subr.bf16.mxu0 %v578
      %629 = vmatpush1.bf16.msra.mxu0 %v577
      %630 = vmatprep.subr.bf16.mxu0 %v576
      %631 = vmatpush1.bf16.msra.mxu0 %v575
      %632 = vmatprep.subr.bf16.mxu0 %v574
      %633 = vmatpush1.bf16.msra.mxu0 %v573
      %634 = vmatprep.subr.bf16.mxu0 %v572
      %635 = vmatpush1.bf16.msra.mxu0 %v571
      %636 = vmatprep.subr.bf16.mxu0 %v570
      %637 = vmatpush1.bf16.msra.mxu0 %v569
      %638 = vmatprep.subr.bf16.mxu0 %v568
      %639 = vmatpush1.bf16.msra.mxu0 %v567
      %640 = vmatprep.subr.bf16.mxu0 %v598
      %641 = vmatpush2.bf16.msra.mxu0 %v597
      %642 = vmatprep.subr.bf16.mxu0 %v596
      %643 = vmatpush2.bf16.msra.mxu0 %v595
      %644 = vmatprep.subr.bf16.mxu0 %v594
      %645 = vmatpush2.bf16.msra.mxu0 %v593
      %646 = vmatprep.subr.bf16.mxu0 %v592
      %647 = vmatpush2.bf16.msra.mxu0 %v591
      %648 = vmatprep.subr.bf16.mxu0 %v590
      %649 = vmatpush2.bf16.msra.mxu0 %v589
      %650 = vmatprep.subr.bf16.mxu0 %v588
      %651 = vmatpush2.bf16.msra.mxu0 %v587
      %652 = vmatprep.subr.bf16.mxu0 %v586
      %653 = vmatpush2.bf16.msra.mxu0 %v585
      %654 = vmatprep.subr.bf16.mxu0 %v584
      %655 = vmatpush2.bf16.msra.mxu0 %v583
      %656 = vmatprep.mubr.bf16.mxu0 %v621
      %657 = vmatmul.mubr.bf16.gmra.mxu0 %v614
      %v658 = vpop.f32.mrf.mxu0
      %v659 = vadd.f32 0.0, %v658
      %v660 = vpop.f32.mrf.mxu0
      %v661 = vadd.f32 0.0, %v660
      %v662 = vpop.f32.mrf.mxu0
      %v663 = vpop.f32.mrf.mxu0
      %664 = vdwg.mxu0
      %v665 = vmul.f32 %v659, %v659
      %v666 = vmul.f32 %v661, %v661
      %v667 = vpack.c.bf16 %v665, %v665
      %v668 = vpack.c.bf16 %v666, %v666
      %v689 = vunpack.c.l.b16 %v386
      %v690 = vunpack.c.l.b16 %v387
      %v691 = vunpack.c.l.b16 %v388
      %v692 = vunpack.c.l.b16 %v389
      %v693 = vunpack.c.l.b16 %v390
      %v694 = vunpack.c.l.b16 %v391
      %v695 = vunpack.c.l.b16 %v392
      %v696 = vunpack.c.l.b16 %v393
      %v697 = vunpack.c.l.b16 %v394
      %v698 = vunpack.c.l.b16 %v395
      %v699 = vunpack.c.l.b16 %v396
      %v700 = vunpack.c.l.b16 %v397
      %v701 = vunpack.c.l.b16 %v398
      %v702 = vunpack.c.l.b16 %v399
      %v703 = vunpack.c.l.b16 %v400
      %v704 = vunpack.c.l.b16 %v401
      %v705 = vunpack.c.l.b16 %v402
      %v706 = vunpack.c.l.b16 %v403
      %v707 = vunpack.c.l.b16 %v404
      %v708 = vunpack.c.l.b16 %v405
      %v709 = vpack.c.b16 %v690, %v689
      %v710 = vpack.c.b16 %v692, %v691
      %v711 = vpack.c.b16 %v694, %v693
      %v712 = vpack.c.b16 %v696, %v695
      %v713 = vpack.c.b16 %v698, %v697
      %v714 = vpack.c.b16 %v700, %v699
      %v715 = vpack.c.b16 %v702, %v701
      %v716 = vpack.c.b16 %v704, %v703
      %v717 = vpack.c.b16 %v706, %v705
      %v718 = vpack.c.b16 %v708, %v707
      %vm729 = vcmask 261120
      %v731 = vsel %vm729, %v668, 0
      %733 = vmatprep.subr.bf16.mxu0 0
      %734 = vmatpush1.bf16.msra.mxu0 %v716
      %735 = vmatprep.subr.bf16.mxu0 0
      %736 = vmatpush1.bf16.msra.mxu0 %v715
      %737 = vmatprep.subr.bf16.mxu0 0
      %738 = vmatpush1.bf16.msra.mxu0 %v714
      %739 = vmatprep.subr.bf16.mxu0 0
      %740 = vmatpush1.bf16.msra.mxu0 %v713
      %741 = vmatprep.subr.bf16.mxu0 0
      %742 = vmatpush1.bf16.msra.mxu0 %v712
      %743 = vmatprep.subr.bf16.mxu0 0
      %744 = vmatpush1.bf16.msra.mxu0 %v711
      %745 = vmatprep.subr.bf16.mxu0 0
      %746 = vmatpush1.bf16.msra.mxu0 %v710
      %747 = vmatprep.subr.bf16.mxu0 0
      %748 = vmatpush1.bf16.msra.mxu0 %v709
      %749 = vmatprep.subr.bf16.mxu0 0
      %750 = vmatpush2.bf16.msra.mxu0 0
      %751 = vmatprep.subr.bf16.mxu0 0
      %752 = vmatpush2.bf16.msra.mxu0 0
      %753 = vmatprep.subr.bf16.mxu0 0
      %754 = vmatpush2.bf16.msra.mxu0 0
      %755 = vmatprep.subr.bf16.mxu0 0
      %756 = vmatpush2.bf16.msra.mxu0 0
      %757 = vmatprep.subr.bf16.mxu0 0
      %758 = vmatpush2.bf16.msra.mxu0 0
      %759 = vmatprep.subr.bf16.mxu0 0
      %760 = vmatpush2.bf16.msra.mxu0 0
      %761 = vmatprep.subr.bf16.mxu0 0
      %762 = vmatpush2.bf16.msra.mxu0 %v718
      %763 = vmatprep.subr.bf16.mxu0 0
      %764 = vmatpush2.bf16.msra.mxu0 %v717
      %765 = vmatprep.mubr.bf16.mxu0 %v731
      %766 = vmatmul.mubr.bf16.gmra.mxu0 %v667
      %v767 = vpop.f32.mrf.mxu0
      %v768 = vadd.f32 0.0, %v767
      %v769 = vpop.f32.mrf.mxu0
      %v770 = vpop.f32.mrf.mxu0
      %v771 = vpop.f32.mrf.mxu0
      %772 = vdwg.mxu0
      %v773 = vrsqrt.pop %v768
      %v774 = vmul.f32 %v768, %v773
      %vm775 = vcmp.eq.f32.partialorder %v768, inf
      %v776 = vsel %vm775, %v768, %v774
      %vm777 = vcmp.eq.f32.partialorder %v768, 0.0
      %v778 = vand.u32 %v768, 2147483648
      %v779 = vsel %vm777, %v778, %v776
      %v780 = vadd.f32 %v768, 1.0
      %v781 = vrcp.pop %v780
      %v782 = vmul.f32 %v779, %v781
      %v783 = vpack.c.bf16 %v782, %v782
      %v786 = vunpack.c.l.b16 %v384
      %v787 = vunpack.c.h.b16 %v384
      %v788 = vunpack.c.l.b16 %v385
      %v789 = vunpack.c.h.b16 %v385
      %v790 = vpack.c.b16 %v788, %v786
      %v791 = vpack.c.b16 %v789, %v787
      %vm792 = vcmask 80896
      %v794 = vsel %vm792, %v783, 0
      %vm796 = vcmask 1044480
      %v798 = vsel %vm796, %v790, 0
      %v801 = vsel %vm796, %v791, 0
      %803 = vmatprep.subr.bf16.mxu0 0
      %804 = vmatpush1.bf16.msra.mxu0 0
      %805 = vmatprep.subr.bf16.mxu0 0
      %806 = vmatpush1.bf16.msra.mxu0 0
      %807 = vmatprep.subr.bf16.mxu0 0
      %808 = vmatpush1.bf16.msra.mxu0 0
      %809 = vmatprep.subr.bf16.mxu0 0
      %810 = vmatpush1.bf16.msra.mxu0 0
      %811 = vmatprep.subr.bf16.mxu0 0
      %812 = vmatpush1.bf16.msra.mxu0 0
      %813 = vmatprep.subr.bf16.mxu0 0
      %814 = vmatpush1.bf16.msra.mxu0 0
      %815 = vmatprep.subr.bf16.mxu0 0
      %816 = vmatpush1.bf16.msra.mxu0 0
      %817 = vmatprep.subr.bf16.mxu0 %v801
      %818 = vmatpush1.bf16.msra.mxu0 %v798
      %819 = vmatprep.subr.bf16.mxu0 0
      %820 = vmatpush2.bf16.msra.mxu0 0
      %821 = vmatprep.subr.bf16.mxu0 0
      %822 = vmatpush2.bf16.msra.mxu0 0
      %823 = vmatprep.subr.bf16.mxu0 0
      %824 = vmatpush2.bf16.msra.mxu0 0
      %825 = vmatprep.subr.bf16.mxu0 0
      %826 = vmatpush2.bf16.msra.mxu0 0
      %827 = vmatprep.subr.bf16.mxu0 0
      %828 = vmatpush2.bf16.msra.mxu0 0
      %829 = vmatprep.subr.bf16.mxu0 0
      %830 = vmatpush2.bf16.msra.mxu0 0
      %831 = vmatprep.subr.bf16.mxu0 0
      %832 = vmatpush2.bf16.msra.mxu0 0
      %833 = vmatprep.subr.bf16.mxu0 0
      %834 = vmatpush2.bf16.msra.mxu0 0
      %835 = vmatprep.mubr.bf16.mxu0 0
      %836 = vmatmul.mubr.bf16.gmra.mxu0 %v794
      %v837 = vpop.f32.mrf.mxu0
      %v838 = vadd.f32 0.0, %v837
      %v839 = vpop.f32.mrf.mxu0
      %v840 = vadd.f32 0.0, %v839
      %v841 = vpop.f32.mrf.mxu0
      %v842 = vpop.f32.mrf.mxu0
      %843 = vdwg.mxu0
      %v844 = vmul.f32 %v659, %v838
      %v845 = vmul.f32 %v661, %v840
      %v846 = vld [vmem:[%s1] sm:$0xff]
      %v847 = vld [vmem:[%s1 + $0x8] sm:$0xff]
      %v848 = vld [vmem:[%s1 + $0x10] sm:$0xff]
      %v849 = vld [vmem:[%s1 + $0x18] sm:$0xff]
      %v850 = vld [vmem:[%s1 + $0x20] sm:$0xff]
      %v851 = vld [vmem:[%s1 + $0x28] sm:$0xff]
      %v852 = vld [vmem:[%s1 + $0x30] sm:$0xff]
      %v853 = vld [vmem:[%s1 + $0x38] sm:$0xff]
      %v854 = vld [vmem:[%s1 + $0x40] sm:$0xff]
      %v855 = vld [vmem:[%s1 + $0x48] sm:$0xff]
      %v856 = vld [vmem:[%s1 + $0x50] sm:$0xff]
      %v857 = vld [vmem:[%s1 + $0x58] sm:$0xff]
      %v858 = vld [vmem:[%s1 + $0x60] sm:$0xff]
      %v859 = vld [vmem:[%s1 + $0x68] sm:$0xff]
      %v860 = vld [vmem:[%s1 + $0x70] sm:$0xff]
      %v861 = vld [vmem:[%s1 + $0x78] sm:$0xff]
      %v862 = vld [vmem:[%s1 + $0x80] sm:$0xff]
      %v863 = vld [vmem:[%s1 + $0x88] sm:$0xff]
      %v864 = vld [vmem:[%s1 + $0x90] sm:$0xff]
      %v865 = vld [vmem:[%s1 + $0x98] sm:$0xff]
      %v866 = vld [vmem:[%s1 + $0xa0] sm:$0xff]
      %v867 = vld [vmem:[%s1 + $0xa8] sm:$0xff]
      %v868 = vld [vmem:[%s1 + $0xb0] sm:$0xff]
      %v869 = vld [vmem:[%s1 + $0xb8] sm:$0xff]
      %v870 = vld [vmem:[%s1 + $0xc0] sm:$0xff]
      %v871 = vld [vmem:[%s1 + $0xc8] sm:$0xff]
      %v872 = vld [vmem:[%s1 + $0xd0] sm:$0xff]
      %v873 = vld [vmem:[%s1 + $0xd8] sm:$0xff]
      %v874 = vld [vmem:[%s1 + $0xe0] sm:$0xff]
      %v875 = vld [vmem:[%s1 + $0xe8] sm:$0xff]
      %v876 = vld [vmem:[%s1 + $0xf0] sm:$0xff]
      %v877 = vld [vmem:[%s1 + $0xf8] sm:$0xff]
      %v878 = vpack.c.bf16 %v844, %v844
      %v879 = vpack.c.bf16 %v845, %v845
      %v912 = vunpack.c.l.b16 %v407
      %v913 = vunpack.c.l.b16 %v408
      %v914 = vunpack.c.l.b16 %v409
      %v915 = vunpack.c.l.b16 %v410
      %v916 = vunpack.c.l.b16 %v411
      %v917 = vunpack.c.l.b16 %v412
      %v918 = vunpack.c.l.b16 %v413
      %v919 = vunpack.c.l.b16 %v414
      %v920 = vunpack.c.l.b16 %v415
      %v921 = vunpack.c.l.b16 %v416
      %v922 = vunpack.c.l.b16 %v417
      %v923 = vunpack.c.l.b16 %v418
      %v924 = vunpack.c.l.b16 %v419
      %v925 = vunpack.c.l.b16 %v420
      %v926 = vunpack.c.l.b16 %v421
      %v927 = vunpack.c.l.b16 %v422
      %v928 = vunpack.c.l.b16 %v423
      %v929 = vunpack.c.l.b16 %v424
      %v930 = vunpack.c.l.b16 %v425
      %v931 = vunpack.c.l.b16 %v426
      %v932 = vunpack.c.l.b16 %v427
      %v933 = vunpack.c.l.b16 %v428
      %v934 = vunpack.c.l.b16 %v429
      %v935 = vunpack.c.l.b16 %v430
      %v936 = vunpack.c.l.b16 %v431
      %v937 = vunpack.c.l.b16 %v432
      %v938 = vunpack.c.l.b16 %v433
      %v939 = vunpack.c.l.b16 %v434
      %v940 = vunpack.c.l.b16 %v435
      %v941 = vunpack.c.l.b16 %v436
      %v942 = vunpack.c.l.b16 %v437
      %v943 = vunpack.c.l.b16 %v438
      %v944 = vpack.c.b16 %v913, %v912
      %v945 = vpack.c.b16 %v915, %v914
      %v946 = vpack.c.b16 %v917, %v916
      %v947 = vpack.c.b16 %v919, %v918
      %v948 = vpack.c.b16 %v921, %v920
      %v949 = vpack.c.b16 %v923, %v922
      %v950 = vpack.c.b16 %v925, %v924
      %v951 = vpack.c.b16 %v927, %v926
      %v952 = vpack.c.b16 %v929, %v928
      %v953 = vpack.c.b16 %v931, %v930
      %v954 = vpack.c.b16 %v933, %v932
      %v955 = vpack.c.b16 %v935, %v934
      %v956 = vpack.c.b16 %v937, %v936
      %v957 = vpack.c.b16 %v939, %v938
      %v958 = vpack.c.b16 %v941, %v940
      %v959 = vpack.c.b16 %v943, %v942
      %vm960 = vcmask 15360
      %v962 = vsel %vm960, %v944, 0
      %v965 = vsel %vm960, %v945, 0
      %v968 = vsel %vm960, %v946, 0
      %v971 = vsel %vm960, %v947, 0
      %v974 = vsel %vm960, %v948, 0
      %v977 = vsel %vm960, %v949, 0
      %v980 = vsel %vm960, %v950, 0
      %v983 = vsel %vm960, %v951, 0
      %v986 = vsel %vm960, %v952, 0
      %v989 = vsel %vm960, %v953, 0
      %v992 = vsel %vm960, %v954, 0
      %v995 = vsel %vm960, %v955, 0
      %v998 = vsel %vm960, %v956, 0
      %v1001 = vsel %vm960, %v957, 0
      %v1004 = vsel %vm960, %v958, 0
      %v1007 = vsel %vm960, %v959, 0
      %vm1009 = vcmask 1040384
      %v1011 = vsel %vm1009, %v878, 0
      %v1014 = vsel %vm1009, %v879, 0
      %1016 = vmatprep.subr.bf16.mxu0 0
      %1017 = vmatpush1.bf16.msra.mxu0 0
      %1018 = vmatprep.subr.bf16.mxu0 0
      %1019 = vmatpush1.bf16.msra.mxu0 0
      %1020 = vmatprep.subr.bf16.mxu0 0
      %1021 = vmatpush1.bf16.msra.mxu0 0
      %1022 = vmatprep.subr.bf16.mxu0 0
      %1023 = vmatpush1.bf16.msra.mxu0 0
      %1024 = vmatprep.subr.bf16.mxu0 0
      %1025 = vmatpush1.bf16.msra.mxu0 0
      %1026 = vmatprep.subr.bf16.mxu0 0
      %1027 = vmatpush1.bf16.msra.mxu0 0
      %1028 = vmatprep.subr.bf16.mxu0 0
      %1029 = vmatpush1.bf16.msra.mxu0 0
      %1030 = vmatprep.subr.bf16.mxu0 %v1014
      %1031 = vmatpush1.bf16.msra.mxu0 %v1011
      %1032 = vmatprep.subr.bf16.mxu0 0
      %1033 = vmatpush2.bf16.msra.mxu0 0
      %1034 = vmatprep.subr.bf16.mxu0 0
      %1035 = vmatpush2.bf16.msra.mxu0 0
      %1036 = vmatprep.subr.bf16.mxu0 0
      %1037 = vmatpush2.bf16.msra.mxu0 0
      %1038 = vmatprep.subr.bf16.mxu0 0
      %1039 = vmatpush2.bf16.msra.mxu0 0
      %1040 = vmatprep.subr.bf16.mxu0 0
      %1041 = vmatpush2.bf16.msra.mxu0 0
      %1042 = vmatprep.subr.bf16.mxu0 0
      %1043 = vmatpush2.bf16.msra.mxu0 0
      %1044 = vmatprep.subr.bf16.mxu0 0
      %1045 = vmatpush2.bf16.msra.mxu0 0
      %1046 = vmatprep.subr.bf16.mxu0 0
      %1047 = vmatpush2.bf16.msra.mxu0 0
      %1048 = vmatprep.mubr.bf16.mxu0 0
      %1049 = vmatmul.mubr.bf16.gmra.mxu0 %v962
      %v1050 = vpop.f32.mrf.mxu0
      %v1051 = vadd.f32 0.0, %v1050
      %v1052 = vpop.f32.mrf.mxu0
      %v1053 = vadd.f32 0.0, %v1052
      %v1054 = vpop.f32.mrf.mxu0
      %v1055 = vadd.f32 0.0, %v1054
      %v1056 = vpop.f32.mrf.mxu0
      %v1057 = vadd.f32 0.0, %v1056
      %1058 = vmatprep.mubr.bf16.mxu0 0
      %1059 = vmatmul.mubr.bf16.gmra.mxu0 %v965
      %v1060 = vpop.f32.mrf.mxu0
      %v1061 = vadd.f32 0.0, %v1060
      %v1062 = vpop.f32.mrf.mxu0
      %v1063 = vadd.f32 0.0, %v1062
      %v1064 = vpop.f32.mrf.mxu0
      %v1065 = vadd.f32 0.0, %v1064
      %v1066 = vpop.f32.mrf.mxu0
      %v1067 = vadd.f32 0.0, %v1066
      %1068 = vmatprep.mubr.bf16.mxu0 0
      %1069 = vmatmul.mubr.bf16.gmra.mxu0 %v968
      %v1070 = vpop.f32.mrf.mxu0
      %v1071 = vadd.f32 0.0, %v1070
      %v1072 = vpop.f32.mrf.mxu0
      %v1073 = vadd.f32 0.0, %v1072
      %v1074 = vpop.f32.mrf.mxu0
      %v1075 = vadd.f32 0.0, %v1074
      %v1076 = vpop.f32.mrf.mxu0
      %v1077 = vadd.f32 0.0, %v1076
      %1078 = vmatprep.mubr.bf16.mxu0 0
      %1079 = vmatmul.mubr.bf16.gmra.mxu0 %v971
      %v1080 = vpop.f32.mrf.mxu0
      %v1081 = vadd.f32 0.0, %v1080
      %v1082 = vpop.f32.mrf.mxu0
      %v1083 = vadd.f32 0.0, %v1082
      %v1084 = vpop.f32.mrf.mxu0
      %v1085 = vadd.f32 0.0, %v1084
      %v1086 = vpop.f32.mrf.mxu0
      %v1087 = vadd.f32 0.0, %v1086
      %1088 = vmatprep.mubr.bf16.mxu0 0
      %1089 = vmatmul.mubr.bf16.gmra.mxu0 %v974
      %v1090 = vpop.f32.mrf.mxu0
      %v1091 = vadd.f32 0.0, %v1090
      %v1092 = vpop.f32.mrf.mxu0
      %v1093 = vadd.f32 0.0, %v1092
      %v1094 = vpop.f32.mrf.mxu0
      %v1095 = vadd.f32 0.0, %v1094
      %v1096 = vpop.f32.mrf.mxu0
      %v1097 = vadd.f32 0.0, %v1096
      %1098 = vmatprep.mubr.bf16.mxu0 0
      %1099 = vmatmul.mubr.bf16.gmra.mxu0 %v977
      %v1100 = vpop.f32.mrf.mxu0
      %v1101 = vadd.f32 0.0, %v1100
      %v1102 = vpop.f32.mrf.mxu0
      %v1103 = vadd.f32 0.0, %v1102
      %v1104 = vpop.f32.mrf.mxu0
      %v1105 = vadd.f32 0.0, %v1104
      %v1106 = vpop.f32.mrf.mxu0
      %v1107 = vadd.f32 0.0, %v1106
      %1108 = vmatprep.mubr.bf16.mxu0 0
      %1109 = vmatmul.mubr.bf16.gmra.mxu0 %v980
      %v1110 = vpop.f32.mrf.mxu0
      %v1111 = vadd.f32 0.0, %v1110
      %v1112 = vpop.f32.mrf.mxu0
      %v1113 = vadd.f32 0.0, %v1112
      %v1114 = vpop.f32.mrf.mxu0
      %v1115 = vadd.f32 0.0, %v1114
      %v1116 = vpop.f32.mrf.mxu0
      %v1117 = vadd.f32 0.0, %v1116
      %1118 = vmatprep.mubr.bf16.mxu0 0
      %1119 = vmatmul.mubr.bf16.gmra.mxu0 %v983
      %v1120 = vpop.f32.mrf.mxu0
      %v1121 = vadd.f32 0.0, %v1120
      %v1122 = vpop.f32.mrf.mxu0
      %v1123 = vadd.f32 0.0, %v1122
      %v1124 = vpop.f32.mrf.mxu0
      %v1125 = vadd.f32 0.0, %v1124
      %v1126 = vpop.f32.mrf.mxu0
      %v1127 = vadd.f32 0.0, %v1126
      %1128 = vmatprep.mubr.bf16.mxu0 0
      %1129 = vmatmul.mubr.bf16.gmra.mxu0 %v986
      %v1130 = vpop.f32.mrf.mxu0
      %v1131 = vadd.f32 0.0, %v1130
      %v1132 = vpop.f32.mrf.mxu0
      %v1133 = vadd.f32 0.0, %v1132
      %v1134 = vpop.f32.mrf.mxu0
      %v1135 = vadd.f32 0.0, %v1134
      %v1136 = vpop.f32.mrf.mxu0
      %v1137 = vadd.f32 0.0, %v1136
      %1138 = vmatprep.mubr.bf16.mxu0 0
      %1139 = vmatmul.mubr.bf16.gmra.mxu0 %v989
      %v1140 = vpop.f32.mrf.mxu0
      %v1141 = vadd.f32 0.0, %v1140
      %v1142 = vpop.f32.mrf.mxu0
      %v1143 = vadd.f32 0.0, %v1142
      %v1144 = vpop.f32.mrf.mxu0
      %v1145 = vadd.f32 0.0, %v1144
      %v1146 = vpop.f32.mrf.mxu0
      %v1147 = vadd.f32 0.0, %v1146
      %1148 = vmatprep.mubr.bf16.mxu0 0
      %1149 = vmatmul.mubr.bf16.gmra.mxu0 %v992
      %v1150 = vpop.f32.mrf.mxu0
      %v1151 = vadd.f32 0.0, %v1150
      %v1152 = vpop.f32.mrf.mxu0
      %v1153 = vadd.f32 0.0, %v1152
      %v1154 = vpop.f32.mrf.mxu0
      %v1155 = vadd.f32 0.0, %v1154
      %v1156 = vpop.f32.mrf.mxu0
      %v1157 = vadd.f32 0.0, %v1156
      %1158 = vmatprep.mubr.bf16.mxu0 0
      %1159 = vmatmul.mubr.bf16.gmra.mxu0 %v995
      %v1160 = vpop.f32.mrf.mxu0
      %v1161 = vadd.f32 0.0, %v1160
      %v1162 = vpop.f32.mrf.mxu0
      %v1163 = vadd.f32 0.0, %v1162
      %v1164 = vpop.f32.mrf.mxu0
      %v1165 = vadd.f32 0.0, %v1164
      %v1166 = vpop.f32.mrf.mxu0
      %v1167 = vadd.f32 0.0, %v1166
      %1168 = vmatprep.mubr.bf16.mxu0 0
      %1169 = vmatmul.mubr.bf16.gmra.mxu0 %v998
      %v1170 = vpop.f32.mrf.mxu0
      %v1171 = vadd.f32 0.0, %v1170
      %v1172 = vpop.f32.mrf.mxu0
      %v1173 = vadd.f32 0.0, %v1172
      %v1174 = vpop.f32.mrf.mxu0
      %v1175 = vadd.f32 0.0, %v1174
      %v1176 = vpop.f32.mrf.mxu0
      %v1177 = vadd.f32 0.0, %v1176
      %1178 = vmatprep.mubr.bf16.mxu0 0
      %1179 = vmatmul.mubr.bf16.gmra.mxu0 %v1001
      %v1180 = vpop.f32.mrf.mxu0
      %v1181 = vadd.f32 0.0, %v1180
      %v1182 = vpop.f32.mrf.mxu0
      %v1183 = vadd.f32 0.0, %v1182
      %v1184 = vpop.f32.mrf.mxu0
      %v1185 = vadd.f32 0.0, %v1184
      %v1186 = vpop.f32.mrf.mxu0
      %v1187 = vadd.f32 0.0, %v1186
      %1188 = vmatprep.mubr.bf16.mxu0 0
      %1189 = vmatmul.mubr.bf16.gmra.mxu0 %v1004
      %v1190 = vpop.f32.mrf.mxu0
      %v1191 = vadd.f32 0.0, %v1190
      %v1192 = vpop.f32.mrf.mxu0
      %v1193 = vadd.f32 0.0, %v1192
      %v1194 = vpop.f32.mrf.mxu0
      %v1195 = vadd.f32 0.0, %v1194
      %v1196 = vpop.f32.mrf.mxu0
      %v1197 = vadd.f32 0.0, %v1196
      %1198 = vmatprep.mubr.bf16.mxu0 0
      %1199 = vmatmul.mubr.bf16.gmra.mxu0 %v1007
      %v1200 = vpop.f32.mrf.mxu0
      %v1201 = vadd.f32 0.0, %v1200
      %v1202 = vpop.f32.mrf.mxu0
      %v1203 = vadd.f32 0.0, %v1202
      %v1204 = vpop.f32.mrf.mxu0
      %v1205 = vadd.f32 0.0, %v1204
      %v1206 = vpop.f32.mrf.mxu0
      %v1207 = vadd.f32 0.0, %v1206
      %1208 = vdwg.mxu0
      %v1209 = vmul.f32 %v320, %v1051
      %v1210 = vmul.f32 %v321, %v1053
      %v1211 = vmul.f32 %v322, %v1055
      %v1212 = vmul.f32 %v323, %v1057
      %v1213 = vmul.f32 %v324, %v1061
      %v1214 = vmul.f32 %v325, %v1063
      %v1215 = vmul.f32 %v326, %v1065
      %v1216 = vmul.f32 %v327, %v1067
      %v1217 = vmul.f32 %v328, %v1071
      %v1218 = vmul.f32 %v329, %v1073
      %v1219 = vmul.f32 %v330, %v1075
      %v1220 = vmul.f32 %v331, %v1077
      %v1221 = vmul.f32 %v332, %v1081
      %v1222 = vmul.f32 %v333, %v1083
      %v1223 = vmul.f32 %v334, %v1085
      %v1224 = vmul.f32 %v335, %v1087
      %v1225 = vmul.f32 %v336, %v1091
      %v1226 = vmul.f32 %v337, %v1093
      %v1227 = vmul.f32 %v338, %v1095
      %v1228 = vmul.f32 %v339, %v1097
      %v1229 = vmul.f32 %v340, %v1101
      %v1230 = vmul.f32 %v341, %v1103
      %v1231 = vmul.f32 %v342, %v1105
      %v1232 = vmul.f32 %v343, %v1107
      %v1233 = vmul.f32 %v344, %v1111
      %v1234 = vmul.f32 %v345, %v1113
      %v1235 = vmul.f32 %v346, %v1115
      %v1236 = vmul.f32 %v347, %v1117
      %v1237 = vmul.f32 %v348, %v1121
      %v1238 = vmul.f32 %v349, %v1123
      %v1239 = vmul.f32 %v350, %v1125
      %v1240 = vmul.f32 %v351, %v1127
      %v1241 = vmul.f32 %v352, %v1131
      %v1242 = vmul.f32 %v353, %v1133
      %v1243 = vmul.f32 %v354, %v1135
      %v1244 = vmul.f32 %v355, %v1137
      %v1245 = vmul.f32 %v356, %v1141
      %v1246 = vmul.f32 %v357, %v1143
      %v1247 = vmul.f32 %v358, %v1145
      %v1248 = vmul.f32 %v359, %v1147
      %v1249 = vmul.f32 %v360, %v1151
      %v1250 = vmul.f32 %v361, %v1153
      %v1251 = vmul.f32 %v362, %v1155
      %v1252 = vmul.f32 %v363, %v1157
      %v1253 = vmul.f32 %v364, %v1161
      %v1254 = vmul.f32 %v365, %v1163
      %v1255 = vmul.f32 %v366, %v1165
      %v1256 = vmul.f32 %v367, %v1167
      %v1257 = vmul.f32 %v368, %v1171
      %v1258 = vmul.f32 %v369, %v1173
      %v1259 = vmul.f32 %v370, %v1175
      %v1260 = vmul.f32 %v371, %v1177
      %v1261 = vmul.f32 %v372, %v1181
      %v1262 = vmul.f32 %v373, %v1183
      %v1263 = vmul.f32 %v374, %v1185
      %v1264 = vmul.f32 %v375, %v1187
      %v1265 = vmul.f32 %v376, %v1191
      %v1266 = vmul.f32 %v377, %v1193
      %v1267 = vmul.f32 %v378, %v1195
      %v1268 = vmul.f32 %v379, %v1197
      %v1269 = vmul.f32 %v380, %v1201
      %v1270 = vmul.f32 %v381, %v1203
      %v1271 = vmul.f32 %v382, %v1205
      %v1272 = vmul.f32 %v383, %v1207
      %v1273 = vpack.c.bf16 %v1211, %v1209
      %v1274 = vpack.c.bf16 %v1212, %v1210
      %v1275 = vpack.c.bf16 %v1215, %v1213
      %v1276 = vpack.c.bf16 %v1216, %v1214
      %v1277 = vpack.c.bf16 %v1219, %v1217
      %v1278 = vpack.c.bf16 %v1220, %v1218
      %v1279 = vpack.c.bf16 %v1223, %v1221
      %v1280 = vpack.c.bf16 %v1224, %v1222
      %v1281 = vpack.c.bf16 %v1227, %v1225
      %v1282 = vpack.c.bf16 %v1228, %v1226
      %v1283 = vpack.c.bf16 %v1231, %v1229
      %v1284 = vpack.c.bf16 %v1232, %v1230
      %v1285 = vpack.c.bf16 %v1235, %v1233
      %v1286 = vpack.c.bf16 %v1236, %v1234
      %v1287 = vpack.c.bf16 %v1239, %v1237
      %v1288 = vpack.c.bf16 %v1240, %v1238
      %v1289 = vpack.c.bf16 %v1243, %v1241
      %v1290 = vpack.c.bf16 %v1244, %v1242
      %v1291 = vpack.c.bf16 %v1247, %v1245
      %v1292 = vpack.c.bf16 %v1248, %v1246
      %v1293 = vpack.c.bf16 %v1251, %v1249
      %v1294 = vpack.c.bf16 %v1252, %v1250
      %v1295 = vpack.c.bf16 %v1255, %v1253
      %v1296 = vpack.c.bf16 %v1256, %v1254
      %v1297 = vpack.c.bf16 %v1259, %v1257
      %v1298 = vpack.c.bf16 %v1260, %v1258
      %v1299 = vpack.c.bf16 %v1263, %v1261
      %v1300 = vpack.c.bf16 %v1264, %v1262
      %v1301 = vpack.c.bf16 %v1267, %v1265
      %v1302 = vpack.c.bf16 %v1268, %v1266
      %v1303 = vpack.c.bf16 %v1271, %v1269
      %v1304 = vpack.c.bf16 %v1272, %v1270
      %v1306 = vsel %vm729, %v1274, 0
      %v1309 = vsel %vm729, %v1276, 0
      %v1312 = vsel %vm729, %v1278, 0
      %v1315 = vsel %vm729, %v1280, 0
      %v1318 = vsel %vm729, %v1282, 0
      %v1321 = vsel %vm729, %v1284, 0
      %v1324 = vsel %vm729, %v1286, 0
      %v1327 = vsel %vm729, %v1288, 0
      %v1330 = vsel %vm729, %v1290, 0
      %v1333 = vsel %vm729, %v1292, 0
      %v1336 = vsel %vm729, %v1294, 0
      %v1339 = vsel %vm729, %v1296, 0
      %v1342 = vsel %vm729, %v1298, 0
      %v1345 = vsel %vm729, %v1300, 0
      %v1348 = vsel %vm729, %v1302, 0
      %v1351 = vsel %vm729, %v1304, 0
      %1353 = vmatprep.subr.bf16.mxu0 0
      %1354 = vmatpush1.bf16.msra.mxu0 %v716
      %1355 = vmatprep.subr.bf16.mxu0 0
      %1356 = vmatpush1.bf16.msra.mxu0 %v715
      %1357 = vmatprep.subr.bf16.mxu0 0
      %1358 = vmatpush1.bf16.msra.mxu0 %v714
      %1359 = vmatprep.subr.bf16.mxu0 0
      %1360 = vmatpush1.bf16.msra.mxu0 %v713
      %1361 = vmatprep.subr.bf16.mxu0 0
      %1362 = vmatpush1.bf16.msra.mxu0 %v712
      %1363 = vmatprep.subr.bf16.mxu0 0
      %1364 = vmatpush1.bf16.msra.mxu0 %v711
      %1365 = vmatprep.subr.bf16.mxu0 0
      %1366 = vmatpush1.bf16.msra.mxu0 %v710
      %1367 = vmatprep.subr.bf16.mxu0 0
      %1368 = vmatpush1.bf16.msra.mxu0 %v709
      %1369 = vmatprep.subr.bf16.mxu0 0
      %1370 = vmatpush2.bf16.msra.mxu0 0
      %1371 = vmatprep.subr.bf16.mxu0 0
      %1372 = vmatpush2.bf16.msra.mxu0 0
      %1373 = vmatprep.subr.bf16.mxu0 0
      %1374 = vmatpush2.bf16.msra.mxu0 0
      %1375 = vmatprep.subr.bf16.mxu0 0
      %1376 = vmatpush2.bf16.msra.mxu0 0
      %1377 = vmatprep.subr.bf16.mxu0 0
      %1378 = vmatpush2.bf16.msra.mxu0 0
      %1379 = vmatprep.subr.bf16.mxu0 0
      %1380 = vmatpush2.bf16.msra.mxu0 0
      %1381 = vmatprep.subr.bf16.mxu0 0
      %1382 = vmatpush2.bf16.msra.mxu0 %v718
      %1383 = vmatprep.subr.bf16.mxu0 0
      %1384 = vmatpush2.bf16.msra.mxu0 %v717
      %1385 = vmatprep.mubr.bf16.mxu0 %v1306
      %1386 = vmatmul.mubr.bf16.gmra.mxu0 %v1273
      %v1387 = vpop.f32.mrf.mxu0
      %v1388 = vadd.f32 0.0, %v1387
      %v1389 = vpop.f32.mrf.mxu0
      %v1390 = vpop.f32.mrf.mxu0
      %v1391 = vadd.f32 0.0, %v1390
      %v1392 = vpop.f32.mrf.mxu0
      %1393 = vmatprep.mubr.bf16.mxu0 %v1309
      %1394 = vmatmul.mubr.bf16.gmra.mxu0 %v1275
      %v1395 = vpop.f32.mrf.mxu0
      %v1396 = vadd.f32 0.0, %v1395
      %v1397 = vpop.f32.mrf.mxu0
      %v1398 = vpop.f32.mrf.mxu0
      %v1399 = vadd.f32 0.0, %v1398
      %v1400 = vpop.f32.mrf.mxu0
      %1401 = vmatprep.mubr.bf16.mxu0 %v1312
      %1402 = vmatmul.mubr.bf16.gmra.mxu0 %v1277
      %v1403 = vpop.f32.mrf.mxu0
      %v1404 = vadd.f32 0.0, %v1403
      %v1405 = vpop.f32.mrf.mxu0
      %v1406 = vpop.f32.mrf.mxu0
      %v1407 = vadd.f32 0.0, %v1406
      %v1408 = vpop.f32.mrf.mxu0
      %1409 = vmatprep.mubr.bf16.mxu0 %v1315
      %1410 = vmatmul.mubr.bf16.gmra.mxu0 %v1279
      %v1411 = vpop.f32.mrf.mxu0
      %v1412 = vadd.f32 0.0, %v1411
      %v1413 = vpop.f32.mrf.mxu0
      %v1414 = vpop.f32.mrf.mxu0
      %v1415 = vadd.f32 0.0, %v1414
      %v1416 = vpop.f32.mrf.mxu0
      %1417 = vmatprep.mubr.bf16.mxu0 %v1318
      %1418 = vmatmul.mubr.bf16.gmra.mxu0 %v1281
      %v1419 = vpop.f32.mrf.mxu0
      %v1420 = vadd.f32 0.0, %v1419
      %v1421 = vpop.f32.mrf.mxu0
      %v1422 = vpop.f32.mrf.mxu0
      %v1423 = vadd.f32 0.0, %v1422
      %v1424 = vpop.f32.mrf.mxu0
      %1425 = vmatprep.mubr.bf16.mxu0 %v1321
      %1426 = vmatmul.mubr.bf16.gmra.mxu0 %v1283
      %v1427 = vpop.f32.mrf.mxu0
      %v1428 = vadd.f32 0.0, %v1427
      %v1429 = vpop.f32.mrf.mxu0
      %v1430 = vpop.f32.mrf.mxu0
      %v1431 = vadd.f32 0.0, %v1430
      %v1432 = vpop.f32.mrf.mxu0
      %1433 = vmatprep.mubr.bf16.mxu0 %v1324
      %1434 = vmatmul.mubr.bf16.gmra.mxu0 %v1285
      %v1435 = vpop.f32.mrf.mxu0
      %v1436 = vadd.f32 0.0, %v1435
      %v1437 = vpop.f32.mrf.mxu0
      %v1438 = vpop.f32.mrf.mxu0
      %v1439 = vadd.f32 0.0, %v1438
      %v1440 = vpop.f32.mrf.mxu0
      %1441 = vmatprep.mubr.bf16.mxu0 %v1327
      %1442 = vmatmul.mubr.bf16.gmra.mxu0 %v1287
      %v1443 = vpop.f32.mrf.mxu0
      %v1444 = vadd.f32 0.0, %v1443
      %v1445 = vpop.f32.mrf.mxu0
      %v1446 = vpop.f32.mrf.mxu0
      %v1447 = vadd.f32 0.0, %v1446
      %v1448 = vpop.f32.mrf.mxu0
      %1449 = vmatprep.mubr.bf16.mxu0 %v1330
      %1450 = vmatmul.mubr.bf16.gmra.mxu0 %v1289
      %v1451 = vpop.f32.mrf.mxu0
      %v1452 = vadd.f32 0.0, %v1451
      %v1453 = vpop.f32.mrf.mxu0
      %v1454 = vpop.f32.mrf.mxu0
      %v1455 = vadd.f32 0.0, %v1454
      %v1456 = vpop.f32.mrf.mxu0
      %1457 = vmatprep.mubr.bf16.mxu0 %v1333
      %1458 = vmatmul.mubr.bf16.gmra.mxu0 %v1291
      %v1459 = vpop.f32.mrf.mxu0
      %v1460 = vadd.f32 0.0, %v1459
      %v1461 = vpop.f32.mrf.mxu0
      %v1462 = vpop.f32.mrf.mxu0
      %v1463 = vadd.f32 0.0, %v1462
      %v1464 = vpop.f32.mrf.mxu0
      %1465 = vmatprep.mubr.bf16.mxu0 %v1336
      %1466 = vmatmul.mubr.bf16.gmra.mxu0 %v1293
      %v1467 = vpop.f32.mrf.mxu0
      %v1468 = vadd.f32 0.0, %v1467
      %v1469 = vpop.f32.mrf.mxu0
      %v1470 = vpop.f32.mrf.mxu0
      %v1471 = vadd.f32 0.0, %v1470
      %v1472 = vpop.f32.mrf.mxu0
      %1473 = vmatprep.mubr.bf16.mxu0 %v1339
      %1474 = vmatmul.mubr.bf16.gmra.mxu0 %v1295
      %v1475 = vpop.f32.mrf.mxu0
      %v1476 = vadd.f32 0.0, %v1475
      %v1477 = vpop.f32.mrf.mxu0
      %v1478 = vpop.f32.mrf.mxu0
      %v1479 = vadd.f32 0.0, %v1478
      %v1480 = vpop.f32.mrf.mxu0
      %1481 = vmatprep.mubr.bf16.mxu0 %v1342
      %1482 = vmatmul.mubr.bf16.gmra.mxu0 %v1297
      %v1483 = vpop.f32.mrf.mxu0
      %v1484 = vadd.f32 0.0, %v1483
      %v1485 = vpop.f32.mrf.mxu0
      %v1486 = vpop.f32.mrf.mxu0
      %v1487 = vadd.f32 0.0, %v1486
      %v1488 = vpop.f32.mrf.mxu0
      %1489 = vmatprep.mubr.bf16.mxu0 %v1345
      %1490 = vmatmul.mubr.bf16.gmra.mxu0 %v1299
      %v1491 = vpop.f32.mrf.mxu0
      %v1492 = vadd.f32 0.0, %v1491
      %v1493 = vpop.f32.mrf.mxu0
      %v1494 = vpop.f32.mrf.mxu0
      %v1495 = vadd.f32 0.0, %v1494
      %v1496 = vpop.f32.mrf.mxu0
      %1497 = vmatprep.mubr.bf16.mxu0 %v1348
      %1498 = vmatmul.mubr.bf16.gmra.mxu0 %v1301
      %v1499 = vpop.f32.mrf.mxu0
      %v1500 = vadd.f32 0.0, %v1499
      %v1501 = vpop.f32.mrf.mxu0
      %v1502 = vpop.f32.mrf.mxu0
      %v1503 = vadd.f32 0.0, %v1502
      %v1504 = vpop.f32.mrf.mxu0
      %1505 = vmatprep.mubr.bf16.mxu0 %v1351
      %1506 = vmatmul.mubr.bf16.gmra.mxu0 %v1303
      %v1507 = vpop.f32.mrf.mxu0
      %v1508 = vadd.f32 0.0, %v1507
      %v1509 = vpop.f32.mrf.mxu0
      %v1510 = vpop.f32.mrf.mxu0
      %v1511 = vadd.f32 0.0, %v1510
      %v1512 = vpop.f32.mrf.mxu0
      %1513 = vdwg.mxu0
      %v1514 = vadd.f32 %v846, %v1388
      %v1515 = vadd.f32 %v847, %v1391
      %v1516 = vadd.f32 %v848, %v1396
      %v1517 = vadd.f32 %v849, %v1399
      %v1518 = vadd.f32 %v850, %v1404
      %v1519 = vadd.f32 %v851, %v1407
      %v1520 = vadd.f32 %v852, %v1412
      %v1521 = vadd.f32 %v853, %v1415
      %v1522 = vadd.f32 %v854, %v1420
      %v1523 = vadd.f32 %v855, %v1423
      %v1524 = vadd.f32 %v856, %v1428
      %v1525 = vadd.f32 %v857, %v1431
      %v1526 = vadd.f32 %v858, %v1436
      %v1527 = vadd.f32 %v859, %v1439
      %v1528 = vadd.f32 %v860, %v1444
      %v1529 = vadd.f32 %v861, %v1447
      %v1530 = vadd.f32 %v862, %v1452
      %v1531 = vadd.f32 %v863, %v1455
      %v1532 = vadd.f32 %v864, %v1460
      %v1533 = vadd.f32 %v865, %v1463
      %v1534 = vadd.f32 %v866, %v1468
      %v1535 = vadd.f32 %v867, %v1471
      %v1536 = vadd.f32 %v868, %v1476
      %v1537 = vadd.f32 %v869, %v1479
      %v1538 = vadd.f32 %v870, %v1484
      %v1539 = vadd.f32 %v871, %v1487
      %v1540 = vadd.f32 %v872, %v1492
      %v1541 = vadd.f32 %v873, %v1495
      %v1542 = vadd.f32 %v874, %v1500
      %v1543 = vadd.f32 %v875, %v1503
      %v1544 = vadd.f32 %v876, %v1508
      %v1545 = vadd.f32 %v877, %v1511
      %v1546 = vsel %vm792, %v1514, -inf
      %1547 = vmax.xlane.f32.xlu0 %v1546
      %v1548 = vpop.xlane.xlu0 %1547
      %v1549 = vsel %vm792, %v1515, -inf
      %1550 = vmax.xlane.f32.xlu0 %v1549
      %v1551 = vpop.xlane.xlu0 %1550
      %v1552 = vsel %vm792, %v1516, -inf
      %1553 = vmax.xlane.f32.xlu0 %v1552
      %v1554 = vpop.xlane.xlu0 %1553
      %v1555 = vsel %vm792, %v1517, -inf
      %1556 = vmax.xlane.f32.xlu0 %v1555
      %v1557 = vpop.xlane.xlu0 %1556
      %v1558 = vsel %vm792, %v1518, -inf
      %1559 = vmax.xlane.f32.xlu0 %v1558
      %v1560 = vpop.xlane.xlu0 %1559
      %v1561 = vsel %vm792, %v1519, -inf
      %1562 = vmax.xlane.f32.xlu0 %v1561
      %v1563 = vpop.xlane.xlu0 %1562
      %v1564 = vsel %vm792, %v1520, -inf
      %1565 = vmax.xlane.f32.xlu0 %v1564
      %v1566 = vpop.xlane.xlu0 %1565
      %v1567 = vsel %vm792, %v1521, -inf
      %1568 = vmax.xlane.f32.xlu0 %v1567
      %v1569 = vpop.xlane.xlu0 %1568
      %v1570 = vsel %vm792, %v1522, -inf
      %1571 = vmax.xlane.f32.xlu0 %v1570
      %v1572 = vpop.xlane.xlu0 %1571
      %v1573 = vsel %vm792, %v1523, -inf
      %1574 = vmax.xlane.f32.xlu0 %v1573
      %v1575 = vpop.xlane.xlu0 %1574
      %v1576 = vsel %vm792, %v1524, -inf
      %1577 = vmax.xlane.f32.xlu0 %v1576
      %v1578 = vpop.xlane.xlu0 %1577
      %v1579 = vsel %vm792, %v1525, -inf
      %1580 = vmax.xlane.f32.xlu0 %v1579
      %v1581 = vpop.xlane.xlu0 %1580
      %v1582 = vsel %vm792, %v1526, -inf
      %1583 = vmax.xlane.f32.xlu0 %v1582
      %v1584 = vpop.xlane.xlu0 %1583
      %v1585 = vsel %vm792, %v1527, -inf
      %1586 = vmax.xlane.f32.xlu0 %v1585
      %v1587 = vpop.xlane.xlu0 %1586
      %v1588 = vsel %vm792, %v1528, -inf
      %1589 = vmax.xlane.f32.xlu0 %v1588
      %v1590 = vpop.xlane.xlu0 %1589
      %v1591 = vsel %vm792, %v1529, -inf
      %1592 = vmax.xlane.f32.xlu0 %v1591
      %v1593 = vpop.xlane.xlu0 %1592
      %v1594 = vsel %vm792, %v1530, -inf
      %1595 = vmax.xlane.f32.xlu0 %v1594
      %v1596 = vpop.xlane.xlu0 %1595
      %v1597 = vsel %vm792, %v1531, -inf
      %1598 = vmax.xlane.f32.xlu0 %v1597
      %v1599 = vpop.xlane.xlu0 %1598
      %v1600 = vsel %vm792, %v1532, -inf
      %1601 = vmax.xlane.f32.xlu0 %v1600
      %v1602 = vpop.xlane.xlu0 %1601
      %v1603 = vsel %vm792, %v1533, -inf
      %1604 = vmax.xlane.f32.xlu0 %v1603
      %v1605 = vpop.xlane.xlu0 %1604
      %v1606 = vsel %vm792, %v1534, -inf
      %1607 = vmax.xlane.f32.xlu0 %v1606
      %v1608 = vpop.xlane.xlu0 %1607
      %v1609 = vsel %vm792, %v1535, -inf
      %1610 = vmax.xlane.f32.xlu0 %v1609
      %v1611 = vpop.xlane.xlu0 %1610
      %v1612 = vsel %vm792, %v1536, -inf
      %1613 = vmax.xlane.f32.xlu0 %v1612
      %v1614 = vpop.xlane.xlu0 %1613
      %v1615 = vsel %vm792, %v1537, -inf
      %1616 = vmax.xlane.f32.xlu0 %v1615
      %v1617 = vpop.xlane.xlu0 %1616
      %v1618 = vsel %vm792, %v1538, -inf
      %1619 = vmax.xlane.f32.xlu0 %v1618
      %v1620 = vpop.xlane.xlu0 %1619
      %v1621 = vsel %vm792, %v1539, -inf
      %1622 = vmax.xlane.f32.xlu0 %v1621
      %v1623 = vpop.xlane.xlu0 %1622
      %v1624 = vsel %vm792, %v1540, -inf
      %1625 = vmax.xlane.f32.xlu0 %v1624
      %v1626 = vpop.xlane.xlu0 %1625
      %v1627 = vsel %vm792, %v1541, -inf
      %1628 = vmax.xlane.f32.xlu0 %v1627
      %v1629 = vpop.xlane.xlu0 %1628
      %v1630 = vsel %vm792, %v1542, -inf
      %1631 = vmax.xlane.f32.xlu0 %v1630
      %v1632 = vpop.xlane.xlu0 %1631
      %v1633 = vsel %vm792, %v1543, -inf
      %1634 = vmax.xlane.f32.xlu0 %v1633
      %v1635 = vpop.xlane.xlu0 %1634
      %v1636 = vsel %vm792, %v1544, -inf
      %1637 = vmax.xlane.f32.xlu0 %v1636
      %v1638 = vpop.xlane.xlu0 %1637
      %v1639 = vsel %vm792, %v1545, -inf
      %1640 = vmax.xlane.f32.xlu0 %v1639
      %v1641 = vpop.xlane.xlu0 %1640
      %v1642 = vsub.f32 %v1514, %v1548
      %v1643 = vsub.f32 %v1515, %v1551
      %v1644 = vsub.f32 %v1516, %v1554
      %v1645 = vsub.f32 %v1517, %v1557
      %v1646 = vsub.f32 %v1518, %v1560
      %v1647 = vsub.f32 %v1519, %v1563
      %v1648 = vsub.f32 %v1520, %v1566
      %v1649 = vsub.f32 %v1521, %v1569
      %v1650 = vsub.f32 %v1522, %v1572
      %v1651 = vsub.f32 %v1523, %v1575
      %v1652 = vsub.f32 %v1524, %v1578
      %v1653 = vsub.f32 %v1525, %v1581
      %v1654 = vsub.f32 %v1526, %v1584
      %v1655 = vsub.f32 %v1527, %v1587
      %v1656 = vsub.f32 %v1528, %v1590
      %v1657 = vsub.f32 %v1529, %v1593
      %v1658 = vsub.f32 %v1530, %v1596
      %v1659 = vsub.f32 %v1531, %v1599
      %v1660 = vsub.f32 %v1532, %v1602
      %v1661 = vsub.f32 %v1533, %v1605
      %v1662 = vsub.f32 %v1534, %v1608
      %v1663 = vsub.f32 %v1535, %v1611
      %v1664 = vsub.f32 %v1536, %v1614
      %v1665 = vsub.f32 %v1537, %v1617
      %v1666 = vsub.f32 %v1538, %v1620
      %v1667 = vsub.f32 %v1539, %v1623
      %v1668 = vsub.f32 %v1540, %v1626
      %v1669 = vsub.f32 %v1541, %v1629
      %v1670 = vsub.f32 %v1542, %v1632
      %v1671 = vsub.f32 %v1543, %v1635
      %v1672 = vsub.f32 %v1544, %v1638
      %v1673 = vsub.f32 %v1545, %v1641
      %v1674 = vmul.f32 %v1642, 1.442695
      %v1675 = vpow.pop %v1674
      %v1676 = vmul.f32 %v1643, 1.442695
      %v1677 = vpow.pop %v1676
      %v1678 = vmul.f32 %v1644, 1.442695
      %v1679 = vpow.pop %v1678
      %v1680 = vmul.f32 %v1645, 1.442695
      %v1681 = vpow.pop %v1680
      %v1682 = vmul.f32 %v1646, 1.442695
      %v1683 = vpow.pop %v1682
      %v1684 = vmul.f32 %v1647, 1.442695
      %v1685 = vpow.pop %v1684
      %v1686 = vmul.f32 %v1648, 1.442695
      %v1687 = vpow.pop %v1686
      %v1688 = vmul.f32 %v1649, 1.442695
      %v1689 = vpow.pop %v1688
      %v1690 = vmul.f32 %v1650, 1.442695
      %v1691 = vpow.pop %v1690
      %v1692 = vmul.f32 %v1651, 1.442695
      %v1693 = vpow.pop %v1692
      %v1694 = vmul.f32 %v1652, 1.442695
      %v1695 = vpow.pop %v1694
      %v1696 = vmul.f32 %v1653, 1.442695
      %v1697 = vpow.pop %v1696
      %v1698 = vmul.f32 %v1654, 1.442695
      %v1699 = vpow.pop %v1698
      %v1700 = vmul.f32 %v1655, 1.442695
      %v1701 = vpow.pop %v1700
      %v1702 = vmul.f32 %v1656, 1.442695
      %v1703 = vpow.pop %v1702
      %v1704 = vmul.f32 %v1657, 1.442695
      %v1705 = vpow.pop %v1704
      %v1706 = vmul.f32 %v1658, 1.442695
      %v1707 = vpow.pop %v1706
      %v1708 = vmul.f32 %v1659, 1.442695
      %v1709 = vpow.pop %v1708
      %v1710 = vmul.f32 %v1660, 1.442695
      %v1711 = vpow.pop %v1710
      %v1712 = vmul.f32 %v1661, 1.442695
      %v1713 = vpow.pop %v1712
      %v1714 = vmul.f32 %v1662, 1.442695
      %v1715 = vpow.pop %v1714
      %v1716 = vmul.f32 %v1663, 1.442695
      %v1717 = vpow.pop %v1716
      %v1718 = vmul.f32 %v1664, 1.442695
      %v1719 = vpow.pop %v1718
      %v1720 = vmul.f32 %v1665, 1.442695
      %v1721 = vpow.pop %v1720
      %v1722 = vmul.f32 %v1666, 1.442695
      %v1723 = vpow.pop %v1722
      %v1724 = vmul.f32 %v1667, 1.442695
      %v1725 = vpow.pop %v1724
      %v1726 = vmul.f32 %v1668, 1.442695
      %v1727 = vpow.pop %v1726
      %v1728 = vmul.f32 %v1669, 1.442695
      %v1729 = vpow.pop %v1728
      %v1730 = vmul.f32 %v1670, 1.442695
      %v1731 = vpow.pop %v1730
      %v1732 = vmul.f32 %v1671, 1.442695
      %v1733 = vpow.pop %v1732
      %v1734 = vmul.f32 %v1672, 1.442695
      %v1735 = vpow.pop %v1734
      %v1736 = vmul.f32 %v1673, 1.442695
      %v1737 = vpow.pop %v1736
      %v1738 = vsel %vm792, %v1675, 0.0
      %1739 = vadd.xlane.f32.xlu0 %v1738
      %v1740 = vpop.xlane.xlu0 %1739
      %v1741 = vsel %vm792, %v1677, 0.0
      %1742 = vadd.xlane.f32.xlu0 %v1741
      %v1743 = vpop.xlane.xlu0 %1742
      %v1744 = vsel %vm792, %v1679, 0.0
      %1745 = vadd.xlane.f32.xlu0 %v1744
      %v1746 = vpop.xlane.xlu0 %1745
      %v1747 = vsel %vm792, %v1681, 0.0
      %1748 = vadd.xlane.f32.xlu0 %v1747
      %v1749 = vpop.xlane.xlu0 %1748
      %v1750 = vsel %vm792, %v1683, 0.0
      %1751 = vadd.xlane.f32.xlu0 %v1750
      %v1752 = vpop.xlane.xlu0 %1751
      %v1753 = vsel %vm792, %v1685, 0.0
      %1754 = vadd.xlane.f32.xlu0 %v1753
      %v1755 = vpop.xlane.xlu0 %1754
      %v1756 = vsel %vm792, %v1687, 0.0
      %1757 = vadd.xlane.f32.xlu0 %v1756
      %v1758 = vpop.xlane.xlu0 %1757
      %v1759 = vsel %vm792, %v1689, 0.0
      %1760 = vadd.xlane.f32.xlu0 %v1759
      %v1761 = vpop.xlane.xlu0 %1760
      %v1762 = vsel %vm792, %v1691, 0.0
      %1763 = vadd.xlane.f32.xlu0 %v1762
      %v1764 = vpop.xlane.xlu0 %1763
      %v1765 = vsel %vm792, %v1693, 0.0
      %1766 = vadd.xlane.f32.xlu0 %v1765
      %v1767 = vpop.xlane.xlu0 %1766
      %v1768 = vsel %vm792, %v1695, 0.0
      %1769 = vadd.xlane.f32.xlu0 %v1768
      %v1770 = vpop.xlane.xlu0 %1769
      %v1771 = vsel %vm792, %v1697, 0.0
      %1772 = vadd.xlane.f32.xlu0 %v1771
      %v1773 = vpop.xlane.xlu0 %1772
      %v1774 = vsel %vm792, %v1699, 0.0
      %1775 = vadd.xlane.f32.xlu0 %v1774
      %v1776 = vpop.xlane.xlu0 %1775
      %v1777 = vsel %vm792, %v1701, 0.0
      %1778 = vadd.xlane.f32.xlu0 %v1777
      %v1779 = vpop.xlane.xlu0 %1778
      %v1780 = vsel %vm792, %v1703, 0.0
      %1781 = vadd.xlane.f32.xlu0 %v1780
      %v1782 = vpop.xlane.xlu0 %1781
      %v1783 = vsel %vm792, %v1705, 0.0
      %1784 = vadd.xlane.f32.xlu0 %v1783
      %v1785 = vpop.xlane.xlu0 %1784
      %v1786 = vsel %vm792, %v1707, 0.0
      %1787 = vadd.xlane.f32.xlu0 %v1786
      %v1788 = vpop.xlane.xlu0 %1787
      %v1789 = vsel %vm792, %v1709, 0.0
      %1790 = vadd.xlane.f32.xlu0 %v1789
      %v1791 = vpop.xlane.xlu0 %1790
      %v1792 = vsel %vm792, %v1711, 0.0
      %1793 = vadd.xlane.f32.xlu0 %v1792
      %v1794 = vpop.xlane.xlu0 %1793
      %v1795 = vsel %vm792, %v1713, 0.0
      %1796 = vadd.xlane.f32.xlu0 %v1795
      %v1797 = vpop.xlane.xlu0 %1796
      %v1798 = vsel %vm792, %v1715, 0.0
      %1799 = vadd.xlane.f32.xlu0 %v1798
      %v1800 = vpop.xlane.xlu0 %1799
      %v1801 = vsel %vm792, %v1717, 0.0
      %1802 = vadd.xlane.f32.xlu0 %v1801
      %v1803 = vpop.xlane.xlu0 %1802
      %v1804 = vsel %vm792, %v1719, 0.0
      %1805 = vadd.xlane.f32.xlu0 %v1804
      %v1806 = vpop.xlane.xlu0 %1805
      %v1807 = vsel %vm792, %v1721, 0.0
      %1808 = vadd.xlane.f32.xlu0 %v1807
      %v1809 = vpop.xlane.xlu0 %1808
      %v1810 = vsel %vm792, %v1723, 0.0
      %1811 = vadd.xlane.f32.xlu0 %v1810
      %v1812 = vpop.xlane.xlu0 %1811
      %v1813 = vsel %vm792, %v1725, 0.0
      %1814 = vadd.xlane.f32.xlu0 %v1813
      %v1815 = vpop.xlane.xlu0 %1814
      %v1816 = vsel %vm792, %v1727, 0.0
      %1817 = vadd.xlane.f32.xlu0 %v1816
      %v1818 = vpop.xlane.xlu0 %1817
      %v1819 = vsel %vm792, %v1729, 0.0
      %1820 = vadd.xlane.f32.xlu0 %v1819
      %v1821 = vpop.xlane.xlu0 %1820
      %v1822 = vsel %vm792, %v1731, 0.0
      %1823 = vadd.xlane.f32.xlu0 %v1822
      %v1824 = vpop.xlane.xlu0 %1823
      %v1825 = vsel %vm792, %v1733, 0.0
      %1826 = vadd.xlane.f32.xlu0 %v1825
      %v1827 = vpop.xlane.xlu0 %1826
      %v1828 = vsel %vm792, %v1735, 0.0
      %1829 = vadd.xlane.f32.xlu0 %v1828
      %v1830 = vpop.xlane.xlu0 %1829
      %v1831 = vsel %vm792, %v1737, 0.0
      %1832 = vadd.xlane.f32.xlu0 %v1831
      %v1833 = vpop.xlane.xlu0 %1832
      %v1834 = vrcp.pop %v1740
      %v1835 = vmul.f32 %v1675, %v1834
      %v1836 = vrcp.pop %v1743
      %v1837 = vmul.f32 %v1677, %v1836
      %v1838 = vrcp.pop %v1746
      %v1839 = vmul.f32 %v1679, %v1838
      %v1840 = vrcp.pop %v1749
      %v1841 = vmul.f32 %v1681, %v1840
      %v1842 = vrcp.pop %v1752
      %v1843 = vmul.f32 %v1683, %v1842
      %v1844 = vrcp.pop %v1755
      %v1845 = vmul.f32 %v1685, %v1844
      %v1846 = vrcp.pop %v1758
      %v1847 = vmul.f32 %v1687, %v1846
      %v1848 = vrcp.pop %v1761
      %v1849 = vmul.f32 %v1689, %v1848
      %v1850 = vrcp.pop %v1764
      %v1851 = vmul.f32 %v1691, %v1850
      %v1852 = vrcp.pop %v1767
      %v1853 = vmul.f32 %v1693, %v1852
      %v1854 = vrcp.pop %v1770
      %v1855 = vmul.f32 %v1695, %v1854
      %v1856 = vrcp.pop %v1773
      %v1857 = vmul.f32 %v1697, %v1856
      %v1858 = vrcp.pop %v1776
      %v1859 = vmul.f32 %v1699, %v1858
      %v1860 = vrcp.pop %v1779
      %v1861 = vmul.f32 %v1701, %v1860
      %v1862 = vrcp.pop %v1782
      %v1863 = vmul.f32 %v1703, %v1862
      %v1864 = vrcp.pop %v1785
      %v1865 = vmul.f32 %v1705, %v1864
      %v1866 = vrcp.pop %v1788
      %v1867 = vmul.f32 %v1707, %v1866
      %v1868 = vrcp.pop %v1791
      %v1869 = vmul.f32 %v1709, %v1868
      %v1870 = vrcp.pop %v1794
      %v1871 = vmul.f32 %v1711, %v1870
      %v1872 = vrcp.pop %v1797
      %v1873 = vmul.f32 %v1713, %v1872
      %v1874 = vrcp.pop %v1800
      %v1875 = vmul.f32 %v1715, %v1874
      %v1876 = vrcp.pop %v1803
      %v1877 = vmul.f32 %v1717, %v1876
      %v1878 = vrcp.pop %v1806
      %v1879 = vmul.f32 %v1719, %v1878
      %v1880 = vrcp.pop %v1809
      %v1881 = vmul.f32 %v1721, %v1880
      %v1882 = vrcp.pop %v1812
      %v1883 = vmul.f32 %v1723, %v1882
      %v1884 = vrcp.pop %v1815
      %v1885 = vmul.f32 %v1725, %v1884
      %v1886 = vrcp.pop %v1818
      %v1887 = vmul.f32 %v1727, %v1886
      %v1888 = vrcp.pop %v1821
      %v1889 = vmul.f32 %v1729, %v1888
      %v1890 = vrcp.pop %v1824
      %v1891 = vmul.f32 %v1731, %v1890
      %v1892 = vrcp.pop %v1827
      %v1893 = vmul.f32 %v1733, %v1892
      %v1894 = vrcp.pop %v1830
      %v1895 = vmul.f32 %v1735, %v1894
      %v1896 = vrcp.pop %v1833
      %v1897 = vmul.f32 %v1737, %v1896
      %v1898 = vpack.c.bf16 %v1837, %v1835
      %v1899 = vpack.c.bf16 %v1841, %v1839
      %v1900 = vpack.c.bf16 %v1845, %v1843
      %v1901 = vpack.c.bf16 %v1849, %v1847
      %v1902 = vpack.c.bf16 %v1853, %v1851
      %v1903 = vpack.c.bf16 %v1857, %v1855
      %v1904 = vpack.c.bf16 %v1861, %v1859
      %v1905 = vpack.c.bf16 %v1865, %v1863
      %v1906 = vpack.c.bf16 %v1869, %v1867
      %v1907 = vpack.c.bf16 %v1873, %v1871
      %v1908 = vpack.c.bf16 %v1877, %v1875
      %v1909 = vpack.c.bf16 %v1881, %v1879
      %v1910 = vpack.c.bf16 %v1885, %v1883
      %v1911 = vpack.c.bf16 %v1889, %v1887
      %v1912 = vpack.c.bf16 %v1893, %v1891
      %v1913 = vpack.c.bf16 %v1897, %v1895
      %v1915 = vsel %vm792, %v1898, 0
      %v1918 = vsel %vm792, %v1899, 0
      %v1921 = vsel %vm792, %v1900, 0
      %v1924 = vsel %vm792, %v1901, 0
      %v1927 = vsel %vm792, %v1902, 0
      %v1930 = vsel %vm792, %v1903, 0
      %v1933 = vsel %vm792, %v1904, 0
      %v1936 = vsel %vm792, %v1905, 0
      %v1939 = vsel %vm792, %v1906, 0
      %v1942 = vsel %vm792, %v1907, 0
      %v1945 = vsel %vm792, %v1908, 0
      %v1948 = vsel %vm792, %v1909, 0
      %v1951 = vsel %vm792, %v1910, 0
      %v1954 = vsel %vm792, %v1911, 0
      %v1957 = vsel %vm792, %v1912, 0
      %v1960 = vsel %vm792, %v1913, 0
      %1962 = vmatprep.subr.bf16.mxu0 0
      %1963 = vmatpush1.bf16.msra.mxu0 0
      %1964 = vmatprep.subr.bf16.mxu0 0
      %1965 = vmatpush1.bf16.msra.mxu0 0
      %1966 = vmatprep.subr.bf16.mxu0 0
      %1967 = vmatpush1.bf16.msra.mxu0 0
      %1968 = vmatprep.subr.bf16.mxu0 0
      %1969 = vmatpush1.bf16.msra.mxu0 0
      %1970 = vmatprep.subr.bf16.mxu0 0
      %1971 = vmatpush1.bf16.msra.mxu0 0
      %1972 = vmatprep.subr.bf16.mxu0 0
      %1973 = vmatpush1.bf16.msra.mxu0 0
      %1974 = vmatprep.subr.bf16.mxu0 0
      %1975 = vmatpush1.bf16.msra.mxu0 0
      %1976 = vmatprep.subr.bf16.mxu0 %v801
      %1977 = vmatpush1.bf16.msra.mxu0 %v798
      %1978 = vmatprep.subr.bf16.mxu0 0
      %1979 = vmatpush2.bf16.msra.mxu0 0
      %1980 = vmatprep.subr.bf16.mxu0 0
      %1981 = vmatpush2.bf16.msra.mxu0 0
      %1982 = vmatprep.subr.bf16.mxu0 0
      %1983 = vmatpush2.bf16.msra.mxu0 0
      %1984 = vmatprep.subr.bf16.mxu0 0
      %1985 = vmatpush2.bf16.msra.mxu0 0
      %1986 = vmatprep.subr.bf16.mxu0 0
      %1987 = vmatpush2.bf16.msra.mxu0 0
      %1988 = vmatprep.subr.bf16.mxu0 0
      %1989 = vmatpush2.bf16.msra.mxu0 0
      %1990 = vmatprep.subr.bf16.mxu0 0
      %1991 = vmatpush2.bf16.msra.mxu0 0
      %1992 = vmatprep.subr.bf16.mxu0 0
      %1993 = vmatpush2.bf16.msra.mxu0 0
      %1994 = vmatprep.mubr.bf16.mxu0 0
      %1995 = vmatmul.mubr.bf16.gmra.mxu0 %v1915
      %v1996 = vpop.f32.mrf.mxu0
      %v1997 = vadd.f32 0.0, %v1996
      %v1998 = vpop.f32.mrf.mxu0
      %v1999 = vadd.f32 0.0, %v1998
      %v2000 = vpop.f32.mrf.mxu0
      %v2001 = vadd.f32 0.0, %v2000
      %v2002 = vpop.f32.mrf.mxu0
      %v2003 = vadd.f32 0.0, %v2002
      %2004 = vmatprep.mubr.bf16.mxu0 0
      %2005 = vmatmul.mubr.bf16.gmra.mxu0 %v1918
      %v2006 = vpop.f32.mrf.mxu0
      %v2007 = vadd.f32 0.0, %v2006
      %v2008 = vpop.f32.mrf.mxu0
      %v2009 = vadd.f32 0.0, %v2008
      %v2010 = vpop.f32.mrf.mxu0
      %v2011 = vadd.f32 0.0, %v2010
      %v2012 = vpop.f32.mrf.mxu0
      %v2013 = vadd.f32 0.0, %v2012
      %2014 = vmatprep.mubr.bf16.mxu0 0
      %2015 = vmatmul.mubr.bf16.gmra.mxu0 %v1921
      %v2016 = vpop.f32.mrf.mxu0
      %v2017 = vadd.f32 0.0, %v2016
      %v2018 = vpop.f32.mrf.mxu0
      %v2019 = vadd.f32 0.0, %v2018
      %v2020 = vpop.f32.mrf.mxu0
      %v2021 = vadd.f32 0.0, %v2020
      %v2022 = vpop.f32.mrf.mxu0
      %v2023 = vadd.f32 0.0, %v2022
      %2024 = vmatprep.mubr.bf16.mxu0 0
      %2025 = vmatmul.mubr.bf16.gmra.mxu0 %v1924
      %v2026 = vpop.f32.mrf.mxu0
      %v2027 = vadd.f32 0.0, %v2026
      %v2028 = vpop.f32.mrf.mxu0
      %v2029 = vadd.f32 0.0, %v2028
      %v2030 = vpop.f32.mrf.mxu0
      %v2031 = vadd.f32 0.0, %v2030
      %v2032 = vpop.f32.mrf.mxu0
      %v2033 = vadd.f32 0.0, %v2032
      %2034 = vmatprep.mubr.bf16.mxu0 0
      %2035 = vmatmul.mubr.bf16.gmra.mxu0 %v1927
      %v2036 = vpop.f32.mrf.mxu0
      %v2037 = vadd.f32 0.0, %v2036
      %v2038 = vpop.f32.mrf.mxu0
      %v2039 = vadd.f32 0.0, %v2038
      %v2040 = vpop.f32.mrf.mxu0
      %v2041 = vadd.f32 0.0, %v2040
      %v2042 = vpop.f32.mrf.mxu0
      %v2043 = vadd.f32 0.0, %v2042
      %2044 = vmatprep.mubr.bf16.mxu0 0
      %2045 = vmatmul.mubr.bf16.gmra.mxu0 %v1930
      %v2046 = vpop.f32.mrf.mxu0
      %v2047 = vadd.f32 0.0, %v2046
      %v2048 = vpop.f32.mrf.mxu0
      %v2049 = vadd.f32 0.0, %v2048
      %v2050 = vpop.f32.mrf.mxu0
      %v2051 = vadd.f32 0.0, %v2050
      %v2052 = vpop.f32.mrf.mxu0
      %v2053 = vadd.f32 0.0, %v2052
      %2054 = vmatprep.mubr.bf16.mxu0 0
      %2055 = vmatmul.mubr.bf16.gmra.mxu0 %v1933
      %v2056 = vpop.f32.mrf.mxu0
      %v2057 = vadd.f32 0.0, %v2056
      %v2058 = vpop.f32.mrf.mxu0
      %v2059 = vadd.f32 0.0, %v2058
      %v2060 = vpop.f32.mrf.mxu0
      %v2061 = vadd.f32 0.0, %v2060
      %v2062 = vpop.f32.mrf.mxu0
      %v2063 = vadd.f32 0.0, %v2062
      %2064 = vmatprep.mubr.bf16.mxu0 0
      %2065 = vmatmul.mubr.bf16.gmra.mxu0 %v1936
      %v2066 = vpop.f32.mrf.mxu0
      %v2067 = vadd.f32 0.0, %v2066
      %v2068 = vpop.f32.mrf.mxu0
      %v2069 = vadd.f32 0.0, %v2068
      %v2070 = vpop.f32.mrf.mxu0
      %v2071 = vadd.f32 0.0, %v2070
      %v2072 = vpop.f32.mrf.mxu0
      %v2073 = vadd.f32 0.0, %v2072
      %2074 = vmatprep.mubr.bf16.mxu0 0
      %2075 = vmatmul.mubr.bf16.gmra.mxu0 %v1939
      %v2076 = vpop.f32.mrf.mxu0
      %v2077 = vadd.f32 0.0, %v2076
      %v2078 = vpop.f32.mrf.mxu0
      %v2079 = vadd.f32 0.0, %v2078
      %v2080 = vpop.f32.mrf.mxu0
      %v2081 = vadd.f32 0.0, %v2080
      %v2082 = vpop.f32.mrf.mxu0
      %v2083 = vadd.f32 0.0, %v2082
      %2084 = vmatprep.mubr.bf16.mxu0 0
      %2085 = vmatmul.mubr.bf16.gmra.mxu0 %v1942
      %v2086 = vpop.f32.mrf.mxu0
      %v2087 = vadd.f32 0.0, %v2086
      %v2088 = vpop.f32.mrf.mxu0
      %v2089 = vadd.f32 0.0, %v2088
      %v2090 = vpop.f32.mrf.mxu0
      %v2091 = vadd.f32 0.0, %v2090
      %v2092 = vpop.f32.mrf.mxu0
      %v2093 = vadd.f32 0.0, %v2092
      %2094 = vmatprep.mubr.bf16.mxu0 0
      %2095 = vmatmul.mubr.bf16.gmra.mxu0 %v1945
      %v2096 = vpop.f32.mrf.mxu0
      %v2097 = vadd.f32 0.0, %v2096
      %v2098 = vpop.f32.mrf.mxu0
      %v2099 = vadd.f32 0.0, %v2098
      %v2100 = vpop.f32.mrf.mxu0
      %v2101 = vadd.f32 0.0, %v2100
      %v2102 = vpop.f32.mrf.mxu0
      %v2103 = vadd.f32 0.0, %v2102
      %2104 = vmatprep.mubr.bf16.mxu0 0
      %2105 = vmatmul.mubr.bf16.gmra.mxu0 %v1948
      %v2106 = vpop.f32.mrf.mxu0
      %v2107 = vadd.f32 0.0, %v2106
      %v2108 = vpop.f32.mrf.mxu0
      %v2109 = vadd.f32 0.0, %v2108
      %v2110 = vpop.f32.mrf.mxu0
      %v2111 = vadd.f32 0.0, %v2110
      %v2112 = vpop.f32.mrf.mxu0
      %v2113 = vadd.f32 0.0, %v2112
      %2114 = vmatprep.mubr.bf16.mxu0 0
      %2115 = vmatmul.mubr.bf16.gmra.mxu0 %v1951
      %v2116 = vpop.f32.mrf.mxu0
      %v2117 = vadd.f32 0.0, %v2116
      %v2118 = vpop.f32.mrf.mxu0
      %v2119 = vadd.f32 0.0, %v2118
      %v2120 = vpop.f32.mrf.mxu0
      %v2121 = vadd.f32 0.0, %v2120
      %v2122 = vpop.f32.mrf.mxu0
      %v2123 = vadd.f32 0.0, %v2122
      %2124 = vmatprep.mubr.bf16.mxu0 0
      %2125 = vmatmul.mubr.bf16.gmra.mxu0 %v1954
      %v2126 = vpop.f32.mrf.mxu0
      %v2127 = vadd.f32 0.0, %v2126
      %v2128 = vpop.f32.mrf.mxu0
      %v2129 = vadd.f32 0.0, %v2128
      %v2130 = vpop.f32.mrf.mxu0
      %v2131 = vadd.f32 0.0, %v2130
      %v2132 = vpop.f32.mrf.mxu0
      %v2133 = vadd.f32 0.0, %v2132
      %2134 = vmatprep.mubr.bf16.mxu0 0
      %2135 = vmatmul.mubr.bf16.gmra.mxu0 %v1957
      %v2136 = vpop.f32.mrf.mxu0
      %v2137 = vadd.f32 0.0, %v2136
      %v2138 = vpop.f32.mrf.mxu0
      %v2139 = vadd.f32 0.0, %v2138
      %v2140 = vpop.f32.mrf.mxu0
      %v2141 = vadd.f32 0.0, %v2140
      %v2142 = vpop.f32.mrf.mxu0
      %v2143 = vadd.f32 0.0, %v2142
      %2144 = vmatprep.mubr.bf16.mxu0 0
      %2145 = vmatmul.mubr.bf16.gmra.mxu0 %v1960
      %v2146 = vpop.f32.mrf.mxu0
      %v2147 = vadd.f32 0.0, %v2146
      %v2148 = vpop.f32.mrf.mxu0
      %v2149 = vadd.f32 0.0, %v2148
      %v2150 = vpop.f32.mrf.mxu0
      %v2151 = vadd.f32 0.0, %v2150
      %v2152 = vpop.f32.mrf.mxu0
      %v2153 = vadd.f32 0.0, %v2152
      %2154 = vdwg.mxu0
      %v2155 = vmul.f32 %v1997, %v320
      %v2156 = vmul.f32 %v1999, %v321
      %v2157 = vmul.f32 %v2001, %v322
      %v2158 = vmul.f32 %v2003, %v323
      %v2159 = vmul.f32 %v2007, %v324
      %v2160 = vmul.f32 %v2009, %v325
      %v2161 = vmul.f32 %v2011, %v326
      %v2162 = vmul.f32 %v2013, %v327
      %v2163 = vmul.f32 %v2017, %v328
      %v2164 = vmul.f32 %v2019, %v329
      %v2165 = vmul.f32 %v2021, %v330
      %v2166 = vmul.f32 %v2023, %v331
      %v2167 = vmul.f32 %v2027, %v332
      %v2168 = vmul.f32 %v2029, %v333
      %v2169 = vmul.f32 %v2031, %v334
      %v2170 = vmul.f32 %v2033, %v335
      %v2171 = vmul.f32 %v2037, %v336
      %v2172 = vmul.f32 %v2039, %v337
      %v2173 = vmul.f32 %v2041, %v338
      %v2174 = vmul.f32 %v2043, %v339
      %v2175 = vmul.f32 %v2047, %v340
      %v2176 = vmul.f32 %v2049, %v341
      %v2177 = vmul.f32 %v2051, %v342
      %v2178 = vmul.f32 %v2053, %v343
      %v2179 = vmul.f32 %v2057, %v344
      %v2180 = vmul.f32 %v2059, %v345
      %v2181 = vmul.f32 %v2061, %v346
      %v2182 = vmul.f32 %v2063, %v347
      %v2183 = vmul.f32 %v2067, %v348
      %v2184 = vmul.f32 %v2069, %v349
      %v2185 = vmul.f32 %v2071, %v350
      %v2186 = vmul.f32 %v2073, %v351
      %v2187 = vmul.f32 %v2077, %v352
      %v2188 = vmul.f32 %v2079, %v353
      %v2189 = vmul.f32 %v2081, %v354
      %v2190 = vmul.f32 %v2083, %v355
      %v2191 = vmul.f32 %v2087, %v356
      %v2192 = vmul.f32 %v2089, %v357
      %v2193 = vmul.f32 %v2091, %v358
      %v2194 = vmul.f32 %v2093, %v359
      %v2195 = vmul.f32 %v2097, %v360
      %v2196 = vmul.f32 %v2099, %v361
      %v2197 = vmul.f32 %v2101, %v362
      %v2198 = vmul.f32 %v2103, %v363
      %v2199 = vmul.f32 %v2107, %v364
      %v2200 = vmul.f32 %v2109, %v365
      %v2201 = vmul.f32 %v2111, %v366
      %v2202 = vmul.f32 %v2113, %v367
      %v2203 = vmul.f32 %v2117, %v368
      %v2204 = vmul.f32 %v2119, %v369
      %v2205 = vmul.f32 %v2121, %v370
      %v2206 = vmul.f32 %v2123, %v371
      %v2207 = vmul.f32 %v2127, %v372
      %v2208 = vmul.f32 %v2129, %v373
      %v2209 = vmul.f32 %v2131, %v374
      %v2210 = vmul.f32 %v2133, %v375
      %v2211 = vmul.f32 %v2137, %v376
      %v2212 = vmul.f32 %v2139, %v377
      %v2213 = vmul.f32 %v2141, %v378
      %v2214 = vmul.f32 %v2143, %v379
      %v2215 = vmul.f32 %v2147, %v380
      %v2216 = vmul.f32 %v2149, %v381
      %v2217 = vmul.f32 %v2151, %v382
      %v2218 = vmul.f32 %v2153, %v383
      %v2219 = vpack.c.bf16 %v2157, %v2155
      %v2220 = vpack.c.bf16 %v2158, %v2156
      %v2221 = vpack.c.bf16 %v2161, %v2159
      %v2222 = vpack.c.bf16 %v2162, %v2160
      %v2223 = vpack.c.bf16 %v2165, %v2163
      %v2224 = vpack.c.bf16 %v2166, %v2164
      %v2225 = vpack.c.bf16 %v2169, %v2167
      %v2226 = vpack.c.bf16 %v2170, %v2168
      %v2227 = vpack.c.bf16 %v2173, %v2171
      %v2228 = vpack.c.bf16 %v2174, %v2172
      %v2229 = vpack.c.bf16 %v2177, %v2175
      %v2230 = vpack.c.bf16 %v2178, %v2176
      %v2231 = vpack.c.bf16 %v2181, %v2179
      %v2232 = vpack.c.bf16 %v2182, %v2180
      %v2233 = vpack.c.bf16 %v2185, %v2183
      %v2234 = vpack.c.bf16 %v2186, %v2184
      %v2235 = vpack.c.bf16 %v2189, %v2187
      %v2236 = vpack.c.bf16 %v2190, %v2188
      %v2237 = vpack.c.bf16 %v2193, %v2191
      %v2238 = vpack.c.bf16 %v2194, %v2192
      %v2239 = vpack.c.bf16 %v2197, %v2195
      %v2240 = vpack.c.bf16 %v2198, %v2196
      %v2241 = vpack.c.bf16 %v2201, %v2199
      %v2242 = vpack.c.bf16 %v2202, %v2200
      %v2243 = vpack.c.bf16 %v2205, %v2203
      %v2244 = vpack.c.bf16 %v2206, %v2204
      %v2245 = vpack.c.bf16 %v2209, %v2207
      %v2246 = vpack.c.bf16 %v2210, %v2208
      %v2247 = vpack.c.bf16 %v2213, %v2211
      %v2248 = vpack.c.bf16 %v2214, %v2212
      %v2249 = vpack.c.bf16 %v2217, %v2215
      %v2250 = vpack.c.bf16 %v2218, %v2216
      %2251 = vmatprep.subr.bf16.mxu0 %v2234
      %2252 = vmatpush1.bf16.msra.mxu0 %v2233
      %2253 = vmatprep.subr.bf16.mxu0 %v2232
      %2254 = vmatpush1.bf16.msra.mxu0 %v2231
      %2255 = vmatprep.subr.bf16.mxu0 %v2230
      %2256 = vmatpush1.bf16.msra.mxu0 %v2229
      %2257 = vmatprep.subr.bf16.mxu0 %v2228
      %2258 = vmatpush1.bf16.msra.mxu0 %v2227
      %2259 = vmatprep.subr.bf16.mxu0 %v2226
      %2260 = vmatpush1.bf16.msra.mxu0 %v2225
      %2261 = vmatprep.subr.bf16.mxu0 %v2224
      %2262 = vmatpush1.bf16.msra.mxu0 %v2223
      %2263 = vmatprep.subr.bf16.mxu0 %v2222
      %2264 = vmatpush1.bf16.msra.mxu0 %v2221
      %2265 = vmatprep.subr.bf16.mxu0 %v2220
      %2266 = vmatpush1.bf16.msra.mxu0 %v2219
      %2267 = vmatprep.subr.bf16.mxu0 %v2250
      %2268 = vmatpush2.bf16.msra.mxu0 %v2249
      %2269 = vmatprep.subr.bf16.mxu0 %v2248
      %2270 = vmatpush2.bf16.msra.mxu0 %v2247
      %2271 = vmatprep.subr.bf16.mxu0 %v2246
      %2272 = vmatpush2.bf16.msra.mxu0 %v2245
      %2273 = vmatprep.subr.bf16.mxu0 %v2244
      %2274 = vmatpush2.bf16.msra.mxu0 %v2243
      %2275 = vmatprep.subr.bf16.mxu0 %v2242
      %2276 = vmatpush2.bf16.msra.mxu0 %v2241
      %2277 = vmatprep.subr.bf16.mxu0 %v2240
      %2278 = vmatpush2.bf16.msra.mxu0 %v2239
      %2279 = vmatprep.subr.bf16.mxu0 %v2238
      %2280 = vmatpush2.bf16.msra.mxu0 %v2237
      %2281 = vmatprep.subr.bf16.mxu0 %v2236
      %2282 = vmatpush2.bf16.msra.mxu0 %v2235
      %2283 = vmatprep.mubr.bf16.mxu0 %v621
      %2284 = vmatmul.mubr.bf16.gmra.mxu0 %v614
      %v2285 = vpop.f32.mrf.mxu0
      %v2286 = vadd.f32 0.0, %v2285
      %v2287 = vpop.f32.mrf.mxu0
      %v2288 = vadd.f32 0.0, %v2287
      %v2289 = vpop.f32.mrf.mxu0
      %v2290 = vpop.f32.mrf.mxu0
      %2291 = vdwg.mxu0
      %v2292 = vmul.f32 %v2286, %v2286
      %v2293 = vmul.f32 %v2288, %v2288
      %v2294 = vpack.c.bf16 %v2292, %v2292
      %v2295 = vpack.c.bf16 %v2293, %v2293
      %v2297 = vsel %vm729, %v2295, 0
      %2299 = vmatprep.subr.bf16.mxu0 0
      %2300 = vmatpush1.bf16.msra.mxu0 %v716
      %2301 = vmatprep.subr.bf16.mxu0 0
      %2302 = vmatpush1.bf16.msra.mxu0 %v715
      %2303 = vmatprep.subr.bf16.mxu0 0
      %2304 = vmatpush1.bf16.msra.mxu0 %v714
      %2305 = vmatprep.subr.bf16.mxu0 0
      %2306 = vmatpush1.bf16.msra.mxu0 %v713
      %2307 = vmatprep.subr.bf16.mxu0 0
      %2308 = vmatpush1.bf16.msra.mxu0 %v712
      %2309 = vmatprep.subr.bf16.mxu0 0
      %2310 = vmatpush1.bf16.msra.mxu0 %v711
      %2311 = vmatprep.subr.bf16.mxu0 0
      %2312 = vmatpush1.bf16.msra.mxu0 %v710
      %2313 = vmatprep.subr.bf16.mxu0 0
      %2314 = vmatpush1.bf16.msra.mxu0 %v709
      %2315 = vmatprep.subr.bf16.mxu0 0
      %2316 = vmatpush2.bf16.msra.mxu0 0
      %2317 = vmatprep.subr.bf16.mxu0 0
      %2318 = vmatpush2.bf16.msra.mxu0 0
      %2319 = vmatprep.subr.bf16.mxu0 0
      %2320 = vmatpush2.bf16.msra.mxu0 0
      %2321 = vmatprep.subr.bf16.mxu0 0
      %2322 = vmatpush2.bf16.msra.mxu0 0
      %2323 = vmatprep.subr.bf16.mxu0 0
      %2324 = vmatpush2.bf16.msra.mxu0 0
      %2325 = vmatprep.subr.bf16.mxu0 0
      %2326 = vmatpush2.bf16.msra.mxu0 0
      %2327 = vmatprep.subr.bf16.mxu0 0
      %2328 = vmatpush2.bf16.msra.mxu0 %v718
      %2329 = vmatprep.subr.bf16.mxu0 0
      %2330 = vmatpush2.bf16.msra.mxu0 %v717
      %2331 = vmatprep.mubr.bf16.mxu0 %v2297
      %2332 = vmatmul.mubr.bf16.gmra.mxu0 %v2294
      %v2333 = vpop.f32.mrf.mxu0
      %v2334 = vadd.f32 0.0, %v2333
      %v2335 = vpop.f32.mrf.mxu0
      %v2336 = vpop.f32.mrf.mxu0
      %v2337 = vpop.f32.mrf.mxu0
      %2338 = vdwg.mxu0
      %v2339 = vrsqrt.pop %v2334
      %v2340 = vmul.f32 %v2334, %v2339
      %vm2341 = vcmp.eq.f32.partialorder %v2334, inf
      %v2342 = vsel %vm2341, %v2334, %v2340
      %vm2343 = vcmp.eq.f32.partialorder %v2334, 0.0
      %v2344 = vand.u32 %v2334, 2147483648
      %v2345 = vsel %vm2343, %v2344, %v2342
      %v2346 = vadd.f32 %v2334, 1.0
      %v2347 = vrcp.pop %v2346
      %v2348 = vmul.f32 %v2345, %v2347
      %v2349 = vpack.c.bf16 %v2348, %v2348
      %v2351 = vsel %vm792, %v2349, 0
      %2353 = vmatprep.subr.bf16.mxu0 0
      %2354 = vmatpush1.bf16.msra.mxu0 0
      %2355 = vmatprep.subr.bf16.mxu0 0
      %2356 = vmatpush1.bf16.msra.mxu0 0
      %2357 = vmatprep.subr.bf16.mxu0 0
      %2358 = vmatpush1.bf16.msra.mxu0 0
      %2359 = vmatprep.subr.bf16.mxu0 0
      %2360 = vmatpush1.bf16.msra.mxu0 0
      %2361 = vmatprep.subr.bf16.mxu0 0
      %2362 = vmatpush1.bf16.msra.mxu0 0
      %2363 = vmatprep.subr.bf16.mxu0 0
      %2364 = vmatpush1.bf16.msra.mxu0 0
      %2365 = vmatprep.subr.bf16.mxu0 0
      %2366 = vmatpush1.bf16.msra.mxu0 0
      %2367 = vmatprep.subr.bf16.mxu0 %v801
      %2368 = vmatpush1.bf16.msra.mxu0 %v798
      %2369 = vmatprep.subr.bf16.mxu0 0
      %2370 = vmatpush2.bf16.msra.mxu0 0
      %2371 = vmatprep.subr.bf16.mxu0 0
      %2372 = vmatpush2.bf16.msra.mxu0 0
      %2373 = vmatprep.subr.bf16.mxu0 0
      %2374 = vmatpush2.bf16.msra.mxu0 0
      %2375 = vmatprep.subr.bf16.mxu0 0
      %2376 = vmatpush2.bf16.msra.mxu0 0
      %2377 = vmatprep.subr.bf16.mxu0 0
      %2378 = vmatpush2.bf16.msra.mxu0 0
      %2379 = vmatprep.subr.bf16.mxu0 0
      %2380 = vmatpush2.bf16.msra.mxu0 0
      %2381 = vmatprep.subr.bf16.mxu0 0
      %2382 = vmatpush2.bf16.msra.mxu0 0
      %2383 = vmatprep.subr.bf16.mxu0 0
      %2384 = vmatpush2.bf16.msra.mxu0 0
      %2385 = vmatprep.mubr.bf16.mxu0 0
      %2386 = vmatmul.mubr.bf16.gmra.mxu0 %v2351
      %v2387 = vpop.f32.mrf.mxu0
      %v2388 = vadd.f32 0.0, %v2387
      %v2389 = vpop.f32.mrf.mxu0
      %v2390 = vadd.f32 0.0, %v2389
      %v2391 = vpop.f32.mrf.mxu0
      %v2392 = vpop.f32.mrf.mxu0
      %2393 = vdwg.mxu0
      %v2394 = vmul.f32 %v2286, %v2388
      %v2395 = vmul.f32 %v2288, %v2390
      %v2396 = vpack.c.bf16 %v2394, %v2394
      %v2397 = vpack.c.bf16 %v2395, %v2395
      %v2399 = vsel %vm1009, %v2396, 0
      %v2402 = vsel %vm1009, %v2397, 0
      %2404 = vmatprep.subr.bf16.mxu0 0
      %2405 = vmatpush1.bf16.msra.mxu0 0
      %2406 = vmatprep.subr.bf16.mxu0 0
      %2407 = vmatpush1.bf16.msra.mxu0 0
      %2408 = vmatprep.subr.bf16.mxu0 0
      %2409 = vmatpush1.bf16.msra.mxu0 0
      %2410 = vmatprep.subr.bf16.mxu0 0
      %2411 = vmatpush1.bf16.msra.mxu0 0
      %2412 = vmatprep.subr.bf16.mxu0 0
      %2413 = vmatpush1.bf16.msra.mxu0 0
      %2414 = vmatprep.subr.bf16.mxu0 0
      %2415 = vmatpush1.bf16.msra.mxu0 0
      %2416 = vmatprep.subr.bf16.mxu0 0
      %2417 = vmatpush1.bf16.msra.mxu0 0
      %2418 = vmatprep.subr.bf16.mxu0 %v2402
      %2419 = vmatpush1.bf16.msra.mxu0 %v2399
      %2420 = vmatprep.subr.bf16.mxu0 0
      %2421 = vmatpush2.bf16.msra.mxu0 0
      %2422 = vmatprep.subr.bf16.mxu0 0
      %2423 = vmatpush2.bf16.msra.mxu0 0
      %2424 = vmatprep.subr.bf16.mxu0 0
      %2425 = vmatpush2.bf16.msra.mxu0 0
      %2426 = vmatprep.subr.bf16.mxu0 0
      %2427 = vmatpush2.bf16.msra.mxu0 0
      %2428 = vmatprep.subr.bf16.mxu0 0
      %2429 = vmatpush2.bf16.msra.mxu0 0
      %2430 = vmatprep.subr.bf16.mxu0 0
      %2431 = vmatpush2.bf16.msra.mxu0 0
      %2432 = vmatprep.subr.bf16.mxu0 0
      %2433 = vmatpush2.bf16.msra.mxu0 0
      %2434 = vmatprep.subr.bf16.mxu0 0
      %2435 = vmatpush2.bf16.msra.mxu0 0
      %2436 = vmatprep.mubr.bf16.mxu0 0
      %2437 = vmatmul.mubr.bf16.gmra.mxu0 %v962
      %v2438 = vpop.f32.mrf.mxu0
      %v2439 = vadd.f32 0.0, %v2438
      %v2440 = vpop.f32.mrf.mxu0
      %v2441 = vadd.f32 0.0, %v2440
      %v2442 = vpop.f32.mrf.mxu0
      %v2443 = vadd.f32 0.0, %v2442
      %v2444 = vpop.f32.mrf.mxu0
      %v2445 = vadd.f32 0.0, %v2444
      %2446 = vmatprep.mubr.bf16.mxu0 0
      %2447 = vmatmul.mubr.bf16.gmra.mxu0 %v965
      %v2448 = vpop.f32.mrf.mxu0
      %v2449 = vadd.f32 0.0, %v2448
      %v2450 = vpop.f32.mrf.mxu0
      %v2451 = vadd.f32 0.0, %v2450
      %v2452 = vpop.f32.mrf.mxu0
      %v2453 = vadd.f32 0.0, %v2452
      %v2454 = vpop.f32.mrf.mxu0
      %v2455 = vadd.f32 0.0, %v2454
      %2456 = vmatprep.mubr.bf16.mxu0 0
      %2457 = vmatmul.mubr.bf16.gmra.mxu0 %v968
      %v2458 = vpop.f32.mrf.mxu0
      %v2459 = vadd.f32 0.0, %v2458
      %v2460 = vpop.f32.mrf.mxu0
      %v2461 = vadd.f32 0.0, %v2460
      %v2462 = vpop.f32.mrf.mxu0
      %v2463 = vadd.f32 0.0, %v2462
      %v2464 = vpop.f32.mrf.mxu0
      %v2465 = vadd.f32 0.0, %v2464
      %2466 = vmatprep.mubr.bf16.mxu0 0
      %2467 = vmatmul.mubr.bf16.gmra.mxu0 %v971
      %v2468 = vpop.f32.mrf.mxu0
      %v2469 = vadd.f32 0.0, %v2468
      %v2470 = vpop.f32.mrf.mxu0
      %v2471 = vadd.f32 0.0, %v2470
      %v2472 = vpop.f32.mrf.mxu0
      %v2473 = vadd.f32 0.0, %v2472
      %v2474 = vpop.f32.mrf.mxu0
      %v2475 = vadd.f32 0.0, %v2474
      %2476 = vmatprep.mubr.bf16.mxu0 0
      %2477 = vmatmul.mubr.bf16.gmra.mxu0 %v974
      %v2478 = vpop.f32.mrf.mxu0
      %v2479 = vadd.f32 0.0, %v2478
      %v2480 = vpop.f32.mrf.mxu0
      %v2481 = vadd.f32 0.0, %v2480
      %v2482 = vpop.f32.mrf.mxu0
      %v2483 = vadd.f32 0.0, %v2482
      %v2484 = vpop.f32.mrf.mxu0
      %v2485 = vadd.f32 0.0, %v2484
      %2486 = vmatprep.mubr.bf16.mxu0 0
      %2487 = vmatmul.mubr.bf16.gmra.mxu0 %v977
      %v2488 = vpop.f32.mrf.mxu0
      %v2489 = vadd.f32 0.0, %v2488
      %v2490 = vpop.f32.mrf.mxu0
      %v2491 = vadd.f32 0.0, %v2490
      %v2492 = vpop.f32.mrf.mxu0
      %v2493 = vadd.f32 0.0, %v2492
      %v2494 = vpop.f32.mrf.mxu0
      %v2495 = vadd.f32 0.0, %v2494
      %2496 = vmatprep.mubr.bf16.mxu0 0
      %2497 = vmatmul.mubr.bf16.gmra.mxu0 %v980
      %v2498 = vpop.f32.mrf.mxu0
      %v2499 = vadd.f32 0.0, %v2498
      %v2500 = vpop.f32.mrf.mxu0
      %v2501 = vadd.f32 0.0, %v2500
      %v2502 = vpop.f32.mrf.mxu0
      %v2503 = vadd.f32 0.0, %v2502
      %v2504 = vpop.f32.mrf.mxu0
      %v2505 = vadd.f32 0.0, %v2504
      %2506 = vmatprep.mubr.bf16.mxu0 0
      %2507 = vmatmul.mubr.bf16.gmra.mxu0 %v983
      %v2508 = vpop.f32.mrf.mxu0
      %v2509 = vadd.f32 0.0, %v2508
      %v2510 = vpop.f32.mrf.mxu0
      %v2511 = vadd.f32 0.0, %v2510
      %v2512 = vpop.f32.mrf.mxu0
      %v2513 = vadd.f32 0.0, %v2512
      %v2514 = vpop.f32.mrf.mxu0
      %v2515 = vadd.f32 0.0, %v2514
      %2516 = vmatprep.mubr.bf16.mxu0 0
      %2517 = vmatmul.mubr.bf16.gmra.mxu0 %v986
      %v2518 = vpop.f32.mrf.mxu0
      %v2519 = vadd.f32 0.0, %v2518
      %v2520 = vpop.f32.mrf.mxu0
      %v2521 = vadd.f32 0.0, %v2520
      %v2522 = vpop.f32.mrf.mxu0
      %v2523 = vadd.f32 0.0, %v2522
      %v2524 = vpop.f32.mrf.mxu0
      %v2525 = vadd.f32 0.0, %v2524
      %2526 = vmatprep.mubr.bf16.mxu0 0
      %2527 = vmatmul.mubr.bf16.gmra.mxu0 %v989
      %v2528 = vpop.f32.mrf.mxu0
      %v2529 = vadd.f32 0.0, %v2528
      %v2530 = vpop.f32.mrf.mxu0
      %v2531 = vadd.f32 0.0, %v2530
      %v2532 = vpop.f32.mrf.mxu0
      %v2533 = vadd.f32 0.0, %v2532
      %v2534 = vpop.f32.mrf.mxu0
      %v2535 = vadd.f32 0.0, %v2534
      %2536 = vmatprep.mubr.bf16.mxu0 0
      %2537 = vmatmul.mubr.bf16.gmra.mxu0 %v992
      %v2538 = vpop.f32.mrf.mxu0
      %v2539 = vadd.f32 0.0, %v2538
      %v2540 = vpop.f32.mrf.mxu0
      %v2541 = vadd.f32 0.0, %v2540
      %v2542 = vpop.f32.mrf.mxu0
      %v2543 = vadd.f32 0.0, %v2542
      %v2544 = vpop.f32.mrf.mxu0
      %v2545 = vadd.f32 0.0, %v2544
      %2546 = vmatprep.mubr.bf16.mxu0 0
      %2547 = vmatmul.mubr.bf16.gmra.mxu0 %v995
      %v2548 = vpop.f32.mrf.mxu0
      %v2549 = vadd.f32 0.0, %v2548
      %v2550 = vpop.f32.mrf.mxu0
      %v2551 = vadd.f32 0.0, %v2550
      %v2552 = vpop.f32.mrf.mxu0
      %v2553 = vadd.f32 0.0, %v2552
      %v2554 = vpop.f32.mrf.mxu0
      %v2555 = vadd.f32 0.0, %v2554
      %2556 = vmatprep.mubr.bf16.mxu0 0
      %2557 = vmatmul.mubr.bf16.gmra.mxu0 %v998
      %v2558 = vpop.f32.mrf.mxu0
      %v2559 = vadd.f32 0.0, %v2558
      %v2560 = vpop.f32.mrf.mxu0
      %v2561 = vadd.f32 0.0, %v2560
      %v2562 = vpop.f32.mrf.mxu0
      %v2563 = vadd.f32 0.0, %v2562
      %v2564 = vpop.f32.mrf.mxu0
      %v2565 = vadd.f32 0.0, %v2564
      %2566 = vmatprep.mubr.bf16.mxu0 0
      %2567 = vmatmul.mubr.bf16.gmra.mxu0 %v1001
      %v2568 = vpop.f32.mrf.mxu0
      %v2569 = vadd.f32 0.0, %v2568
      %v2570 = vpop.f32.mrf.mxu0
      %v2571 = vadd.f32 0.0, %v2570
      %v2572 = vpop.f32.mrf.mxu0
      %v2573 = vadd.f32 0.0, %v2572
      %v2574 = vpop.f32.mrf.mxu0
      %v2575 = vadd.f32 0.0, %v2574
      %2576 = vmatprep.mubr.bf16.mxu0 0
      %2577 = vmatmul.mubr.bf16.gmra.mxu0 %v1004
      %v2578 = vpop.f32.mrf.mxu0
      %v2579 = vadd.f32 0.0, %v2578
      %v2580 = vpop.f32.mrf.mxu0
      %v2581 = vadd.f32 0.0, %v2580
      %v2582 = vpop.f32.mrf.mxu0
      %v2583 = vadd.f32 0.0, %v2582
      %v2584 = vpop.f32.mrf.mxu0
      %v2585 = vadd.f32 0.0, %v2584
      %2586 = vmatprep.mubr.bf16.mxu0 0
      %2587 = vmatmul.mubr.bf16.gmra.mxu0 %v1007
      %v2588 = vpop.f32.mrf.mxu0
      %v2589 = vadd.f32 0.0, %v2588
      %v2590 = vpop.f32.mrf.mxu0
      %v2591 = vadd.f32 0.0, %v2590
      %v2592 = vpop.f32.mrf.mxu0
      %v2593 = vadd.f32 0.0, %v2592
      %v2594 = vpop.f32.mrf.mxu0
      %v2595 = vadd.f32 0.0, %v2594
      %2596 = vdwg.mxu0
      %v2597 = vmul.f32 %v320, %v2439
      %v2598 = vmul.f32 %v321, %v2441
      %v2599 = vmul.f32 %v322, %v2443
      %v2600 = vmul.f32 %v323, %v2445
      %v2601 = vmul.f32 %v324, %v2449
      %v2602 = vmul.f32 %v325, %v2451
      %v2603 = vmul.f32 %v326, %v2453
      %v2604 = vmul.f32 %v327, %v2455
      %v2605 = vmul.f32 %v328, %v2459
      %v2606 = vmul.f32 %v329, %v2461
      %v2607 = vmul.f32 %v330, %v2463
      %v2608 = vmul.f32 %v331, %v2465
      %v2609 = vmul.f32 %v332, %v2469
      %v2610 = vmul.f32 %v333, %v2471
      %v2611 = vmul.f32 %v334, %v2473
      %v2612 = vmul.f32 %v335, %v2475
      %v2613 = vmul.f32 %v336, %v2479
      %v2614 = vmul.f32 %v337, %v2481
      %v2615 = vmul.f32 %v338, %v2483
      %v2616 = vmul.f32 %v339, %v2485
      %v2617 = vmul.f32 %v340, %v2489
      %v2618 = vmul.f32 %v341, %v2491
      %v2619 = vmul.f32 %v342, %v2493
      %v2620 = vmul.f32 %v343, %v2495
      %v2621 = vmul.f32 %v344, %v2499
      %v2622 = vmul.f32 %v345, %v2501
      %v2623 = vmul.f32 %v346, %v2503
      %v2624 = vmul.f32 %v347, %v2505
      %v2625 = vmul.f32 %v348, %v2509
      %v2626 = vmul.f32 %v349, %v2511
      %v2627 = vmul.f32 %v350, %v2513
      %v2628 = vmul.f32 %v351, %v2515
      %v2629 = vmul.f32 %v352, %v2519
      %v2630 = vmul.f32 %v353, %v2521
      %v2631 = vmul.f32 %v354, %v2523
      %v2632 = vmul.f32 %v355, %v2525
      %v2633 = vmul.f32 %v356, %v2529
      %v2634 = vmul.f32 %v357, %v2531
      %v2635 = vmul.f32 %v358, %v2533
      %v2636 = vmul.f32 %v359, %v2535
      %v2637 = vmul.f32 %v360, %v2539
      %v2638 = vmul.f32 %v361, %v2541
      %v2639 = vmul.f32 %v362, %v2543
      %v2640 = vmul.f32 %v363, %v2545
      %v2641 = vmul.f32 %v364, %v2549
      %v2642 = vmul.f32 %v365, %v2551
      %v2643 = vmul.f32 %v366, %v2553
      %v2644 = vmul.f32 %v367, %v2555
      %v2645 = vmul.f32 %v368, %v2559
      %v2646 = vmul.f32 %v369, %v2561
      %v2647 = vmul.f32 %v370, %v2563
      %v2648 = vmul.f32 %v371, %v2565
      %v2649 = vmul.f32 %v372, %v2569
      %v2650 = vmul.f32 %v373, %v2571
      %v2651 = vmul.f32 %v374, %v2573
      %v2652 = vmul.f32 %v375, %v2575
      %v2653 = vmul.f32 %v376, %v2579
      %v2654 = vmul.f32 %v377, %v2581
      %v2655 = vmul.f32 %v378, %v2583
      %v2656 = vmul.f32 %v379, %v2585
      %v2657 = vmul.f32 %v380, %v2589
      %v2658 = vmul.f32 %v381, %v2591
      %v2659 = vmul.f32 %v382, %v2593
      %v2660 = vmul.f32 %v383, %v2595
      %v2661 = vpack.c.bf16 %v2599, %v2597
      %v2662 = vpack.c.bf16 %v2600, %v2598
      %v2663 = vpack.c.bf16 %v2603, %v2601
      %v2664 = vpack.c.bf16 %v2604, %v2602
      %v2665 = vpack.c.bf16 %v2607, %v2605
      %v2666 = vpack.c.bf16 %v2608, %v2606
      %v2667 = vpack.c.bf16 %v2611, %v2609
      %v2668 = vpack.c.bf16 %v2612, %v2610
      %v2669 = vpack.c.bf16 %v2615, %v2613
      %v2670 = vpack.c.bf16 %v2616, %v2614
      %v2671 = vpack.c.bf16 %v2619, %v2617
      %v2672 = vpack.c.bf16 %v2620, %v2618
      %v2673 = vpack.c.bf16 %v2623, %v2621
      %v2674 = vpack.c.bf16 %v2624, %v2622
      %v2675 = vpack.c.bf16 %v2627, %v2625
      %v2676 = vpack.c.bf16 %v2628, %v2626
      %v2677 = vpack.c.bf16 %v2631, %v2629
      %v2678 = vpack.c.bf16 %v2632, %v2630
      %v2679 = vpack.c.bf16 %v2635, %v2633
      %v2680 = vpack.c.bf16 %v2636, %v2634
      %v2681 = vpack.c.bf16 %v2639, %v2637
      %v2682 = vpack.c.bf16 %v2640, %v2638
      %v2683 = vpack.c.bf16 %v2643, %v2641
      %v2684 = vpack.c.bf16 %v2644, %v2642
      %v2685 = vpack.c.bf16 %v2647, %v2645
      %v2686 = vpack.c.bf16 %v2648, %v2646
      %v2687 = vpack.c.bf16 %v2651, %v2649
      %v2688 = vpack.c.bf16 %v2652, %v2650
      %v2689 = vpack.c.bf16 %v2655, %v2653
      %v2690 = vpack.c.bf16 %v2656, %v2654
      %v2691 = vpack.c.bf16 %v2659, %v2657
      %v2692 = vpack.c.bf16 %v2660, %v2658
      %v2694 = vsel %vm729, %v2662, 0
      %v2697 = vsel %vm729, %v2664, 0
      %v2700 = vsel %vm729, %v2666, 0
      %v2703 = vsel %vm729, %v2668, 0
      %v2706 = vsel %vm729, %v2670, 0
      %v2709 = vsel %vm729, %v2672, 0
      %v2712 = vsel %vm729, %v2674, 0
      %v2715 = vsel %vm729, %v2676, 0
      %v2718 = vsel %vm729, %v2678, 0
      %v2721 = vsel %vm729, %v2680, 0
      %v2724 = vsel %vm729, %v2682, 0
      %v2727 = vsel %vm729, %v2684, 0
      %v2730 = vsel %vm729, %v2686, 0
      %v2733 = vsel %vm729, %v2688, 0
      %v2736 = vsel %vm729, %v2690, 0
      %v2739 = vsel %vm729, %v2692, 0
      %2741 = vmatprep.subr.bf16.mxu0 0
      %2742 = vmatpush1.bf16.msra.mxu0 %v716
      %2743 = vmatprep.subr.bf16.mxu0 0
      %2744 = vmatpush1.bf16.msra.mxu0 %v715
      %2745 = vmatprep.subr.bf16.mxu0 0
      %2746 = vmatpush1.bf16.msra.mxu0 %v714
      %2747 = vmatprep.subr.bf16.mxu0 0
      %2748 = vmatpush1.bf16.msra.mxu0 %v713
      %2749 = vmatprep.subr.bf16.mxu0 0
      %2750 = vmatpush1.bf16.msra.mxu0 %v712
      %2751 = vmatprep.subr.bf16.mxu0 0
      %2752 = vmatpush1.bf16.msra.mxu0 %v711
      %2753 = vmatprep.subr.bf16.mxu0 0
      %2754 = vmatpush1.bf16.msra.mxu0 %v710
      %2755 = vmatprep.subr.bf16.mxu0 0
      %2756 = vmatpush1.bf16.msra.mxu0 %v709
      %2757 = vmatprep.subr.bf16.mxu0 0
      %2758 = vmatpush2.bf16.msra.mxu0 0
      %2759 = vmatprep.subr.bf16.mxu0 0
      %2760 = vmatpush2.bf16.msra.mxu0 0
      %2761 = vmatprep.subr.bf16.mxu0 0
      %2762 = vmatpush2.bf16.msra.mxu0 0
      %2763 = vmatprep.subr.bf16.mxu0 0
      %2764 = vmatpush2.bf16.msra.mxu0 0
      %2765 = vmatprep.subr.bf16.mxu0 0
      %2766 = vmatpush2.bf16.msra.mxu0 0
      %2767 = vmatprep.subr.bf16.mxu0 0
      %2768 = vmatpush2.bf16.msra.mxu0 0
      %2769 = vmatprep.subr.bf16.mxu0 0
      %2770 = vmatpush2.bf16.msra.mxu0 %v718
      %2771 = vmatprep.subr.bf16.mxu0 0
      %2772 = vmatpush2.bf16.msra.mxu0 %v717
      %2773 = vmatprep.mubr.bf16.mxu0 %v2694
      %2774 = vmatmul.mubr.bf16.gmra.mxu0 %v2661
      %v2775 = vpop.f32.mrf.mxu0
      %v2776 = vadd.f32 0.0, %v2775
      %v2777 = vpop.f32.mrf.mxu0
      %v2778 = vpop.f32.mrf.mxu0
      %v2779 = vadd.f32 0.0, %v2778
      %v2780 = vpop.f32.mrf.mxu0
      %2781 = vmatprep.mubr.bf16.mxu0 %v2697
      %2782 = vmatmul.mubr.bf16.gmra.mxu0 %v2663
      %v2783 = vpop.f32.mrf.mxu0
      %v2784 = vadd.f32 0.0, %v2783
      %v2785 = vpop.f32.mrf.mxu0
      %v2786 = vpop.f32.mrf.mxu0
      %v2787 = vadd.f32 0.0, %v2786
      %v2788 = vpop.f32.mrf.mxu0
      %2789 = vmatprep.mubr.bf16.mxu0 %v2700
      %2790 = vmatmul.mubr.bf16.gmra.mxu0 %v2665
      %v2791 = vpop.f32.mrf.mxu0
      %v2792 = vadd.f32 0.0, %v2791
      %v2793 = vpop.f32.mrf.mxu0
      %v2794 = vpop.f32.mrf.mxu0
      %v2795 = vadd.f32 0.0, %v2794
      %v2796 = vpop.f32.mrf.mxu0
      %2797 = vmatprep.mubr.bf16.mxu0 %v2703
      %2798 = vmatmul.mubr.bf16.gmra.mxu0 %v2667
      %v2799 = vpop.f32.mrf.mxu0
      %v2800 = vadd.f32 0.0, %v2799
      %v2801 = vpop.f32.mrf.mxu0
      %v2802 = vpop.f32.mrf.mxu0
      %v2803 = vadd.f32 0.0, %v2802
      %v2804 = vpop.f32.mrf.mxu0
      %2805 = vmatprep.mubr.bf16.mxu0 %v2706
      %2806 = vmatmul.mubr.bf16.gmra.mxu0 %v2669
      %v2807 = vpop.f32.mrf.mxu0
      %v2808 = vadd.f32 0.0, %v2807
      %v2809 = vpop.f32.mrf.mxu0
      %v2810 = vpop.f32.mrf.mxu0
      %v2811 = vadd.f32 0.0, %v2810
      %v2812 = vpop.f32.mrf.mxu0
      %2813 = vmatprep.mubr.bf16.mxu0 %v2709
      %2814 = vmatmul.mubr.bf16.gmra.mxu0 %v2671
      %v2815 = vpop.f32.mrf.mxu0
      %v2816 = vadd.f32 0.0, %v2815
      %v2817 = vpop.f32.mrf.mxu0
      %v2818 = vpop.f32.mrf.mxu0
      %v2819 = vadd.f32 0.0, %v2818
      %v2820 = vpop.f32.mrf.mxu0
      %2821 = vmatprep.mubr.bf16.mxu0 %v2712
      %2822 = vmatmul.mubr.bf16.gmra.mxu0 %v2673
      %v2823 = vpop.f32.mrf.mxu0
      %v2824 = vadd.f32 0.0, %v2823
      %v2825 = vpop.f32.mrf.mxu0
      %v2826 = vpop.f32.mrf.mxu0
      %v2827 = vadd.f32 0.0, %v2826
      %v2828 = vpop.f32.mrf.mxu0
      %2829 = vmatprep.mubr.bf16.mxu0 %v2715
      %2830 = vmatmul.mubr.bf16.gmra.mxu0 %v2675
      %v2831 = vpop.f32.mrf.mxu0
      %v2832 = vadd.f32 0.0, %v2831
      %v2833 = vpop.f32.mrf.mxu0
      %v2834 = vpop.f32.mrf.mxu0
      %v2835 = vadd.f32 0.0, %v2834
      %v2836 = vpop.f32.mrf.mxu0
      %2837 = vmatprep.mubr.bf16.mxu0 %v2718
      %2838 = vmatmul.mubr.bf16.gmra.mxu0 %v2677
      %v2839 = vpop.f32.mrf.mxu0
      %v2840 = vadd.f32 0.0, %v2839
      %v2841 = vpop.f32.mrf.mxu0
      %v2842 = vpop.f32.mrf.mxu0
      %v2843 = vadd.f32 0.0, %v2842
      %v2844 = vpop.f32.mrf.mxu0
      %2845 = vmatprep.mubr.bf16.mxu0 %v2721
      %2846 = vmatmul.mubr.bf16.gmra.mxu0 %v2679
      %v2847 = vpop.f32.mrf.mxu0
      %v2848 = vadd.f32 0.0, %v2847
      %v2849 = vpop.f32.mrf.mxu0
      %v2850 = vpop.f32.mrf.mxu0
      %v2851 = vadd.f32 0.0, %v2850
      %v2852 = vpop.f32.mrf.mxu0
      %2853 = vmatprep.mubr.bf16.mxu0 %v2724
      %2854 = vmatmul.mubr.bf16.gmra.mxu0 %v2681
      %v2855 = vpop.f32.mrf.mxu0
      %v2856 = vadd.f32 0.0, %v2855
      %v2857 = vpop.f32.mrf.mxu0
      %v2858 = vpop.f32.mrf.mxu0
      %v2859 = vadd.f32 0.0, %v2858
      %v2860 = vpop.f32.mrf.mxu0
      %2861 = vmatprep.mubr.bf16.mxu0 %v2727
      %2862 = vmatmul.mubr.bf16.gmra.mxu0 %v2683
      %v2863 = vpop.f32.mrf.mxu0
      %v2864 = vadd.f32 0.0, %v2863
      %v2865 = vpop.f32.mrf.mxu0
      %v2866 = vpop.f32.mrf.mxu0
      %v2867 = vadd.f32 0.0, %v2866
      %v2868 = vpop.f32.mrf.mxu0
      %2869 = vmatprep.mubr.bf16.mxu0 %v2730
      %2870 = vmatmul.mubr.bf16.gmra.mxu0 %v2685
      %v2871 = vpop.f32.mrf.mxu0
      %v2872 = vadd.f32 0.0, %v2871
      %v2873 = vpop.f32.mrf.mxu0
      %v2874 = vpop.f32.mrf.mxu0
      %v2875 = vadd.f32 0.0, %v2874
      %v2876 = vpop.f32.mrf.mxu0
      %2877 = vmatprep.mubr.bf16.mxu0 %v2733
      %2878 = vmatmul.mubr.bf16.gmra.mxu0 %v2687
      %v2879 = vpop.f32.mrf.mxu0
      %v2880 = vadd.f32 0.0, %v2879
      %v2881 = vpop.f32.mrf.mxu0
      %v2882 = vpop.f32.mrf.mxu0
      %v2883 = vadd.f32 0.0, %v2882
      %v2884 = vpop.f32.mrf.mxu0
      %2885 = vmatprep.mubr.bf16.mxu0 %v2736
      %2886 = vmatmul.mubr.bf16.gmra.mxu0 %v2689
      %v2887 = vpop.f32.mrf.mxu0
      %v2888 = vadd.f32 0.0, %v2887
      %v2889 = vpop.f32.mrf.mxu0
      %v2890 = vpop.f32.mrf.mxu0
      %v2891 = vadd.f32 0.0, %v2890
      %v2892 = vpop.f32.mrf.mxu0
      %2893 = vmatprep.mubr.bf16.mxu0 %v2739
      %2894 = vmatmul.mubr.bf16.gmra.mxu0 %v2691
      %v2895 = vpop.f32.mrf.mxu0
      %v2896 = vadd.f32 0.0, %v2895
      %v2897 = vpop.f32.mrf.mxu0
      %v2898 = vpop.f32.mrf.mxu0
      %v2899 = vadd.f32 0.0, %v2898
      %v2900 = vpop.f32.mrf.mxu0
      %2901 = vdwg.mxu0
      %v2902 = vadd.f32 %v1514, %v2776
      %v2903 = vadd.f32 %v1515, %v2779
      %v2904 = vadd.f32 %v1516, %v2784
      %v2905 = vadd.f32 %v1517, %v2787
      %v2906 = vadd.f32 %v1518, %v2792
      %v2907 = vadd.f32 %v1519, %v2795
      %v2908 = vadd.f32 %v1520, %v2800
      %v2909 = vadd.f32 %v1521, %v2803
      %v2910 = vadd.f32 %v1522, %v2808
      %v2911 = vadd.f32 %v1523, %v2811
      %v2912 = vadd.f32 %v1524, %v2816
      %v2913 = vadd.f32 %v1525, %v2819
      %v2914 = vadd.f32 %v1526, %v2824
      %v2915 = vadd.f32 %v1527, %v2827
      %v2916 = vadd.f32 %v1528, %v2832
      %v2917 = vadd.f32 %v1529, %v2835
      %v2918 = vadd.f32 %v1530, %v2840
      %v2919 = vadd.f32 %v1531, %v2843
      %v2920 = vadd.f32 %v1532, %v2848
      %v2921 = vadd.f32 %v1533, %v2851
      %v2922 = vadd.f32 %v1534, %v2856
      %v2923 = vadd.f32 %v1535, %v2859
      %v2924 = vadd.f32 %v1536, %v2864
      %v2925 = vadd.f32 %v1537, %v2867
      %v2926 = vadd.f32 %v1538, %v2872
      %v2927 = vadd.f32 %v1539, %v2875
      %v2928 = vadd.f32 %v1540, %v2880
      %v2929 = vadd.f32 %v1541, %v2883
      %v2930 = vadd.f32 %v1542, %v2888
      %v2931 = vadd.f32 %v1543, %v2891
      %v2932 = vadd.f32 %v1544, %v2896
      %v2933 = vadd.f32 %v1545, %v2899
      %v2934 = vsel %vm792, %v2902, -inf
      %2935 = vmax.xlane.f32.xlu0 %v2934
      %v2936 = vpop.xlane.xlu0 %2935
      %v2937 = vsel %vm792, %v2903, -inf
      %2938 = vmax.xlane.f32.xlu0 %v2937
      %v2939 = vpop.xlane.xlu0 %2938
      %v2940 = vsel %vm792, %v2904, -inf
      %2941 = vmax.xlane.f32.xlu0 %v2940
      %v2942 = vpop.xlane.xlu0 %2941
      %v2943 = vsel %vm792, %v2905, -inf
      %2944 = vmax.xlane.f32.xlu0 %v2943
      %v2945 = vpop.xlane.xlu0 %2944
      %v2946 = vsel %vm792, %v2906, -inf
      %2947 = vmax.xlane.f32.xlu0 %v2946
      %v2948 = vpop.xlane.xlu0 %2947
      %v2949 = vsel %vm792, %v2907, -inf
      %2950 = vmax.xlane.f32.xlu0 %v2949
      %v2951 = vpop.xlane.xlu0 %2950
      %v2952 = vsel %vm792, %v2908, -inf
      %2953 = vmax.xlane.f32.xlu0 %v2952
      %v2954 = vpop.xlane.xlu0 %2953
      %v2955 = vsel %vm792, %v2909, -inf
      %2956 = vmax.xlane.f32.xlu0 %v2955
      %v2957 = vpop.xlane.xlu0 %2956
      %v2958 = vsel %vm792, %v2910, -inf
      %2959 = vmax.xlane.f32.xlu0 %v2958
      %v2960 = vpop.xlane.xlu0 %2959
      %v2961 = vsel %vm792, %v2911, -inf
      %2962 = vmax.xlane.f32.xlu0 %v2961
      %v2963 = vpop.xlane.xlu0 %2962
      %v2964 = vsel %vm792, %v2912, -inf
      %2965 = vmax.xlane.f32.xlu0 %v2964
      %v2966 = vpop.xlane.xlu0 %2965
      %v2967 = vsel %vm792, %v2913, -inf
      %2968 = vmax.xlane.f32.xlu0 %v2967
      %v2969 = vpop.xlane.xlu0 %2968
      %v2970 = vsel %vm792, %v2914, -inf
      %2971 = vmax.xlane.f32.xlu0 %v2970
      %v2972 = vpop.xlane.xlu0 %2971
      %v2973 = vsel %vm792, %v2915, -inf
      %2974 = vmax.xlane.f32.xlu0 %v2973
      %v2975 = vpop.xlane.xlu0 %2974
      %v2976 = vsel %vm792, %v2916, -inf
      %2977 = vmax.xlane.f32.xlu0 %v2976
      %v2978 = vpop.xlane.xlu0 %2977
      %v2979 = vsel %vm792, %v2917, -inf
      %2980 = vmax.xlane.f32.xlu0 %v2979
      %v2981 = vpop.xlane.xlu0 %2980
      %v2982 = vsel %vm792, %v2918, -inf
      %2983 = vmax.xlane.f32.xlu0 %v2982
      %v2984 = vpop.xlane.xlu0 %2983
      %v2985 = vsel %vm792, %v2919, -inf
      %2986 = vmax.xlane.f32.xlu0 %v2985
      %v2987 = vpop.xlane.xlu0 %2986
      %v2988 = vsel %vm792, %v2920, -inf
      %2989 = vmax.xlane.f32.xlu0 %v2988
      %v2990 = vpop.xlane.xlu0 %2989
      %v2991 = vsel %vm792, %v2921, -inf
      %2992 = vmax.xlane.f32.xlu0 %v2991
      %v2993 = vpop.xlane.xlu0 %2992
      %v2994 = vsel %vm792, %v2922, -inf
      %2995 = vmax.xlane.f32.xlu0 %v2994
      %v2996 = vpop.xlane.xlu0 %2995
      %v2997 = vsel %vm792, %v2923, -inf
      %2998 = vmax.xlane.f32.xlu0 %v2997
      %v2999 = vpop.xlane.xlu0 %2998
      %v3000 = vsel %vm792, %v2924, -inf
      %3001 = vmax.xlane.f32.xlu0 %v3000
      %v3002 = vpop.xlane.xlu0 %3001
      %v3003 = vsel %vm792, %v2925, -inf
      %3004 = vmax.xlane.f32.xlu0 %v3003
      %v3005 = vpop.xlane.xlu0 %3004
      %v3006 = vsel %vm792, %v2926, -inf
      %3007 = vmax.xlane.f32.xlu0 %v3006
      %v3008 = vpop.xlane.xlu0 %3007
      %v3009 = vsel %vm792, %v2927, -inf
      %3010 = vmax.xlane.f32.xlu0 %v3009
      %v3011 = vpop.xlane.xlu0 %3010
      %v3012 = vsel %vm792, %v2928, -inf
      %3013 = vmax.xlane.f32.xlu0 %v3012
      %v3014 = vpop.xlane.xlu0 %3013
      %v3015 = vsel %vm792, %v2929, -inf
      %3016 = vmax.xlane.f32.xlu0 %v3015
      %v3017 = vpop.xlane.xlu0 %3016
      %v3018 = vsel %vm792, %v2930, -inf
      %3019 = vmax.xlane.f32.xlu0 %v3018
      %v3020 = vpop.xlane.xlu0 %3019
      %v3021 = vsel %vm792, %v2931, -inf
      %3022 = vmax.xlane.f32.xlu0 %v3021
      %v3023 = vpop.xlane.xlu0 %3022
      %v3024 = vsel %vm792, %v2932, -inf
      %3025 = vmax.xlane.f32.xlu0 %v3024
      %v3026 = vpop.xlane.xlu0 %3025
      %v3027 = vsel %vm792, %v2933, -inf
      %3028 = vmax.xlane.f32.xlu0 %v3027
      %v3029 = vpop.xlane.xlu0 %3028
      %v3030 = vsub.f32 %v2902, %v2936
      %v3031 = vsub.f32 %v2903, %v2939
      %v3032 = vsub.f32 %v2904, %v2942
      %v3033 = vsub.f32 %v2905, %v2945
      %v3034 = vsub.f32 %v2906, %v2948
      %v3035 = vsub.f32 %v2907, %v2951
      %v3036 = vsub.f32 %v2908, %v2954
      %v3037 = vsub.f32 %v2909, %v2957
      %v3038 = vsub.f32 %v2910, %v2960
      %v3039 = vsub.f32 %v2911, %v2963
      %v3040 = vsub.f32 %v2912, %v2966
      %v3041 = vsub.f32 %v2913, %v2969
      %v3042 = vsub.f32 %v2914, %v2972
      %v3043 = vsub.f32 %v2915, %v2975
      %v3044 = vsub.f32 %v2916, %v2978
      %v3045 = vsub.f32 %v2917, %v2981
      %v3046 = vsub.f32 %v2918, %v2984
      %v3047 = vsub.f32 %v2919, %v2987
      %v3048 = vsub.f32 %v2920, %v2990
      %v3049 = vsub.f32 %v2921, %v2993
      %v3050 = vsub.f32 %v2922, %v2996
      %v3051 = vsub.f32 %v2923, %v2999
      %v3052 = vsub.f32 %v2924, %v3002
      %v3053 = vsub.f32 %v2925, %v3005
      %v3054 = vsub.f32 %v2926, %v3008
      %v3055 = vsub.f32 %v2927, %v3011
      %v3056 = vsub.f32 %v2928, %v3014
      %v3057 = vsub.f32 %v2929, %v3017
      %v3058 = vsub.f32 %v2930, %v3020
      %v3059 = vsub.f32 %v2931, %v3023
      %v3060 = vsub.f32 %v2932, %v3026
      %v3061 = vsub.f32 %v2933, %v3029
      %v3062 = vmul.f32 %v3030, 1.442695
      %v3063 = vpow.pop %v3062
      %v3064 = vmul.f32 %v3031, 1.442695
      %v3065 = vpow.pop %v3064
      %v3066 = vmul.f32 %v3032, 1.442695
      %v3067 = vpow.pop %v3066
      %v3068 = vmul.f32 %v3033, 1.442695
      %v3069 = vpow.pop %v3068
      %v3070 = vmul.f32 %v3034, 1.442695
      %v3071 = vpow.pop %v3070
      %v3072 = vmul.f32 %v3035, 1.442695
      %v3073 = vpow.pop %v3072
      %v3074 = vmul.f32 %v3036, 1.442695
      %v3075 = vpow.pop %v3074
      %v3076 = vmul.f32 %v3037, 1.442695
      %v3077 = vpow.pop %v3076
      %v3078 = vmul.f32 %v3038, 1.442695
      %v3079 = vpow.pop %v3078
      %v3080 = vmul.f32 %v3039, 1.442695
      %v3081 = vpow.pop %v3080
      %v3082 = vmul.f32 %v3040, 1.442695
      %v3083 = vpow.pop %v3082
      %v3084 = vmul.f32 %v3041, 1.442695
      %v3085 = vpow.pop %v3084
      %v3086 = vmul.f32 %v3042, 1.442695
      %v3087 = vpow.pop %v3086
      %v3088 = vmul.f32 %v3043, 1.442695
      %v3089 = vpow.pop %v3088
      %v3090 = vmul.f32 %v3044, 1.442695
      %v3091 = vpow.pop %v3090
      %v3092 = vmul.f32 %v3045, 1.442695
      %v3093 = vpow.pop %v3092
      %v3094 = vmul.f32 %v3046, 1.442695
      %v3095 = vpow.pop %v3094
      %v3096 = vmul.f32 %v3047, 1.442695
      %v3097 = vpow.pop %v3096
      %v3098 = vmul.f32 %v3048, 1.442695
      %v3099 = vpow.pop %v3098
      %v3100 = vmul.f32 %v3049, 1.442695
      %v3101 = vpow.pop %v3100
      %v3102 = vmul.f32 %v3050, 1.442695
      %v3103 = vpow.pop %v3102
      %v3104 = vmul.f32 %v3051, 1.442695
      %v3105 = vpow.pop %v3104
      %v3106 = vmul.f32 %v3052, 1.442695
      %v3107 = vpow.pop %v3106
      %v3108 = vmul.f32 %v3053, 1.442695
      %v3109 = vpow.pop %v3108
      %v3110 = vmul.f32 %v3054, 1.442695
      %v3111 = vpow.pop %v3110
      %v3112 = vmul.f32 %v3055, 1.442695
      %v3113 = vpow.pop %v3112
      %v3114 = vmul.f32 %v3056, 1.442695
      %v3115 = vpow.pop %v3114
      %v3116 = vmul.f32 %v3057, 1.442695
      %v3117 = vpow.pop %v3116
      %v3118 = vmul.f32 %v3058, 1.442695
      %v3119 = vpow.pop %v3118
      %v3120 = vmul.f32 %v3059, 1.442695
      %v3121 = vpow.pop %v3120
      %v3122 = vmul.f32 %v3060, 1.442695
      %v3123 = vpow.pop %v3122
      %v3124 = vmul.f32 %v3061, 1.442695
      %v3125 = vpow.pop %v3124
      %v3126 = vsel %vm792, %v3063, 0.0
      %3127 = vadd.xlane.f32.xlu0 %v3126
      %v3128 = vpop.xlane.xlu0 %3127
      %v3129 = vsel %vm792, %v3065, 0.0
      %3130 = vadd.xlane.f32.xlu0 %v3129
      %v3131 = vpop.xlane.xlu0 %3130
      %v3132 = vsel %vm792, %v3067, 0.0
      %3133 = vadd.xlane.f32.xlu0 %v3132
      %v3134 = vpop.xlane.xlu0 %3133
      %v3135 = vsel %vm792, %v3069, 0.0
      %3136 = vadd.xlane.f32.xlu0 %v3135
      %v3137 = vpop.xlane.xlu0 %3136
      %v3138 = vsel %vm792, %v3071, 0.0
      %3139 = vadd.xlane.f32.xlu0 %v3138
      %v3140 = vpop.xlane.xlu0 %3139
      %v3141 = vsel %vm792, %v3073, 0.0
      %3142 = vadd.xlane.f32.xlu0 %v3141
      %v3143 = vpop.xlane.xlu0 %3142
      %v3144 = vsel %vm792, %v3075, 0.0
      %3145 = vadd.xlane.f32.xlu0 %v3144
      %v3146 = vpop.xlane.xlu0 %3145
      %v3147 = vsel %vm792, %v3077, 0.0
      %3148 = vadd.xlane.f32.xlu0 %v3147
      %v3149 = vpop.xlane.xlu0 %3148
      %v3150 = vsel %vm792, %v3079, 0.0
      %3151 = vadd.xlane.f32.xlu0 %v3150
      %v3152 = vpop.xlane.xlu0 %3151
      %v3153 = vsel %vm792, %v3081, 0.0
      %3154 = vadd.xlane.f32.xlu0 %v3153
      %v3155 = vpop.xlane.xlu0 %3154
      %v3156 = vsel %vm792, %v3083, 0.0
      %3157 = vadd.xlane.f32.xlu0 %v3156
      %v3158 = vpop.xlane.xlu0 %3157
      %v3159 = vsel %vm792, %v3085, 0.0
      %3160 = vadd.xlane.f32.xlu0 %v3159
      %v3161 = vpop.xlane.xlu0 %3160
      %v3162 = vsel %vm792, %v3087, 0.0
      %3163 = vadd.xlane.f32.xlu0 %v3162
      %v3164 = vpop.xlane.xlu0 %3163
      %v3165 = vsel %vm792, %v3089, 0.0
      %3166 = vadd.xlane.f32.xlu0 %v3165
      %v3167 = vpop.xlane.xlu0 %3166
      %v3168 = vsel %vm792, %v3091, 0.0
      %3169 = vadd.xlane.f32.xlu0 %v3168
      %v3170 = vpop.xlane.xlu0 %3169
      %v3171 = vsel %vm792, %v3093, 0.0
      %3172 = vadd.xlane.f32.xlu0 %v3171
      %v3173 = vpop.xlane.xlu0 %3172
      %v3174 = vsel %vm792, %v3095, 0.0
      %3175 = vadd.xlane.f32.xlu0 %v3174
      %v3176 = vpop.xlane.xlu0 %3175
      %v3177 = vsel %vm792, %v3097, 0.0
      %3178 = vadd.xlane.f32.xlu0 %v3177
      %v3179 = vpop.xlane.xlu0 %3178
      %v3180 = vsel %vm792, %v3099, 0.0
      %3181 = vadd.xlane.f32.xlu0 %v3180
      %v3182 = vpop.xlane.xlu0 %3181
      %v3183 = vsel %vm792, %v3101, 0.0
      %3184 = vadd.xlane.f32.xlu0 %v3183
      %v3185 = vpop.xlane.xlu0 %3184
      %v3186 = vsel %vm792, %v3103, 0.0
      %3187 = vadd.xlane.f32.xlu0 %v3186
      %v3188 = vpop.xlane.xlu0 %3187
      %v3189 = vsel %vm792, %v3105, 0.0
      %3190 = vadd.xlane.f32.xlu0 %v3189
      %v3191 = vpop.xlane.xlu0 %3190
      %v3192 = vsel %vm792, %v3107, 0.0
      %3193 = vadd.xlane.f32.xlu0 %v3192
      %v3194 = vpop.xlane.xlu0 %3193
      %v3195 = vsel %vm792, %v3109, 0.0
      %3196 = vadd.xlane.f32.xlu0 %v3195
      %v3197 = vpop.xlane.xlu0 %3196
      %v3198 = vsel %vm792, %v3111, 0.0
      %3199 = vadd.xlane.f32.xlu0 %v3198
      %v3200 = vpop.xlane.xlu0 %3199
      %v3201 = vsel %vm792, %v3113, 0.0
      %3202 = vadd.xlane.f32.xlu0 %v3201
      %v3203 = vpop.xlane.xlu0 %3202
      %v3204 = vsel %vm792, %v3115, 0.0
      %3205 = vadd.xlane.f32.xlu0 %v3204
      %v3206 = vpop.xlane.xlu0 %3205
      %v3207 = vsel %vm792, %v3117, 0.0
      %3208 = vadd.xlane.f32.xlu0 %v3207
      %v3209 = vpop.xlane.xlu0 %3208
      %v3210 = vsel %vm792, %v3119, 0.0
      %3211 = vadd.xlane.f32.xlu0 %v3210
      %v3212 = vpop.xlane.xlu0 %3211
      %v3213 = vsel %vm792, %v3121, 0.0
      %3214 = vadd.xlane.f32.xlu0 %v3213
      %v3215 = vpop.xlane.xlu0 %3214
      %v3216 = vsel %vm792, %v3123, 0.0
      %3217 = vadd.xlane.f32.xlu0 %v3216
      %v3218 = vpop.xlane.xlu0 %3217
      %v3219 = vsel %vm792, %v3125, 0.0
      %3220 = vadd.xlane.f32.xlu0 %v3219
      %v3221 = vpop.xlane.xlu0 %3220
      %v3222 = vrcp.pop %v3128
      %v3223 = vmul.f32 %v3063, %v3222
      %v3224 = vrcp.pop %v3131
      %v3225 = vmul.f32 %v3065, %v3224
      %v3226 = vrcp.pop %v3134
      %v3227 = vmul.f32 %v3067, %v3226
      %v3228 = vrcp.pop %v3137
      %v3229 = vmul.f32 %v3069, %v3228
      %v3230 = vrcp.pop %v3140
      %v3231 = vmul.f32 %v3071, %v3230
      %v3232 = vrcp.pop %v3143
      %v3233 = vmul.f32 %v3073, %v3232
      %v3234 = vrcp.pop %v3146
      %v3235 = vmul.f32 %v3075, %v3234
      %v3236 = vrcp.pop %v3149
      %v3237 = vmul.f32 %v3077, %v3236
      %v3238 = vrcp.pop %v3152
      %v3239 = vmul.f32 %v3079, %v3238
      %v3240 = vrcp.pop %v3155
      %v3241 = vmul.f32 %v3081, %v3240
      %v3242 = vrcp.pop %v3158
      %v3243 = vmul.f32 %v3083, %v3242
      %v3244 = vrcp.pop %v3161
      %v3245 = vmul.f32 %v3085, %v3244
      %v3246 = vrcp.pop %v3164
      %v3247 = vmul.f32 %v3087, %v3246
      %v3248 = vrcp.pop %v3167
      %v3249 = vmul.f32 %v3089, %v3248
      %v3250 = vrcp.pop %v3170
      %v3251 = vmul.f32 %v3091, %v3250
      %v3252 = vrcp.pop %v3173
      %v3253 = vmul.f32 %v3093, %v3252
      %v3254 = vrcp.pop %v3176
      %v3255 = vmul.f32 %v3095, %v3254
      %v3256 = vrcp.pop %v3179
      %v3257 = vmul.f32 %v3097, %v3256
      %v3258 = vrcp.pop %v3182
      %v3259 = vmul.f32 %v3099, %v3258
      %v3260 = vrcp.pop %v3185
      %v3261 = vmul.f32 %v3101, %v3260
      %v3262 = vrcp.pop %v3188
      %v3263 = vmul.f32 %v3103, %v3262
      %v3264 = vrcp.pop %v3191
      %v3265 = vmul.f32 %v3105, %v3264
      %v3266 = vrcp.pop %v3194
      %v3267 = vmul.f32 %v3107, %v3266
      %v3268 = vrcp.pop %v3197
      %v3269 = vmul.f32 %v3109, %v3268
      %v3270 = vrcp.pop %v3200
      %v3271 = vmul.f32 %v3111, %v3270
      %v3272 = vrcp.pop %v3203
      %v3273 = vmul.f32 %v3113, %v3272
      %v3274 = vrcp.pop %v3206
      %v3275 = vmul.f32 %v3115, %v3274
      %v3276 = vrcp.pop %v3209
      %v3277 = vmul.f32 %v3117, %v3276
      %v3278 = vrcp.pop %v3212
      %v3279 = vmul.f32 %v3119, %v3278
      %v3280 = vrcp.pop %v3215
      %v3281 = vmul.f32 %v3121, %v3280
      %v3282 = vrcp.pop %v3218
      %v3283 = vmul.f32 %v3123, %v3282
      %v3284 = vrcp.pop %v3221
      %v3285 = vmul.f32 %v3125, %v3284
      %v3286 = vpack.c.bf16 %v3225, %v3223
      %v3287 = vpack.c.bf16 %v3229, %v3227
      %v3288 = vpack.c.bf16 %v3233, %v3231
      %v3289 = vpack.c.bf16 %v3237, %v3235
      %v3290 = vpack.c.bf16 %v3241, %v3239
      %v3291 = vpack.c.bf16 %v3245, %v3243
      %v3292 = vpack.c.bf16 %v3249, %v3247
      %v3293 = vpack.c.bf16 %v3253, %v3251
      %v3294 = vpack.c.bf16 %v3257, %v3255
      %v3295 = vpack.c.bf16 %v3261, %v3259
      %v3296 = vpack.c.bf16 %v3265, %v3263
      %v3297 = vpack.c.bf16 %v3269, %v3267
      %v3298 = vpack.c.bf16 %v3273, %v3271
      %v3299 = vpack.c.bf16 %v3277, %v3275
      %v3300 = vpack.c.bf16 %v3281, %v3279
      %v3301 = vpack.c.bf16 %v3285, %v3283
      %v3303 = vsel %vm792, %v3286, 0
      %v3306 = vsel %vm792, %v3287, 0
      %v3309 = vsel %vm792, %v3288, 0
      %v3312 = vsel %vm792, %v3289, 0
      %v3315 = vsel %vm792, %v3290, 0
      %v3318 = vsel %vm792, %v3291, 0
      %v3321 = vsel %vm792, %v3292, 0
      %v3324 = vsel %vm792, %v3293, 0
      %v3327 = vsel %vm792, %v3294, 0
      %v3330 = vsel %vm792, %v3295, 0
      %v3333 = vsel %vm792, %v3296, 0
      %v3336 = vsel %vm792, %v3297, 0
      %v3339 = vsel %vm792, %v3298, 0
      %v3342 = vsel %vm792, %v3299, 0
      %v3345 = vsel %vm792, %v3300, 0
      %v3348 = vsel %vm792, %v3301, 0
      %3350 = vmatprep.subr.bf16.mxu0 0
      %3351 = vmatpush1.bf16.msra.mxu0 0
      %3352 = vmatprep.subr.bf16.mxu0 0
      %3353 = vmatpush1.bf16.msra.mxu0 0
      %3354 = vmatprep.subr.bf16.mxu0 0
      %3355 = vmatpush1.bf16.msra.mxu0 0
      %3356 = vmatprep.subr.bf16.mxu0 0
      %3357 = vmatpush1.bf16.msra.mxu0 0
      %3358 = vmatprep.subr.bf16.mxu0 0
      %3359 = vmatpush1.bf16.msra.mxu0 0
      %3360 = vmatprep.subr.bf16.mxu0 0
      %3361 = vmatpush1.bf16.msra.mxu0 0
      %3362 = vmatprep.subr.bf16.mxu0 0
      %3363 = vmatpush1.bf16.msra.mxu0 0
      %3364 = vmatprep.subr.bf16.mxu0 %v801
      %3365 = vmatpush1.bf16.msra.mxu0 %v798
      %3366 = vmatprep.subr.bf16.mxu0 0
      %3367 = vmatpush2.bf16.msra.mxu0 0
      %3368 = vmatprep.subr.bf16.mxu0 0
      %3369 = vmatpush2.bf16.msra.mxu0 0
      %3370 = vmatprep.subr.bf16.mxu0 0
      %3371 = vmatpush2.bf16.msra.mxu0 0
      %3372 = vmatprep.subr.bf16.mxu0 0
      %3373 = vmatpush2.bf16.msra.mxu0 0
      %3374 = vmatprep.subr.bf16.mxu0 0
      %3375 = vmatpush2.bf16.msra.mxu0 0
      %3376 = vmatprep.subr.bf16.mxu0 0
      %3377 = vmatpush2.bf16.msra.mxu0 0
      %3378 = vmatprep.subr.bf16.mxu0 0
      %3379 = vmatpush2.bf16.msra.mxu0 0
      %3380 = vmatprep.subr.bf16.mxu0 0
      %3381 = vmatpush2.bf16.msra.mxu0 0
      %3382 = vmatprep.mubr.bf16.mxu0 0
      %3383 = vmatmul.mubr.bf16.gmra.mxu0 %v3303
      %v3384 = vpop.f32.mrf.mxu0
      %v3385 = vadd.f32 0.0, %v3384
      %v3386 = vpop.f32.mrf.mxu0
      %v3387 = vadd.f32 0.0, %v3386
      %v3388 = vpop.f32.mrf.mxu0
      %v3389 = vadd.f32 0.0, %v3388
      %v3390 = vpop.f32.mrf.mxu0
      %v3391 = vadd.f32 0.0, %v3390
      %3392 = vmatprep.mubr.bf16.mxu0 0
      %3393 = vmatmul.mubr.bf16.gmra.mxu0 %v3306
      %v3394 = vpop.f32.mrf.mxu0
      %v3395 = vadd.f32 0.0, %v3394
      %v3396 = vpop.f32.mrf.mxu0
      %v3397 = vadd.f32 0.0, %v3396
      %v3398 = vpop.f32.mrf.mxu0
      %v3399 = vadd.f32 0.0, %v3398
      %v3400 = vpop.f32.mrf.mxu0
      %v3401 = vadd.f32 0.0, %v3400
      %3402 = vmatprep.mubr.bf16.mxu0 0
      %3403 = vmatmul.mubr.bf16.gmra.mxu0 %v3309
      %v3404 = vpop.f32.mrf.mxu0
      %v3405 = vadd.f32 0.0, %v3404
      %v3406 = vpop.f32.mrf.mxu0
      %v3407 = vadd.f32 0.0, %v3406
      %v3408 = vpop.f32.mrf.mxu0
      %v3409 = vadd.f32 0.0, %v3408
      %v3410 = vpop.f32.mrf.mxu0
      %v3411 = vadd.f32 0.0, %v3410
      %3412 = vmatprep.mubr.bf16.mxu0 0
      %3413 = vmatmul.mubr.bf16.gmra.mxu0 %v3312
      %v3414 = vpop.f32.mrf.mxu0
      %v3415 = vadd.f32 0.0, %v3414
      %v3416 = vpop.f32.mrf.mxu0
      %v3417 = vadd.f32 0.0, %v3416
      %v3418 = vpop.f32.mrf.mxu0
      %v3419 = vadd.f32 0.0, %v3418
      %v3420 = vpop.f32.mrf.mxu0
      %v3421 = vadd.f32 0.0, %v3420
      %3422 = vmatprep.mubr.bf16.mxu0 0
      %3423 = vmatmul.mubr.bf16.gmra.mxu0 %v3315
      %v3424 = vpop.f32.mrf.mxu0
      %v3425 = vadd.f32 0.0, %v3424
      %v3426 = vpop.f32.mrf.mxu0
      %v3427 = vadd.f32 0.0, %v3426
      %v3428 = vpop.f32.mrf.mxu0
      %v3429 = vadd.f32 0.0, %v3428
      %v3430 = vpop.f32.mrf.mxu0
      %v3431 = vadd.f32 0.0, %v3430
      %3432 = vmatprep.mubr.bf16.mxu0 0
      %3433 = vmatmul.mubr.bf16.gmra.mxu0 %v3318
      %v3434 = vpop.f32.mrf.mxu0
      %v3435 = vadd.f32 0.0, %v3434
      %v3436 = vpop.f32.mrf.mxu0
      %v3437 = vadd.f32 0.0, %v3436
      %v3438 = vpop.f32.mrf.mxu0
      %v3439 = vadd.f32 0.0, %v3438
      %v3440 = vpop.f32.mrf.mxu0
      %v3441 = vadd.f32 0.0, %v3440
      %3442 = vmatprep.mubr.bf16.mxu0 0
      %3443 = vmatmul.mubr.bf16.gmra.mxu0 %v3321
      %v3444 = vpop.f32.mrf.mxu0
      %v3445 = vadd.f32 0.0, %v3444
      %v3446 = vpop.f32.mrf.mxu0
      %v3447 = vadd.f32 0.0, %v3446
      %v3448 = vpop.f32.mrf.mxu0
      %v3449 = vadd.f32 0.0, %v3448
      %v3450 = vpop.f32.mrf.mxu0
      %v3451 = vadd.f32 0.0, %v3450
      %3452 = vmatprep.mubr.bf16.mxu0 0
      %3453 = vmatmul.mubr.bf16.gmra.mxu0 %v3324
      %v3454 = vpop.f32.mrf.mxu0
      %v3455 = vadd.f32 0.0, %v3454
      %v3456 = vpop.f32.mrf.mxu0
      %v3457 = vadd.f32 0.0, %v3456
      %v3458 = vpop.f32.mrf.mxu0
      %v3459 = vadd.f32 0.0, %v3458
      %v3460 = vpop.f32.mrf.mxu0
      %v3461 = vadd.f32 0.0, %v3460
      %3462 = vmatprep.mubr.bf16.mxu0 0
      %3463 = vmatmul.mubr.bf16.gmra.mxu0 %v3327
      %v3464 = vpop.f32.mrf.mxu0
      %v3465 = vadd.f32 0.0, %v3464
      %v3466 = vpop.f32.mrf.mxu0
      %v3467 = vadd.f32 0.0, %v3466
      %v3468 = vpop.f32.mrf.mxu0
      %v3469 = vadd.f32 0.0, %v3468
      %v3470 = vpop.f32.mrf.mxu0
      %v3471 = vadd.f32 0.0, %v3470
      %3472 = vmatprep.mubr.bf16.mxu0 0
      %3473 = vmatmul.mubr.bf16.gmra.mxu0 %v3330
      %v3474 = vpop.f32.mrf.mxu0
      %v3475 = vadd.f32 0.0, %v3474
      %v3476 = vpop.f32.mrf.mxu0
      %v3477 = vadd.f32 0.0, %v3476
      %v3478 = vpop.f32.mrf.mxu0
      %v3479 = vadd.f32 0.0, %v3478
      %v3480 = vpop.f32.mrf.mxu0
      %v3481 = vadd.f32 0.0, %v3480
      %3482 = vmatprep.mubr.bf16.mxu0 0
      %3483 = vmatmul.mubr.bf16.gmra.mxu0 %v3333
      %v3484 = vpop.f32.mrf.mxu0
      %v3485 = vadd.f32 0.0, %v3484
      %v3486 = vpop.f32.mrf.mxu0
      %v3487 = vadd.f32 0.0, %v3486
      %v3488 = vpop.f32.mrf.mxu0
      %v3489 = vadd.f32 0.0, %v3488
      %v3490 = vpop.f32.mrf.mxu0
      %v3491 = vadd.f32 0.0, %v3490
      %3492 = vmatprep.mubr.bf16.mxu0 0
      %3493 = vmatmul.mubr.bf16.gmra.mxu0 %v3336
      %v3494 = vpop.f32.mrf.mxu0
      %v3495 = vadd.f32 0.0, %v3494
      %v3496 = vpop.f32.mrf.mxu0
      %v3497 = vadd.f32 0.0, %v3496
      %v3498 = vpop.f32.mrf.mxu0
      %v3499 = vadd.f32 0.0, %v3498
      %v3500 = vpop.f32.mrf.mxu0
      %v3501 = vadd.f32 0.0, %v3500
      %3502 = vmatprep.mubr.bf16.mxu0 0
      %3503 = vmatmul.mubr.bf16.gmra.mxu0 %v3339
      %v3504 = vpop.f32.mrf.mxu0
      %v3505 = vadd.f32 0.0, %v3504
      %v3506 = vpop.f32.mrf.mxu0
      %v3507 = vadd.f32 0.0, %v3506
      %v3508 = vpop.f32.mrf.mxu0
      %v3509 = vadd.f32 0.0, %v3508
      %v3510 = vpop.f32.mrf.mxu0
      %v3511 = vadd.f32 0.0, %v3510
      %3512 = vmatprep.mubr.bf16.mxu0 0
      %3513 = vmatmul.mubr.bf16.gmra.mxu0 %v3342
      %v3514 = vpop.f32.mrf.mxu0
      %v3515 = vadd.f32 0.0, %v3514
      %v3516 = vpop.f32.mrf.mxu0
      %v3517 = vadd.f32 0.0, %v3516
      %v3518 = vpop.f32.mrf.mxu0
      %v3519 = vadd.f32 0.0, %v3518
      %v3520 = vpop.f32.mrf.mxu0
      %v3521 = vadd.f32 0.0, %v3520
      %3522 = vmatprep.mubr.bf16.mxu0 0
      %3523 = vmatmul.mubr.bf16.gmra.mxu0 %v3345
      %v3524 = vpop.f32.mrf.mxu0
      %v3525 = vadd.f32 0.0, %v3524
      %v3526 = vpop.f32.mrf.mxu0
      %v3527 = vadd.f32 0.0, %v3526
      %v3528 = vpop.f32.mrf.mxu0
      %v3529 = vadd.f32 0.0, %v3528
      %v3530 = vpop.f32.mrf.mxu0
      %v3531 = vadd.f32 0.0, %v3530
      %3532 = vmatprep.mubr.bf16.mxu0 0
      %3533 = vmatmul.mubr.bf16.gmra.mxu0 %v3348
      %v3534 = vpop.f32.mrf.mxu0
      %v3535 = vadd.f32 0.0, %v3534
      %v3536 = vpop.f32.mrf.mxu0
      %v3537 = vadd.f32 0.0, %v3536
      %v3538 = vpop.f32.mrf.mxu0
      %v3539 = vadd.f32 0.0, %v3538
      %v3540 = vpop.f32.mrf.mxu0
      %v3541 = vadd.f32 0.0, %v3540
      %3542 = vdwg.mxu0
      %v3543 = vmul.f32 %v3385, %v320
      %v3544 = vmul.f32 %v3387, %v321
      %v3545 = vmul.f32 %v3389, %v322
      %v3546 = vmul.f32 %v3391, %v323
      %v3547 = vmul.f32 %v3395, %v324
      %v3548 = vmul.f32 %v3397, %v325
      %v3549 = vmul.f32 %v3399, %v326
      %v3550 = vmul.f32 %v3401, %v327
      %v3551 = vmul.f32 %v3405, %v328
      %v3552 = vmul.f32 %v3407, %v329
      %v3553 = vmul.f32 %v3409, %v330
      %v3554 = vmul.f32 %v3411, %v331
      %v3555 = vmul.f32 %v3415, %v332
      %v3556 = vmul.f32 %v3417, %v333
      %v3557 = vmul.f32 %v3419, %v334
      %v3558 = vmul.f32 %v3421, %v335
      %v3559 = vmul.f32 %v3425, %v336
      %v3560 = vmul.f32 %v3427, %v337
      %v3561 = vmul.f32 %v3429, %v338
      %v3562 = vmul.f32 %v3431, %v339
      %v3563 = vmul.f32 %v3435, %v340
      %v3564 = vmul.f32 %v3437, %v341
      %v3565 = vmul.f32 %v3439, %v342
      %v3566 = vmul.f32 %v3441, %v343
      %v3567 = vmul.f32 %v3445, %v344
      %v3568 = vmul.f32 %v3447, %v345
      %v3569 = vmul.f32 %v3449, %v346
      %v3570 = vmul.f32 %v3451, %v347
      %v3571 = vmul.f32 %v3455, %v348
      %v3572 = vmul.f32 %v3457, %v349
      %v3573 = vmul.f32 %v3459, %v350
      %v3574 = vmul.f32 %v3461, %v351
      %v3575 = vmul.f32 %v3465, %v352
      %v3576 = vmul.f32 %v3467, %v353
      %v3577 = vmul.f32 %v3469, %v354
      %v3578 = vmul.f32 %v3471, %v355
      %v3579 = vmul.f32 %v3475, %v356
      %v3580 = vmul.f32 %v3477, %v357
      %v3581 = vmul.f32 %v3479, %v358
      %v3582 = vmul.f32 %v3481, %v359
      %v3583 = vmul.f32 %v3485, %v360
      %v3584 = vmul.f32 %v3487, %v361
      %v3585 = vmul.f32 %v3489, %v362
      %v3586 = vmul.f32 %v3491, %v363
      %v3587 = vmul.f32 %v3495, %v364
      %v3588 = vmul.f32 %v3497, %v365
      %v3589 = vmul.f32 %v3499, %v366
      %v3590 = vmul.f32 %v3501, %v367
      %v3591 = vmul.f32 %v3505, %v368
      %v3592 = vmul.f32 %v3507, %v369
      %v3593 = vmul.f32 %v3509, %v370
      %v3594 = vmul.f32 %v3511, %v371
      %v3595 = vmul.f32 %v3515, %v372
      %v3596 = vmul.f32 %v3517, %v373
      %v3597 = vmul.f32 %v3519, %v374
      %v3598 = vmul.f32 %v3521, %v375
      %v3599 = vmul.f32 %v3525, %v376
      %v3600 = vmul.f32 %v3527, %v377
      %v3601 = vmul.f32 %v3529, %v378
      %v3602 = vmul.f32 %v3531, %v379
      %v3603 = vmul.f32 %v3535, %v380
      %v3604 = vmul.f32 %v3537, %v381
      %v3605 = vmul.f32 %v3539, %v382
      %v3606 = vmul.f32 %v3541, %v383
      %v3607 = vpack.c.bf16 %v3545, %v3543
      %v3608 = vpack.c.bf16 %v3546, %v3544
      %v3609 = vpack.c.bf16 %v3549, %v3547
      %v3610 = vpack.c.bf16 %v3550, %v3548
      %v3611 = vpack.c.bf16 %v3553, %v3551
      %v3612 = vpack.c.bf16 %v3554, %v3552
      %v3613 = vpack.c.bf16 %v3557, %v3555
      %v3614 = vpack.c.bf16 %v3558, %v3556
      %v3615 = vpack.c.bf16 %v3561, %v3559
      %v3616 = vpack.c.bf16 %v3562, %v3560
      %v3617 = vpack.c.bf16 %v3565, %v3563
      %v3618 = vpack.c.bf16 %v3566, %v3564
      %v3619 = vpack.c.bf16 %v3569, %v3567
      %v3620 = vpack.c.bf16 %v3570, %v3568
      %v3621 = vpack.c.bf16 %v3573, %v3571
      %v3622 = vpack.c.bf16 %v3574, %v3572
      %v3623 = vpack.c.bf16 %v3577, %v3575
      %v3624 = vpack.c.bf16 %v3578, %v3576
      %v3625 = vpack.c.bf16 %v3581, %v3579
      %v3626 = vpack.c.bf16 %v3582, %v3580
      %v3627 = vpack.c.bf16 %v3585, %v3583
      %v3628 = vpack.c.bf16 %v3586, %v3584
      %v3629 = vpack.c.bf16 %v3589, %v3587
      %v3630 = vpack.c.bf16 %v3590, %v3588
      %v3631 = vpack.c.bf16 %v3593, %v3591
      %v3632 = vpack.c.bf16 %v3594, %v3592
      %v3633 = vpack.c.bf16 %v3597, %v3595
      %v3634 = vpack.c.bf16 %v3598, %v3596
      %v3635 = vpack.c.bf16 %v3601, %v3599
      %v3636 = vpack.c.bf16 %v3602, %v3600
      %v3637 = vpack.c.bf16 %v3605, %v3603
      %v3638 = vpack.c.bf16 %v3606, %v3604
      %3639 = vmatprep.subr.bf16.mxu0 %v3622
      %3640 = vmatpush1.bf16.msra.mxu0 %v3621
      %3641 = vmatprep.subr.bf16.mxu0 %v3620
      %3642 = vmatpush1.bf16.msra.mxu0 %v3619
      %3643 = vmatprep.subr.bf16.mxu0 %v3618
      %3644 = vmatpush1.bf16.msra.mxu0 %v3617
      %3645 = vmatprep.subr.bf16.mxu0 %v3616
      %3646 = vmatpush1.bf16.msra.mxu0 %v3615
      %3647 = vmatprep.subr.bf16.mxu0 %v3614
      %3648 = vmatpush1.bf16.msra.mxu0 %v3613
      %3649 = vmatprep.subr.bf16.mxu0 %v3612
      %3650 = vmatpush1.bf16.msra.mxu0 %v3611
      %3651 = vmatprep.subr.bf16.mxu0 %v3610
      %3652 = vmatpush1.bf16.msra.mxu0 %v3609
      %3653 = vmatprep.subr.bf16.mxu0 %v3608
      %3654 = vmatpush1.bf16.msra.mxu0 %v3607
      %3655 = vmatprep.subr.bf16.mxu0 %v3638
      %3656 = vmatpush2.bf16.msra.mxu0 %v3637
      %3657 = vmatprep.subr.bf16.mxu0 %v3636
      %3658 = vmatpush2.bf16.msra.mxu0 %v3635
      %3659 = vmatprep.subr.bf16.mxu0 %v3634
      %3660 = vmatpush2.bf16.msra.mxu0 %v3633
      %3661 = vmatprep.subr.bf16.mxu0 %v3632
      %3662 = vmatpush2.bf16.msra.mxu0 %v3631
      %3663 = vmatprep.subr.bf16.mxu0 %v3630
      %3664 = vmatpush2.bf16.msra.mxu0 %v3629
      %3665 = vmatprep.subr.bf16.mxu0 %v3628
      %3666 = vmatpush2.bf16.msra.mxu0 %v3627
      %3667 = vmatprep.subr.bf16.mxu0 %v3626
      %3668 = vmatpush2.bf16.msra.mxu0 %v3625
      %3669 = vmatprep.subr.bf16.mxu0 %v3624
      %3670 = vmatpush2.bf16.msra.mxu0 %v3623
      %3671 = vmatprep.mubr.bf16.mxu0 %v621
      %3672 = vmatmul.mubr.bf16.gmra.mxu0 %v614
      %v3673 = vpop.f32.mrf.mxu0
      %v3674 = vadd.f32 0.0, %v3673
      %v3675 = vpop.f32.mrf.mxu0
      %v3676 = vadd.f32 0.0, %v3675
      %v3677 = vpop.f32.mrf.mxu0
      %v3678 = vpop.f32.mrf.mxu0
      %3679 = vdwg.mxu0
      %v3680 = vmul.f32 %v3674, %v3674
      %v3681 = vmul.f32 %v3676, %v3676
      %v3682 = vpack.c.bf16 %v3680, %v3680
      %v3683 = vpack.c.bf16 %v3681, %v3681
      %v3685 = vsel %vm729, %v3683, 0
      %3687 = vmatprep.subr.bf16.mxu0 0
      %3688 = vmatpush1.bf16.msra.mxu0 %v716
      %3689 = vmatprep.subr.bf16.mxu0 0
      %3690 = vmatpush1.bf16.msra.mxu0 %v715
      %3691 = vmatprep.subr.bf16.mxu0 0
      %3692 = vmatpush1.bf16.msra.mxu0 %v714
      %3693 = vmatprep.subr.bf16.mxu0 0
      %3694 = vmatpush1.bf16.msra.mxu0 %v713
      %3695 = vmatprep.subr.bf16.mxu0 0
      %3696 = vmatpush1.bf16.msra.mxu0 %v712
      %3697 = vmatprep.subr.bf16.mxu0 0
      %3698 = vmatpush1.bf16.msra.mxu0 %v711
      %3699 = vmatprep.subr.bf16.mxu0 0
      %3700 = vmatpush1.bf16.msra.mxu0 %v710
      %3701 = vmatprep.subr.bf16.mxu0 0
      %3702 = vmatpush1.bf16.msra.mxu0 %v709
      %3703 = vmatprep.subr.bf16.mxu0 0
      %3704 = vmatpush2.bf16.msra.mxu0 0
      %3705 = vmatprep.subr.bf16.mxu0 0
      %3706 = vmatpush2.bf16.msra.mxu0 0
      %3707 = vmatprep.subr.bf16.mxu0 0
      %3708 = vmatpush2.bf16.msra.mxu0 0
      %3709 = vmatprep.subr.bf16.mxu0 0
      %3710 = vmatpush2.bf16.msra.mxu0 0
      %3711 = vmatprep.subr.bf16.mxu0 0
      %3712 = vmatpush2.bf16.msra.mxu0 0
      %3713 = vmatprep.subr.bf16.mxu0 0
      %3714 = vmatpush2.bf16.msra.mxu0 0
      %3715 = vmatprep.subr.bf16.mxu0 0
      %3716 = vmatpush2.bf16.msra.mxu0 %v718
      %3717 = vmatprep.subr.bf16.mxu0 0
      %3718 = vmatpush2.bf16.msra.mxu0 %v717
      %3719 = vmatprep.mubr.bf16.mxu0 %v3685
      %3720 = vmatmul.mubr.bf16.gmra.mxu0 %v3682
      %v3721 = vpop.f32.mrf.mxu0
      %v3722 = vadd.f32 0.0, %v3721
      %v3723 = vpop.f32.mrf.mxu0
      %v3724 = vpop.f32.mrf.mxu0
      %v3725 = vpop.f32.mrf.mxu0
      %3726 = vdwg.mxu0
      %v3727 = vrsqrt.pop %v3722
      %v3728 = vmul.f32 %v3722, %v3727
      %vm3729 = vcmp.eq.f32.partialorder %v3722, inf
      %v3730 = vsel %vm3729, %v3722, %v3728
      %vm3731 = vcmp.eq.f32.partialorder %v3722, 0.0
      %v3732 = vand.u32 %v3722, 2147483648
      %v3733 = vsel %vm3731, %v3732, %v3730
      %v3734 = vadd.f32 %v3722, 1.0
      %v3735 = vrcp.pop %v3734
      %v3736 = vmul.f32 %v3733, %v3735
      %v3737 = vpack.c.bf16 %v3736, %v3736
      %v3739 = vsel %vm792, %v3737, 0
      %3741 = vmatprep.subr.bf16.mxu0 0
      %3742 = vmatpush1.bf16.msra.mxu0 0
      %3743 = vmatprep.subr.bf16.mxu0 0
      %3744 = vmatpush1.bf16.msra.mxu0 0
      %3745 = vmatprep.subr.bf16.mxu0 0
      %3746 = vmatpush1.bf16.msra.mxu0 0
      %3747 = vmatprep.subr.bf16.mxu0 0
      %3748 = vmatpush1.bf16.msra.mxu0 0
      %3749 = vmatprep.subr.bf16.mxu0 0
      %3750 = vmatpush1.bf16.msra.mxu0 0
      %3751 = vmatprep.subr.bf16.mxu0 0
      %3752 = vmatpush1.bf16.msra.mxu0 0
      %3753 = vmatprep.subr.bf16.mxu0 0
      %3754 = vmatpush1.bf16.msra.mxu0 0
      %3755 = vmatprep.subr.bf16.mxu0 %v801
      %3756 = vmatpush1.bf16.msra.mxu0 %v798
      %3757 = vmatprep.subr.bf16.mxu0 0
      %3758 = vmatpush2.bf16.msra.mxu0 0
      %3759 = vmatprep.subr.bf16.mxu0 0
      %3760 = vmatpush2.bf16.msra.mxu0 0
      %3761 = vmatprep.subr.bf16.mxu0 0
      %3762 = vmatpush2.bf16.msra.mxu0 0
      %3763 = vmatprep.subr.bf16.mxu0 0
      %3764 = vmatpush2.bf16.msra.mxu0 0
      %3765 = vmatprep.subr.bf16.mxu0 0
      %3766 = vmatpush2.bf16.msra.mxu0 0
      %3767 = vmatprep.subr.bf16.mxu0 0
      %3768 = vmatpush2.bf16.msra.mxu0 0
      %3769 = vmatprep.subr.bf16.mxu0 0
      %3770 = vmatpush2.bf16.msra.mxu0 0
      %3771 = vmatprep.subr.bf16.mxu0 0
      %3772 = vmatpush2.bf16.msra.mxu0 0
      %3773 = vmatprep.mubr.bf16.mxu0 0
      %3774 = vmatmul.mubr.bf16.gmra.mxu0 %v3739
      %v3775 = vpop.f32.mrf.mxu0
      %v3776 = vadd.f32 0.0, %v3775
      %v3777 = vpop.f32.mrf.mxu0
      %v3778 = vadd.f32 0.0, %v3777
      %v3779 = vpop.f32.mrf.mxu0
      %v3780 = vpop.f32.mrf.mxu0
      %3781 = vdwg.mxu0
      %v3782 = vmul.f32 %v3674, %v3776
      %v3783 = vmul.f32 %v3676, %v3778
      %v3784 = vpack.c.bf16 %v3782, %v3782
      %v3785 = vpack.c.bf16 %v3783, %v3783
      %v3787 = vsel %vm1009, %v3784, 0
      %v3790 = vsel %vm1009, %v3785, 0
      %3792 = vmatprep.subr.bf16.mxu0 0
      %3793 = vmatpush1.bf16.msra.mxu0 0
      %3794 = vmatprep.subr.bf16.mxu0 0
      %3795 = vmatpush1.bf16.msra.mxu0 0
      %3796 = vmatprep.subr.bf16.mxu0 0
      %3797 = vmatpush1.bf16.msra.mxu0 0
      %3798 = vmatprep.subr.bf16.mxu0 0
      %3799 = vmatpush1.bf16.msra.mxu0 0
      %3800 = vmatprep.subr.bf16.mxu0 0
      %3801 = vmatpush1.bf16.msra.mxu0 0
      %3802 = vmatprep.subr.bf16.mxu0 0
      %3803 = vmatpush1.bf16.msra.mxu0 0
      %3804 = vmatprep.subr.bf16.mxu0 0
      %3805 = vmatpush1.bf16.msra.mxu0 0
      %3806 = vmatprep.subr.bf16.mxu0 %v3790
      %3807 = vmatpush1.bf16.msra.mxu0 %v3787
      %3808 = vmatprep.subr.bf16.mxu0 0
      %3809 = vmatpush2.bf16.msra.mxu0 0
      %3810 = vmatprep.subr.bf16.mxu0 0
      %3811 = vmatpush2.bf16.msra.mxu0 0
      %3812 = vmatprep.subr.bf16.mxu0 0
      %3813 = vmatpush2.bf16.msra.mxu0 0
      %3814 = vmatprep.subr.bf16.mxu0 0
      %3815 = vmatpush2.bf16.msra.mxu0 0
      %3816 = vmatprep.subr.bf16.mxu0 0
      %3817 = vmatpush2.bf16.msra.mxu0 0
      %3818 = vmatprep.subr.bf16.mxu0 0
      %3819 = vmatpush2.bf16.msra.mxu0 0
      %3820 = vmatprep.subr.bf16.mxu0 0
      %3821 = vmatpush2.bf16.msra.mxu0 0
      %3822 = vmatprep.subr.bf16.mxu0 0
      %3823 = vmatpush2.bf16.msra.mxu0 0
      %3824 = vmatprep.mubr.bf16.mxu0 0
      %3825 = vmatmul.mubr.bf16.gmra.mxu0 %v962
      %v3826 = vpop.f32.mrf.mxu0
      %v3827 = vadd.f32 0.0, %v3826
      %v3828 = vpop.f32.mrf.mxu0
      %v3829 = vadd.f32 0.0, %v3828
      %v3830 = vpop.f32.mrf.mxu0
      %v3831 = vadd.f32 0.0, %v3830
      %v3832 = vpop.f32.mrf.mxu0
      %v3833 = vadd.f32 0.0, %v3832
      %3834 = vmatprep.mubr.bf16.mxu0 0
      %3835 = vmatmul.mubr.bf16.gmra.mxu0 %v965
      %v3836 = vpop.f32.mrf.mxu0
      %v3837 = vadd.f32 0.0, %v3836
      %v3838 = vpop.f32.mrf.mxu0
      %v3839 = vadd.f32 0.0, %v3838
      %v3840 = vpop.f32.mrf.mxu0
      %v3841 = vadd.f32 0.0, %v3840
      %v3842 = vpop.f32.mrf.mxu0
      %v3843 = vadd.f32 0.0, %v3842
      %3844 = vmatprep.mubr.bf16.mxu0 0
      %3845 = vmatmul.mubr.bf16.gmra.mxu0 %v968
      %v3846 = vpop.f32.mrf.mxu0
      %v3847 = vadd.f32 0.0, %v3846
      %v3848 = vpop.f32.mrf.mxu0
      %v3849 = vadd.f32 0.0, %v3848
      %v3850 = vpop.f32.mrf.mxu0
      %v3851 = vadd.f32 0.0, %v3850
      %v3852 = vpop.f32.mrf.mxu0
      %v3853 = vadd.f32 0.0, %v3852
      %3854 = vmatprep.mubr.bf16.mxu0 0
      %3855 = vmatmul.mubr.bf16.gmra.mxu0 %v971
      %v3856 = vpop.f32.mrf.mxu0
      %v3857 = vadd.f32 0.0, %v3856
      %v3858 = vpop.f32.mrf.mxu0
      %v3859 = vadd.f32 0.0, %v3858
      %v3860 = vpop.f32.mrf.mxu0
      %v3861 = vadd.f32 0.0, %v3860
      %v3862 = vpop.f32.mrf.mxu0
      %v3863 = vadd.f32 0.0, %v3862
      %3864 = vmatprep.mubr.bf16.mxu0 0
      %3865 = vmatmul.mubr.bf16.gmra.mxu0 %v974
      %v3866 = vpop.f32.mrf.mxu0
      %v3867 = vadd.f32 0.0, %v3866
      %v3868 = vpop.f32.mrf.mxu0
      %v3869 = vadd.f32 0.0, %v3868
      %v3870 = vpop.f32.mrf.mxu0
      %v3871 = vadd.f32 0.0, %v3870
      %v3872 = vpop.f32.mrf.mxu0
      %v3873 = vadd.f32 0.0, %v3872
      %3874 = vmatprep.mubr.bf16.mxu0 0
      %3875 = vmatmul.mubr.bf16.gmra.mxu0 %v977
      %v3876 = vpop.f32.mrf.mxu0
      %v3877 = vadd.f32 0.0, %v3876
      %v3878 = vpop.f32.mrf.mxu0
      %v3879 = vadd.f32 0.0, %v3878
      %v3880 = vpop.f32.mrf.mxu0
      %v3881 = vadd.f32 0.0, %v3880
      %v3882 = vpop.f32.mrf.mxu0
      %v3883 = vadd.f32 0.0, %v3882
      %3884 = vmatprep.mubr.bf16.mxu0 0
      %3885 = vmatmul.mubr.bf16.gmra.mxu0 %v980
      %v3886 = vpop.f32.mrf.mxu0
      %v3887 = vadd.f32 0.0, %v3886
      %v3888 = vpop.f32.mrf.mxu0
      %v3889 = vadd.f32 0.0, %v3888
      %v3890 = vpop.f32.mrf.mxu0
      %v3891 = vadd.f32 0.0, %v3890
      %v3892 = vpop.f32.mrf.mxu0
      %v3893 = vadd.f32 0.0, %v3892
      %3894 = vmatprep.mubr.bf16.mxu0 0
      %3895 = vmatmul.mubr.bf16.gmra.mxu0 %v983
      %v3896 = vpop.f32.mrf.mxu0
      %v3897 = vadd.f32 0.0, %v3896
      %v3898 = vpop.f32.mrf.mxu0
      %v3899 = vadd.f32 0.0, %v3898
      %v3900 = vpop.f32.mrf.mxu0
      %v3901 = vadd.f32 0.0, %v3900
      %v3902 = vpop.f32.mrf.mxu0
      %v3903 = vadd.f32 0.0, %v3902
      %3904 = vmatprep.mubr.bf16.mxu0 0
      %3905 = vmatmul.mubr.bf16.gmra.mxu0 %v986
      %v3906 = vpop.f32.mrf.mxu0
      %v3907 = vadd.f32 0.0, %v3906
      %v3908 = vpop.f32.mrf.mxu0
      %v3909 = vadd.f32 0.0, %v3908
      %v3910 = vpop.f32.mrf.mxu0
      %v3911 = vadd.f32 0.0, %v3910
      %v3912 = vpop.f32.mrf.mxu0
      %v3913 = vadd.f32 0.0, %v3912
      %3914 = vmatprep.mubr.bf16.mxu0 0
      %3915 = vmatmul.mubr.bf16.gmra.mxu0 %v989
      %v3916 = vpop.f32.mrf.mxu0
      %v3917 = vadd.f32 0.0, %v3916
      %v3918 = vpop.f32.mrf.mxu0
      %v3919 = vadd.f32 0.0, %v3918
      %v3920 = vpop.f32.mrf.mxu0
      %v3921 = vadd.f32 0.0, %v3920
      %v3922 = vpop.f32.mrf.mxu0
      %v3923 = vadd.f32 0.0, %v3922
      %3924 = vmatprep.mubr.bf16.mxu0 0
      %3925 = vmatmul.mubr.bf16.gmra.mxu0 %v992
      %v3926 = vpop.f32.mrf.mxu0
      %v3927 = vadd.f32 0.0, %v3926
      %v3928 = vpop.f32.mrf.mxu0
      %v3929 = vadd.f32 0.0, %v3928
      %v3930 = vpop.f32.mrf.mxu0
      %v3931 = vadd.f32 0.0, %v3930
      %v3932 = vpop.f32.mrf.mxu0
      %v3933 = vadd.f32 0.0, %v3932
      %3934 = vmatprep.mubr.bf16.mxu0 0
      %3935 = vmatmul.mubr.bf16.gmra.mxu0 %v995
      %v3936 = vpop.f32.mrf.mxu0
      %v3937 = vadd.f32 0.0, %v3936
      %v3938 = vpop.f32.mrf.mxu0
      %v3939 = vadd.f32 0.0, %v3938
      %v3940 = vpop.f32.mrf.mxu0
      %v3941 = vadd.f32 0.0, %v3940
      %v3942 = vpop.f32.mrf.mxu0
      %v3943 = vadd.f32 0.0, %v3942
      %3944 = vmatprep.mubr.bf16.mxu0 0
      %3945 = vmatmul.mubr.bf16.gmra.mxu0 %v998
      %v3946 = vpop.f32.mrf.mxu0
      %v3947 = vadd.f32 0.0, %v3946
      %v3948 = vpop.f32.mrf.mxu0
      %v3949 = vadd.f32 0.0, %v3948
      %v3950 = vpop.f32.mrf.mxu0
      %v3951 = vadd.f32 0.0, %v3950
      %v3952 = vpop.f32.mrf.mxu0
      %v3953 = vadd.f32 0.0, %v3952
      %3954 = vmatprep.mubr.bf16.mxu0 0
      %3955 = vmatmul.mubr.bf16.gmra.mxu0 %v1001
      %v3956 = vpop.f32.mrf.mxu0
      %v3957 = vadd.f32 0.0, %v3956
      %v3958 = vpop.f32.mrf.mxu0
      %v3959 = vadd.f32 0.0, %v3958
      %v3960 = vpop.f32.mrf.mxu0
      %v3961 = vadd.f32 0.0, %v3960
      %v3962 = vpop.f32.mrf.mxu0
      %v3963 = vadd.f32 0.0, %v3962
      %3964 = vmatprep.mubr.bf16.mxu0 0
      %3965 = vmatmul.mubr.bf16.gmra.mxu0 %v1004
      %v3966 = vpop.f32.mrf.mxu0
      %v3967 = vadd.f32 0.0, %v3966
      %v3968 = vpop.f32.mrf.mxu0
      %v3969 = vadd.f32 0.0, %v3968
      %v3970 = vpop.f32.mrf.mxu0
      %v3971 = vadd.f32 0.0, %v3970
      %v3972 = vpop.f32.mrf.mxu0
      %v3973 = vadd.f32 0.0, %v3972
      %3974 = vmatprep.mubr.bf16.mxu0 0
      %3975 = vmatmul.mubr.bf16.gmra.mxu0 %v1007
      %v3976 = vpop.f32.mrf.mxu0
      %v3977 = vadd.f32 0.0, %v3976
      %v3978 = vpop.f32.mrf.mxu0
      %v3979 = vadd.f32 0.0, %v3978
      %v3980 = vpop.f32.mrf.mxu0
      %v3981 = vadd.f32 0.0, %v3980
      %v3982 = vpop.f32.mrf.mxu0
      %v3983 = vadd.f32 0.0, %v3982
      %3984 = vdwg.mxu0
      %v3985 = vmul.f32 %v320, %v3827
      %v3986 = vmul.f32 %v321, %v3829
      %v3987 = vmul.f32 %v322, %v3831
      %v3988 = vmul.f32 %v323, %v3833
      %v3989 = vmul.f32 %v324, %v3837
      %v3990 = vmul.f32 %v325, %v3839
      %v3991 = vmul.f32 %v326, %v3841
      %v3992 = vmul.f32 %v327, %v3843
      %v3993 = vmul.f32 %v328, %v3847
      %v3994 = vmul.f32 %v329, %v3849
      %v3995 = vmul.f32 %v330, %v3851
      %v3996 = vmul.f32 %v331, %v3853
      %v3997 = vmul.f32 %v332, %v3857
      %v3998 = vmul.f32 %v333, %v3859
      %v3999 = vmul.f32 %v334, %v3861
      %v4000 = vmul.f32 %v335, %v3863
      %v4001 = vmul.f32 %v336, %v3867
      %v4002 = vmul.f32 %v337, %v3869
      %v4003 = vmul.f32 %v338, %v3871
      %v4004 = vmul.f32 %v339, %v3873
      %v4005 = vmul.f32 %v340, %v3877
      %v4006 = vmul.f32 %v341, %v3879
      %v4007 = vmul.f32 %v342, %v3881
      %v4008 = vmul.f32 %v343, %v3883
      %v4009 = vmul.f32 %v344, %v3887
      %v4010 = vmul.f32 %v345, %v3889
      %v4011 = vmul.f32 %v346, %v3891
      %v4012 = vmul.f32 %v347, %v3893
      %v4013 = vmul.f32 %v348, %v3897
      %v4014 = vmul.f32 %v349, %v3899
      %v4015 = vmul.f32 %v350, %v3901
      %v4016 = vmul.f32 %v351, %v3903
      %v4017 = vmul.f32 %v352, %v3907
      %v4018 = vmul.f32 %v353, %v3909
      %v4019 = vmul.f32 %v354, %v3911
      %v4020 = vmul.f32 %v355, %v3913
      %v4021 = vmul.f32 %v356, %v3917
      %v4022 = vmul.f32 %v357, %v3919
      %v4023 = vmul.f32 %v358, %v3921
      %v4024 = vmul.f32 %v359, %v3923
      %v4025 = vmul.f32 %v360, %v3927
      %v4026 = vmul.f32 %v361, %v3929
      %v4027 = vmul.f32 %v362, %v3931
      %v4028 = vmul.f32 %v363, %v3933
      %v4029 = vmul.f32 %v364, %v3937
      %v4030 = vmul.f32 %v365, %v3939
      %v4031 = vmul.f32 %v366, %v3941
      %v4032 = vmul.f32 %v367, %v3943
      %v4033 = vmul.f32 %v368, %v3947
      %v4034 = vmul.f32 %v369, %v3949
      %v4035 = vmul.f32 %v370, %v3951
      %v4036 = vmul.f32 %v371, %v3953
      %v4037 = vmul.f32 %v372, %v3957
      %v4038 = vmul.f32 %v373, %v3959
      %v4039 = vmul.f32 %v374, %v3961
      %v4040 = vmul.f32 %v375, %v3963
      %v4041 = vmul.f32 %v376, %v3967
      %v4042 = vmul.f32 %v377, %v3969
      %v4043 = vmul.f32 %v378, %v3971
      %v4044 = vmul.f32 %v379, %v3973
      %v4045 = vmul.f32 %v380, %v3977
      %v4046 = vmul.f32 %v381, %v3979
      %v4047 = vmul.f32 %v382, %v3981
      %v4048 = vmul.f32 %v383, %v3983
      %v4049 = vpack.c.bf16 %v3987, %v3985
      %v4050 = vpack.c.bf16 %v3988, %v3986
      %v4051 = vpack.c.bf16 %v3991, %v3989
      %v4052 = vpack.c.bf16 %v3992, %v3990
      %v4053 = vpack.c.bf16 %v3995, %v3993
      %v4054 = vpack.c.bf16 %v3996, %v3994
      %v4055 = vpack.c.bf16 %v3999, %v3997
      %v4056 = vpack.c.bf16 %v4000, %v3998
      %v4057 = vpack.c.bf16 %v4003, %v4001
      %v4058 = vpack.c.bf16 %v4004, %v4002
      %v4059 = vpack.c.bf16 %v4007, %v4005
      %v4060 = vpack.c.bf16 %v4008, %v4006
      %v4061 = vpack.c.bf16 %v4011, %v4009
      %v4062 = vpack.c.bf16 %v4012, %v4010
      %v4063 = vpack.c.bf16 %v4015, %v4013
      %v4064 = vpack.c.bf16 %v4016, %v4014
      %v4065 = vpack.c.bf16 %v4019, %v4017
      %v4066 = vpack.c.bf16 %v4020, %v4018
      %v4067 = vpack.c.bf16 %v4023, %v4021
      %v4068 = vpack.c.bf16 %v4024, %v4022
      %v4069 = vpack.c.bf16 %v4027, %v4025
      %v4070 = vpack.c.bf16 %v4028, %v4026
      %v4071 = vpack.c.bf16 %v4031, %v4029
      %v4072 = vpack.c.bf16 %v4032, %v4030
      %v4073 = vpack.c.bf16 %v4035, %v4033
      %v4074 = vpack.c.bf16 %v4036, %v4034
      %v4075 = vpack.c.bf16 %v4039, %v4037
      %v4076 = vpack.c.bf16 %v4040, %v4038
      %v4077 = vpack.c.bf16 %v4043, %v4041
      %v4078 = vpack.c.bf16 %v4044, %v4042
      %v4079 = vpack.c.bf16 %v4047, %v4045
      %v4080 = vpack.c.bf16 %v4048, %v4046
      %v4082 = vsel %vm729, %v4050, 0
      %v4085 = vsel %vm729, %v4052, 0
      %v4088 = vsel %vm729, %v4054, 0
      %v4091 = vsel %vm729, %v4056, 0
      %v4094 = vsel %vm729, %v4058, 0
      %v4097 = vsel %vm729, %v4060, 0
      %v4100 = vsel %vm729, %v4062, 0
      %v4103 = vsel %vm729, %v4064, 0
      %v4106 = vsel %vm729, %v4066, 0
      %v4109 = vsel %vm729, %v4068, 0
      %v4112 = vsel %vm729, %v4070, 0
      %v4115 = vsel %vm729, %v4072, 0
      %v4118 = vsel %vm729, %v4074, 0
      %v4121 = vsel %vm729, %v4076, 0
      %v4124 = vsel %vm729, %v4078, 0
      %v4127 = vsel %vm729, %v4080, 0
      %4129 = vmatprep.subr.bf16.mxu0 0
      %4130 = vmatpush1.bf16.msra.mxu0 %v716
      %4131 = vmatprep.subr.bf16.mxu0 0
      %4132 = vmatpush1.bf16.msra.mxu0 %v715
      %4133 = vmatprep.subr.bf16.mxu0 0
      %4134 = vmatpush1.bf16.msra.mxu0 %v714
      %4135 = vmatprep.subr.bf16.mxu0 0
      %4136 = vmatpush1.bf16.msra.mxu0 %v713
      %4137 = vmatprep.subr.bf16.mxu0 0
      %4138 = vmatpush1.bf16.msra.mxu0 %v712
      %4139 = vmatprep.subr.bf16.mxu0 0
      %4140 = vmatpush1.bf16.msra.mxu0 %v711
      %4141 = vmatprep.subr.bf16.mxu0 0
      %4142 = vmatpush1.bf16.msra.mxu0 %v710
      %4143 = vmatprep.subr.bf16.mxu0 0
      %4144 = vmatpush1.bf16.msra.mxu0 %v709
      %4145 = vmatprep.subr.bf16.mxu0 0
      %4146 = vmatpush2.bf16.msra.mxu0 0
      %4147 = vmatprep.subr.bf16.mxu0 0
      %4148 = vmatpush2.bf16.msra.mxu0 0
      %4149 = vmatprep.subr.bf16.mxu0 0
      %4150 = vmatpush2.bf16.msra.mxu0 0
      %4151 = vmatprep.subr.bf16.mxu0 0
      %4152 = vmatpush2.bf16.msra.mxu0 0
      %4153 = vmatprep.subr.bf16.mxu0 0
      %4154 = vmatpush2.bf16.msra.mxu0 0
      %4155 = vmatprep.subr.bf16.mxu0 0
      %4156 = vmatpush2.bf16.msra.mxu0 0
      %4157 = vmatprep.subr.bf16.mxu0 0
      %4158 = vmatpush2.bf16.msra.mxu0 %v718
      %4159 = vmatprep.subr.bf16.mxu0 0
      %4160 = vmatpush2.bf16.msra.mxu0 %v717
      %4161 = vmatprep.mubr.bf16.mxu0 %v4082
      %4162 = vmatmul.mubr.bf16.gmra.mxu0 %v4049
      %v4163 = vpop.f32.mrf.mxu0
      %v4164 = vadd.f32 0.0, %v4163
      %v4165 = vpop.f32.mrf.mxu0
      %v4166 = vpop.f32.mrf.mxu0
      %v4167 = vadd.f32 0.0, %v4166
      %v4168 = vpop.f32.mrf.mxu0
      %4169 = vmatprep.mubr.bf16.mxu0 %v4085
      %4170 = vmatmul.mubr.bf16.gmra.mxu0 %v4051
      %v4171 = vpop.f32.mrf.mxu0
      %v4172 = vadd.f32 0.0, %v4171
      %v4173 = vpop.f32.mrf.mxu0
      %v4174 = vpop.f32.mrf.mxu0
      %v4175 = vadd.f32 0.0, %v4174
      %v4176 = vpop.f32.mrf.mxu0
      %4177 = vmatprep.mubr.bf16.mxu0 %v4088
      %4178 = vmatmul.mubr.bf16.gmra.mxu0 %v4053
      %v4179 = vpop.f32.mrf.mxu0
      %v4180 = vadd.f32 0.0, %v4179
      %v4181 = vpop.f32.mrf.mxu0
      %v4182 = vpop.f32.mrf.mxu0
      %v4183 = vadd.f32 0.0, %v4182
      %v4184 = vpop.f32.mrf.mxu0
      %4185 = vmatprep.mubr.bf16.mxu0 %v4091
      %4186 = vmatmul.mubr.bf16.gmra.mxu0 %v4055
      %v4187 = vpop.f32.mrf.mxu0
      %v4188 = vadd.f32 0.0, %v4187
      %v4189 = vpop.f32.mrf.mxu0
      %v4190 = vpop.f32.mrf.mxu0
      %v4191 = vadd.f32 0.0, %v4190
      %v4192 = vpop.f32.mrf.mxu0
      %4193 = vmatprep.mubr.bf16.mxu0 %v4094
      %4194 = vmatmul.mubr.bf16.gmra.mxu0 %v4057
      %v4195 = vpop.f32.mrf.mxu0
      %v4196 = vadd.f32 0.0, %v4195
      %v4197 = vpop.f32.mrf.mxu0
      %v4198 = vpop.f32.mrf.mxu0
      %v4199 = vadd.f32 0.0, %v4198
      %v4200 = vpop.f32.mrf.mxu0
      %4201 = vmatprep.mubr.bf16.mxu0 %v4097
      %4202 = vmatmul.mubr.bf16.gmra.mxu0 %v4059
      %v4203 = vpop.f32.mrf.mxu0
      %v4204 = vadd.f32 0.0, %v4203
      %v4205 = vpop.f32.mrf.mxu0
      %v4206 = vpop.f32.mrf.mxu0
      %v4207 = vadd.f32 0.0, %v4206
      %v4208 = vpop.f32.mrf.mxu0
      %4209 = vmatprep.mubr.bf16.mxu0 %v4100
      %4210 = vmatmul.mubr.bf16.gmra.mxu0 %v4061
      %v4211 = vpop.f32.mrf.mxu0
      %v4212 = vadd.f32 0.0, %v4211
      %v4213 = vpop.f32.mrf.mxu0
      %v4214 = vpop.f32.mrf.mxu0
      %v4215 = vadd.f32 0.0, %v4214
      %v4216 = vpop.f32.mrf.mxu0
      %4217 = vmatprep.mubr.bf16.mxu0 %v4103
      %4218 = vmatmul.mubr.bf16.gmra.mxu0 %v4063
      %v4219 = vpop.f32.mrf.mxu0
      %v4220 = vadd.f32 0.0, %v4219
      %v4221 = vpop.f32.mrf.mxu0
      %v4222 = vpop.f32.mrf.mxu0
      %v4223 = vadd.f32 0.0, %v4222
      %v4224 = vpop.f32.mrf.mxu0
      %4225 = vmatprep.mubr.bf16.mxu0 %v4106
      %4226 = vmatmul.mubr.bf16.gmra.mxu0 %v4065
      %v4227 = vpop.f32.mrf.mxu0
      %v4228 = vadd.f32 0.0, %v4227
      %v4229 = vpop.f32.mrf.mxu0
      %v4230 = vpop.f32.mrf.mxu0
      %v4231 = vadd.f32 0.0, %v4230
      %v4232 = vpop.f32.mrf.mxu0
      %4233 = vmatprep.mubr.bf16.mxu0 %v4109
      %4234 = vmatmul.mubr.bf16.gmra.mxu0 %v4067
      %v4235 = vpop.f32.mrf.mxu0
      %v4236 = vadd.f32 0.0, %v4235
      %v4237 = vpop.f32.mrf.mxu0
      %v4238 = vpop.f32.mrf.mxu0
      %v4239 = vadd.f32 0.0, %v4238
      %v4240 = vpop.f32.mrf.mxu0
      %4241 = vmatprep.mubr.bf16.mxu0 %v4112
      %4242 = vmatmul.mubr.bf16.gmra.mxu0 %v4069
      %v4243 = vpop.f32.mrf.mxu0
      %v4244 = vadd.f32 0.0, %v4243
      %v4245 = vpop.f32.mrf.mxu0
      %v4246 = vpop.f32.mrf.mxu0
      %v4247 = vadd.f32 0.0, %v4246
      %v4248 = vpop.f32.mrf.mxu0
      %4249 = vmatprep.mubr.bf16.mxu0 %v4115
      %4250 = vmatmul.mubr.bf16.gmra.mxu0 %v4071
      %v4251 = vpop.f32.mrf.mxu0
      %v4252 = vadd.f32 0.0, %v4251
      %v4253 = vpop.f32.mrf.mxu0
      %v4254 = vpop.f32.mrf.mxu0
      %v4255 = vadd.f32 0.0, %v4254
      %v4256 = vpop.f32.mrf.mxu0
      %4257 = vmatprep.mubr.bf16.mxu0 %v4118
      %4258 = vmatmul.mubr.bf16.gmra.mxu0 %v4073
      %v4259 = vpop.f32.mrf.mxu0
      %v4260 = vadd.f32 0.0, %v4259
      %v4261 = vpop.f32.mrf.mxu0
      %v4262 = vpop.f32.mrf.mxu0
      %v4263 = vadd.f32 0.0, %v4262
      %v4264 = vpop.f32.mrf.mxu0
      %4265 = vmatprep.mubr.bf16.mxu0 %v4121
      %4266 = vmatmul.mubr.bf16.gmra.mxu0 %v4075
      %v4267 = vpop.f32.mrf.mxu0
      %v4268 = vadd.f32 0.0, %v4267
      %v4269 = vpop.f32.mrf.mxu0
      %v4270 = vpop.f32.mrf.mxu0
      %v4271 = vadd.f32 0.0, %v4270
      %v4272 = vpop.f32.mrf.mxu0
      %4273 = vmatprep.mubr.bf16.mxu0 %v4124
      %4274 = vmatmul.mubr.bf16.gmra.mxu0 %v4077
      %v4275 = vpop.f32.mrf.mxu0
      %v4276 = vadd.f32 0.0, %v4275
      %v4277 = vpop.f32.mrf.mxu0
      %v4278 = vpop.f32.mrf.mxu0
      %v4279 = vadd.f32 0.0, %v4278
      %v4280 = vpop.f32.mrf.mxu0
      %4281 = vmatprep.mubr.bf16.mxu0 %v4127
      %4282 = vmatmul.mubr.bf16.gmra.mxu0 %v4079
      %v4283 = vpop.f32.mrf.mxu0
      %v4284 = vadd.f32 0.0, %v4283
      %v4285 = vpop.f32.mrf.mxu0
      %v4286 = vpop.f32.mrf.mxu0
      %v4287 = vadd.f32 0.0, %v4286
      %v4288 = vpop.f32.mrf.mxu0
      %4289 = vdwg.mxu0
      %v4290 = vadd.f32 %v2902, %v4164
      %v4291 = vadd.f32 %v2903, %v4167
      %v4292 = vadd.f32 %v2904, %v4172
      %v4293 = vadd.f32 %v2905, %v4175
      %v4294 = vadd.f32 %v2906, %v4180
      %v4295 = vadd.f32 %v2907, %v4183
      %v4296 = vadd.f32 %v2908, %v4188
      %v4297 = vadd.f32 %v2909, %v4191
      %v4298 = vadd.f32 %v2910, %v4196
      %v4299 = vadd.f32 %v2911, %v4199
      %v4300 = vadd.f32 %v2912, %v4204
      %v4301 = vadd.f32 %v2913, %v4207
      %v4302 = vadd.f32 %v2914, %v4212
      %v4303 = vadd.f32 %v2915, %v4215
      %v4304 = vadd.f32 %v2916, %v4220
      %v4305 = vadd.f32 %v2917, %v4223
      %v4306 = vadd.f32 %v2918, %v4228
      %v4307 = vadd.f32 %v2919, %v4231
      %v4308 = vadd.f32 %v2920, %v4236
      %v4309 = vadd.f32 %v2921, %v4239
      %v4310 = vadd.f32 %v2922, %v4244
      %v4311 = vadd.f32 %v2923, %v4247
      %v4312 = vadd.f32 %v2924, %v4252
      %v4313 = vadd.f32 %v2925, %v4255
      %v4314 = vadd.f32 %v2926, %v4260
      %v4315 = vadd.f32 %v2927, %v4263
      %v4316 = vadd.f32 %v2928, %v4268
      %v4317 = vadd.f32 %v2929, %v4271
      %v4318 = vadd.f32 %v2930, %v4276
      %v4319 = vadd.f32 %v2931, %v4279
      %v4320 = vadd.f32 %v2932, %v4284
      %v4321 = vadd.f32 %v2933, %v4287
      %v4322 = vsel %vm792, %v4290, -inf
      %4323 = vmax.xlane.f32.xlu0 %v4322
      %v4324 = vpop.xlane.xlu0 %4323
      %v4325 = vsel %vm792, %v4291, -inf
      %4326 = vmax.xlane.f32.xlu0 %v4325
      %v4327 = vpop.xlane.xlu0 %4326
      %v4328 = vsel %vm792, %v4292, -inf
      %4329 = vmax.xlane.f32.xlu0 %v4328
      %v4330 = vpop.xlane.xlu0 %4329
      %v4331 = vsel %vm792, %v4293, -inf
      %4332 = vmax.xlane.f32.xlu0 %v4331
      %v4333 = vpop.xlane.xlu0 %4332
      %v4334 = vsel %vm792, %v4294, -inf
      %4335 = vmax.xlane.f32.xlu0 %v4334
      %v4336 = vpop.xlane.xlu0 %4335
      %v4337 = vsel %vm792, %v4295, -inf
      %4338 = vmax.xlane.f32.xlu0 %v4337
      %v4339 = vpop.xlane.xlu0 %4338
      %v4340 = vsel %vm792, %v4296, -inf
      %4341 = vmax.xlane.f32.xlu0 %v4340
      %v4342 = vpop.xlane.xlu0 %4341
      %v4343 = vsel %vm792, %v4297, -inf
      %4344 = vmax.xlane.f32.xlu0 %v4343
      %v4345 = vpop.xlane.xlu0 %4344
      %v4346 = vsel %vm792, %v4298, -inf
      %4347 = vmax.xlane.f32.xlu0 %v4346
      %v4348 = vpop.xlane.xlu0 %4347
      %v4349 = vsel %vm792, %v4299, -inf
      %4350 = vmax.xlane.f32.xlu0 %v4349
      %v4351 = vpop.xlane.xlu0 %4350
      %v4352 = vsel %vm792, %v4300, -inf
      %4353 = vmax.xlane.f32.xlu0 %v4352
      %v4354 = vpop.xlane.xlu0 %4353
      %v4355 = vsel %vm792, %v4301, -inf
      %4356 = vmax.xlane.f32.xlu0 %v4355
      %v4357 = vpop.xlane.xlu0 %4356
      %v4358 = vsel %vm792, %v4302, -inf
      %4359 = vmax.xlane.f32.xlu0 %v4358
      %v4360 = vpop.xlane.xlu0 %4359
      %v4361 = vsel %vm792, %v4303, -inf
      %4362 = vmax.xlane.f32.xlu0 %v4361
      %v4363 = vpop.xlane.xlu0 %4362
      %v4364 = vsel %vm792, %v4304, -inf
      %4365 = vmax.xlane.f32.xlu0 %v4364
      %v4366 = vpop.xlane.xlu0 %4365
      %v4367 = vsel %vm792, %v4305, -inf
      %4368 = vmax.xlane.f32.xlu0 %v4367
      %v4369 = vpop.xlane.xlu0 %4368
      %v4370 = vsel %vm792, %v4306, -inf
      %4371 = vmax.xlane.f32.xlu0 %v4370
      %v4372 = vpop.xlane.xlu0 %4371
      %v4373 = vsel %vm792, %v4307, -inf
      %4374 = vmax.xlane.f32.xlu0 %v4373
      %v4375 = vpop.xlane.xlu0 %4374
      %v4376 = vsel %vm792, %v4308, -inf
      %4377 = vmax.xlane.f32.xlu0 %v4376
      %v4378 = vpop.xlane.xlu0 %4377
      %v4379 = vsel %vm792, %v4309, -inf
      %4380 = vmax.xlane.f32.xlu0 %v4379
      %v4381 = vpop.xlane.xlu0 %4380
      %v4382 = vsel %vm792, %v4310, -inf
      %4383 = vmax.xlane.f32.xlu0 %v4382
      %v4384 = vpop.xlane.xlu0 %4383
      %v4385 = vsel %vm792, %v4311, -inf
      %4386 = vmax.xlane.f32.xlu0 %v4385
      %v4387 = vpop.xlane.xlu0 %4386
      %v4388 = vsel %vm792, %v4312, -inf
      %4389 = vmax.xlane.f32.xlu0 %v4388
      %v4390 = vpop.xlane.xlu0 %4389
      %v4391 = vsel %vm792, %v4313, -inf
      %4392 = vmax.xlane.f32.xlu0 %v4391
      %v4393 = vpop.xlane.xlu0 %4392
      %v4394 = vsel %vm792, %v4314, -inf
      %4395 = vmax.xlane.f32.xlu0 %v4394
      %v4396 = vpop.xlane.xlu0 %4395
      %v4397 = vsel %vm792, %v4315, -inf
      %4398 = vmax.xlane.f32.xlu0 %v4397
      %v4399 = vpop.xlane.xlu0 %4398
      %v4400 = vsel %vm792, %v4316, -inf
      %4401 = vmax.xlane.f32.xlu0 %v4400
      %v4402 = vpop.xlane.xlu0 %4401
      %v4403 = vsel %vm792, %v4317, -inf
      %4404 = vmax.xlane.f32.xlu0 %v4403
      %v4405 = vpop.xlane.xlu0 %4404
      %v4406 = vsel %vm792, %v4318, -inf
      %4407 = vmax.xlane.f32.xlu0 %v4406
      %v4408 = vpop.xlane.xlu0 %4407
      %v4409 = vsel %vm792, %v4319, -inf
      %4410 = vmax.xlane.f32.xlu0 %v4409
      %v4411 = vpop.xlane.xlu0 %4410
      %v4412 = vsel %vm792, %v4320, -inf
      %4413 = vmax.xlane.f32.xlu0 %v4412
      %v4414 = vpop.xlane.xlu0 %4413
      %v4415 = vsel %vm792, %v4321, -inf
      %4416 = vmax.xlane.f32.xlu0 %v4415
      %v4417 = vpop.xlane.xlu0 %4416
      %v4418 = vsub.f32 %v4290, %v4324
      %v4419 = vsub.f32 %v4291, %v4327
      %v4420 = vsub.f32 %v4292, %v4330
      %v4421 = vsub.f32 %v4293, %v4333
      %v4422 = vsub.f32 %v4294, %v4336
      %v4423 = vsub.f32 %v4295, %v4339
      %v4424 = vsub.f32 %v4296, %v4342
      %v4425 = vsub.f32 %v4297, %v4345
      %v4426 = vsub.f32 %v4298, %v4348
      %v4427 = vsub.f32 %v4299, %v4351
      %v4428 = vsub.f32 %v4300, %v4354
      %v4429 = vsub.f32 %v4301, %v4357
      %v4430 = vsub.f32 %v4302, %v4360
      %v4431 = vsub.f32 %v4303, %v4363
      %v4432 = vsub.f32 %v4304, %v4366
      %v4433 = vsub.f32 %v4305, %v4369
      %v4434 = vsub.f32 %v4306, %v4372
      %v4435 = vsub.f32 %v4307, %v4375
      %v4436 = vsub.f32 %v4308, %v4378
      %v4437 = vsub.f32 %v4309, %v4381
      %v4438 = vsub.f32 %v4310, %v4384
      %v4439 = vsub.f32 %v4311, %v4387
      %v4440 = vsub.f32 %v4312, %v4390
      %v4441 = vsub.f32 %v4313, %v4393
      %v4442 = vsub.f32 %v4314, %v4396
      %v4443 = vsub.f32 %v4315, %v4399
      %v4444 = vsub.f32 %v4316, %v4402
      %v4445 = vsub.f32 %v4317, %v4405
      %v4446 = vsub.f32 %v4318, %v4408
      %v4447 = vsub.f32 %v4319, %v4411
      %v4448 = vsub.f32 %v4320, %v4414
      %v4449 = vsub.f32 %v4321, %v4417
      %v4450 = vmul.f32 %v4418, 1.442695
      %v4451 = vpow.pop %v4450
      %v4452 = vmul.f32 %v4419, 1.442695
      %v4453 = vpow.pop %v4452
      %v4454 = vmul.f32 %v4420, 1.442695
      %v4455 = vpow.pop %v4454
      %v4456 = vmul.f32 %v4421, 1.442695
      %v4457 = vpow.pop %v4456
      %v4458 = vmul.f32 %v4422, 1.442695
      %v4459 = vpow.pop %v4458
      %v4460 = vmul.f32 %v4423, 1.442695
      %v4461 = vpow.pop %v4460
      %v4462 = vmul.f32 %v4424, 1.442695
      %v4463 = vpow.pop %v4462
      %v4464 = vmul.f32 %v4425, 1.442695
      %v4465 = vpow.pop %v4464
      %v4466 = vmul.f32 %v4426, 1.442695
      %v4467 = vpow.pop %v4466
      %v4468 = vmul.f32 %v4427, 1.442695
      %v4469 = vpow.pop %v4468
      %v4470 = vmul.f32 %v4428, 1.442695
      %v4471 = vpow.pop %v4470
      %v4472 = vmul.f32 %v4429, 1.442695
      %v4473 = vpow.pop %v4472
      %v4474 = vmul.f32 %v4430, 1.442695
      %v4475 = vpow.pop %v4474
      %v4476 = vmul.f32 %v4431, 1.442695
      %v4477 = vpow.pop %v4476
      %v4478 = vmul.f32 %v4432, 1.442695
      %v4479 = vpow.pop %v4478
      %v4480 = vmul.f32 %v4433, 1.442695
      %v4481 = vpow.pop %v4480
      %v4482 = vmul.f32 %v4434, 1.442695
      %v4483 = vpow.pop %v4482
      %v4484 = vmul.f32 %v4435, 1.442695
      %v4485 = vpow.pop %v4484
      %v4486 = vmul.f32 %v4436, 1.442695
      %v4487 = vpow.pop %v4486
      %v4488 = vmul.f32 %v4437, 1.442695
      %v4489 = vpow.pop %v4488
      %v4490 = vmul.f32 %v4438, 1.442695
      %v4491 = vpow.pop %v4490
      %v4492 = vmul.f32 %v4439, 1.442695
      %v4493 = vpow.pop %v4492
      %v4494 = vmul.f32 %v4440, 1.442695
      %v4495 = vpow.pop %v4494
      %v4496 = vmul.f32 %v4441, 1.442695
      %v4497 = vpow.pop %v4496
      %v4498 = vmul.f32 %v4442, 1.442695
      %v4499 = vpow.pop %v4498
      %v4500 = vmul.f32 %v4443, 1.442695
      %v4501 = vpow.pop %v4500
      %v4502 = vmul.f32 %v4444, 1.442695
      %v4503 = vpow.pop %v4502
      %v4504 = vmul.f32 %v4445, 1.442695
      %v4505 = vpow.pop %v4504
      %v4506 = vmul.f32 %v4446, 1.442695
      %v4507 = vpow.pop %v4506
      %v4508 = vmul.f32 %v4447, 1.442695
      %v4509 = vpow.pop %v4508
      %v4510 = vmul.f32 %v4448, 1.442695
      %v4511 = vpow.pop %v4510
      %v4512 = vmul.f32 %v4449, 1.442695
      %v4513 = vpow.pop %v4512
      %v4514 = vsel %vm792, %v4451, 0.0
      %4515 = vadd.xlane.f32.xlu0 %v4514
      %v4516 = vpop.xlane.xlu0 %4515
      %v4517 = vsel %vm792, %v4453, 0.0
      %4518 = vadd.xlane.f32.xlu0 %v4517
      %v4519 = vpop.xlane.xlu0 %4518
      %v4520 = vsel %vm792, %v4455, 0.0
      %4521 = vadd.xlane.f32.xlu0 %v4520
      %v4522 = vpop.xlane.xlu0 %4521
      %v4523 = vsel %vm792, %v4457, 0.0
      %4524 = vadd.xlane.f32.xlu0 %v4523
      %v4525 = vpop.xlane.xlu0 %4524
      %v4526 = vsel %vm792, %v4459, 0.0
      %4527 = vadd.xlane.f32.xlu0 %v4526
      %v4528 = vpop.xlane.xlu0 %4527
      %v4529 = vsel %vm792, %v4461, 0.0
      %4530 = vadd.xlane.f32.xlu0 %v4529
      %v4531 = vpop.xlane.xlu0 %4530
      %v4532 = vsel %vm792, %v4463, 0.0
      %4533 = vadd.xlane.f32.xlu0 %v4532
      %v4534 = vpop.xlane.xlu0 %4533
      %v4535 = vsel %vm792, %v4465, 0.0
      %4536 = vadd.xlane.f32.xlu0 %v4535
      %v4537 = vpop.xlane.xlu0 %4536
      %v4538 = vsel %vm792, %v4467, 0.0
      %4539 = vadd.xlane.f32.xlu0 %v4538
      %v4540 = vpop.xlane.xlu0 %4539
      %v4541 = vsel %vm792, %v4469, 0.0
      %4542 = vadd.xlane.f32.xlu0 %v4541
      %v4543 = vpop.xlane.xlu0 %4542
      %v4544 = vsel %vm792, %v4471, 0.0
      %4545 = vadd.xlane.f32.xlu0 %v4544
      %v4546 = vpop.xlane.xlu0 %4545
      %v4547 = vsel %vm792, %v4473, 0.0
      %4548 = vadd.xlane.f32.xlu0 %v4547
      %v4549 = vpop.xlane.xlu0 %4548
      %v4550 = vsel %vm792, %v4475, 0.0
      %4551 = vadd.xlane.f32.xlu0 %v4550
      %v4552 = vpop.xlane.xlu0 %4551
      %v4553 = vsel %vm792, %v4477, 0.0
      %4554 = vadd.xlane.f32.xlu0 %v4553
      %v4555 = vpop.xlane.xlu0 %4554
      %v4556 = vsel %vm792, %v4479, 0.0
      %4557 = vadd.xlane.f32.xlu0 %v4556
      %v4558 = vpop.xlane.xlu0 %4557
      %v4559 = vsel %vm792, %v4481, 0.0
      %4560 = vadd.xlane.f32.xlu0 %v4559
      %v4561 = vpop.xlane.xlu0 %4560
      %v4562 = vsel %vm792, %v4483, 0.0
      %4563 = vadd.xlane.f32.xlu0 %v4562
      %v4564 = vpop.xlane.xlu0 %4563
      %v4565 = vsel %vm792, %v4485, 0.0
      %4566 = vadd.xlane.f32.xlu0 %v4565
      %v4567 = vpop.xlane.xlu0 %4566
      %v4568 = vsel %vm792, %v4487, 0.0
      %4569 = vadd.xlane.f32.xlu0 %v4568
      %v4570 = vpop.xlane.xlu0 %4569
      %v4571 = vsel %vm792, %v4489, 0.0
      %4572 = vadd.xlane.f32.xlu0 %v4571
      %v4573 = vpop.xlane.xlu0 %4572
      %v4574 = vsel %vm792, %v4491, 0.0
      %4575 = vadd.xlane.f32.xlu0 %v4574
      %v4576 = vpop.xlane.xlu0 %4575
      %v4577 = vsel %vm792, %v4493, 0.0
      %4578 = vadd.xlane.f32.xlu0 %v4577
      %v4579 = vpop.xlane.xlu0 %4578
      %v4580 = vsel %vm792, %v4495, 0.0
      %4581 = vadd.xlane.f32.xlu0 %v4580
      %v4582 = vpop.xlane.xlu0 %4581
      %v4583 = vsel %vm792, %v4497, 0.0
      %4584 = vadd.xlane.f32.xlu0 %v4583
      %v4585 = vpop.xlane.xlu0 %4584
      %v4586 = vsel %vm792, %v4499, 0.0
      %4587 = vadd.xlane.f32.xlu0 %v4586
      %v4588 = vpop.xlane.xlu0 %4587
      %v4589 = vsel %vm792, %v4501, 0.0
      %4590 = vadd.xlane.f32.xlu0 %v4589
      %v4591 = vpop.xlane.xlu0 %4590
      %v4592 = vsel %vm792, %v4503, 0.0
      %4593 = vadd.xlane.f32.xlu0 %v4592
      %v4594 = vpop.xlane.xlu0 %4593
      %v4595 = vsel %vm792, %v4505, 0.0
      %4596 = vadd.xlane.f32.xlu0 %v4595
      %v4597 = vpop.xlane.xlu0 %4596
      %v4598 = vsel %vm792, %v4507, 0.0
      %4599 = vadd.xlane.f32.xlu0 %v4598
      %v4600 = vpop.xlane.xlu0 %4599
      %v4601 = vsel %vm792, %v4509, 0.0
      %4602 = vadd.xlane.f32.xlu0 %v4601
      %v4603 = vpop.xlane.xlu0 %4602
      %v4604 = vsel %vm792, %v4511, 0.0
      %4605 = vadd.xlane.f32.xlu0 %v4604
      %v4606 = vpop.xlane.xlu0 %4605
      %v4607 = vsel %vm792, %v4513, 0.0
      %4608 = vadd.xlane.f32.xlu0 %v4607
      %v4609 = vpop.xlane.xlu0 %4608
      %v4610 = vrcp.pop %v4516
      %v4611 = vmul.f32 %v4451, %v4610
      %v4612 = vrcp.pop %v4519
      %v4613 = vmul.f32 %v4453, %v4612
      %v4614 = vrcp.pop %v4522
      %v4615 = vmul.f32 %v4455, %v4614
      %v4616 = vrcp.pop %v4525
      %v4617 = vmul.f32 %v4457, %v4616
      %v4618 = vrcp.pop %v4528
      %v4619 = vmul.f32 %v4459, %v4618
      %v4620 = vrcp.pop %v4531
      %v4621 = vmul.f32 %v4461, %v4620
      %v4622 = vrcp.pop %v4534
      %v4623 = vmul.f32 %v4463, %v4622
      %v4624 = vrcp.pop %v4537
      %v4625 = vmul.f32 %v4465, %v4624
      %v4626 = vrcp.pop %v4540
      %v4627 = vmul.f32 %v4467, %v4626
      %v4628 = vrcp.pop %v4543
      %v4629 = vmul.f32 %v4469, %v4628
      %v4630 = vrcp.pop %v4546
      %v4631 = vmul.f32 %v4471, %v4630
      %v4632 = vrcp.pop %v4549
      %v4633 = vmul.f32 %v4473, %v4632
      %v4634 = vrcp.pop %v4552
      %v4635 = vmul.f32 %v4475, %v4634
      %v4636 = vrcp.pop %v4555
      %v4637 = vmul.f32 %v4477, %v4636
      %v4638 = vrcp.pop %v4558
      %v4639 = vmul.f32 %v4479, %v4638
      %v4640 = vrcp.pop %v4561
      %v4641 = vmul.f32 %v4481, %v4640
      %v4642 = vrcp.pop %v4564
      %v4643 = vmul.f32 %v4483, %v4642
      %v4644 = vrcp.pop %v4567
      %v4645 = vmul.f32 %v4485, %v4644
      %v4646 = vrcp.pop %v4570
      %v4647 = vmul.f32 %v4487, %v4646
      %v4648 = vrcp.pop %v4573
      %v4649 = vmul.f32 %v4489, %v4648
      %v4650 = vrcp.pop %v4576
      %v4651 = vmul.f32 %v4491, %v4650
      %v4652 = vrcp.pop %v4579
      %v4653 = vmul.f32 %v4493, %v4652
      %v4654 = vrcp.pop %v4582
      %v4655 = vmul.f32 %v4495, %v4654
      %v4656 = vrcp.pop %v4585
      %v4657 = vmul.f32 %v4497, %v4656
      %v4658 = vrcp.pop %v4588
      %v4659 = vmul.f32 %v4499, %v4658
      %v4660 = vrcp.pop %v4591
      %v4661 = vmul.f32 %v4501, %v4660
      %v4662 = vrcp.pop %v4594
      %v4663 = vmul.f32 %v4503, %v4662
      %v4664 = vrcp.pop %v4597
      %v4665 = vmul.f32 %v4505, %v4664
      %v4666 = vrcp.pop %v4600
      %v4667 = vmul.f32 %v4507, %v4666
      %v4668 = vrcp.pop %v4603
      %v4669 = vmul.f32 %v4509, %v4668
      %v4670 = vrcp.pop %v4606
      %v4671 = vmul.f32 %v4511, %v4670
      %v4672 = vrcp.pop %v4609
      %v4673 = vmul.f32 %v4513, %v4672
      %v4674 = vpack.c.bf16 %v4613, %v4611
      %v4675 = vpack.c.bf16 %v4617, %v4615
      %v4676 = vpack.c.bf16 %v4621, %v4619
      %v4677 = vpack.c.bf16 %v4625, %v4623
      %v4678 = vpack.c.bf16 %v4629, %v4627
      %v4679 = vpack.c.bf16 %v4633, %v4631
      %v4680 = vpack.c.bf16 %v4637, %v4635
      %v4681 = vpack.c.bf16 %v4641, %v4639
      %v4682 = vpack.c.bf16 %v4645, %v4643
      %v4683 = vpack.c.bf16 %v4649, %v4647
      %v4684 = vpack.c.bf16 %v4653, %v4651
      %v4685 = vpack.c.bf16 %v4657, %v4655
      %v4686 = vpack.c.bf16 %v4661, %v4659
      %v4687 = vpack.c.bf16 %v4665, %v4663
      %v4688 = vpack.c.bf16 %v4669, %v4667
      %v4689 = vpack.c.bf16 %v4673, %v4671
      %v4691 = vsel %vm792, %v4674, 0
      %v4694 = vsel %vm792, %v4675, 0
      %v4697 = vsel %vm792, %v4676, 0
      %v4700 = vsel %vm792, %v4677, 0
      %v4703 = vsel %vm792, %v4678, 0
      %v4706 = vsel %vm792, %v4679, 0
      %v4709 = vsel %vm792, %v4680, 0
      %v4712 = vsel %vm792, %v4681, 0
      %v4715 = vsel %vm792, %v4682, 0
      %v4718 = vsel %vm792, %v4683, 0
      %v4721 = vsel %vm792, %v4684, 0
      %v4724 = vsel %vm792, %v4685, 0
      %v4727 = vsel %vm792, %v4686, 0
      %v4730 = vsel %vm792, %v4687, 0
      %v4733 = vsel %vm792, %v4688, 0
      %v4736 = vsel %vm792, %v4689, 0
      %4738 = vmatprep.subr.bf16.mxu0 0
      %4739 = vmatpush1.bf16.msra.mxu0 0
      %4740 = vmatprep.subr.bf16.mxu0 0
      %4741 = vmatpush1.bf16.msra.mxu0 0
      %4742 = vmatprep.subr.bf16.mxu0 0
      %4743 = vmatpush1.bf16.msra.mxu0 0
      %4744 = vmatprep.subr.bf16.mxu0 0
      %4745 = vmatpush1.bf16.msra.mxu0 0
      %4746 = vmatprep.subr.bf16.mxu0 0
      %4747 = vmatpush1.bf16.msra.mxu0 0
      %4748 = vmatprep.subr.bf16.mxu0 0
      %4749 = vmatpush1.bf16.msra.mxu0 0
      %4750 = vmatprep.subr.bf16.mxu0 0
      %4751 = vmatpush1.bf16.msra.mxu0 0
      %4752 = vmatprep.subr.bf16.mxu0 %v801
      %4753 = vmatpush1.bf16.msra.mxu0 %v798
      %4754 = vmatprep.subr.bf16.mxu0 0
      %4755 = vmatpush2.bf16.msra.mxu0 0
      %4756 = vmatprep.subr.bf16.mxu0 0
      %4757 = vmatpush2.bf16.msra.mxu0 0
      %4758 = vmatprep.subr.bf16.mxu0 0
      %4759 = vmatpush2.bf16.msra.mxu0 0
      %4760 = vmatprep.subr.bf16.mxu0 0
      %4761 = vmatpush2.bf16.msra.mxu0 0
      %4762 = vmatprep.subr.bf16.mxu0 0
      %4763 = vmatpush2.bf16.msra.mxu0 0
      %4764 = vmatprep.subr.bf16.mxu0 0
      %4765 = vmatpush2.bf16.msra.mxu0 0
      %4766 = vmatprep.subr.bf16.mxu0 0
      %4767 = vmatpush2.bf16.msra.mxu0 0
      %4768 = vmatprep.subr.bf16.mxu0 0
      %4769 = vmatpush2.bf16.msra.mxu0 0
      %4770 = vmatprep.mubr.bf16.mxu0 0
      %4771 = vmatmul.mubr.bf16.gmra.mxu0 %v4691
      %v4772 = vpop.f32.mrf.mxu0
      %v4773 = vadd.f32 0.0, %v4772
      %v4774 = vpop.f32.mrf.mxu0
      %v4775 = vadd.f32 0.0, %v4774
      %v4776 = vpop.f32.mrf.mxu0
      %v4777 = vadd.f32 0.0, %v4776
      %v4778 = vpop.f32.mrf.mxu0
      %v4779 = vadd.f32 0.0, %v4778
      %4780 = vmatprep.mubr.bf16.mxu0 0
      %4781 = vmatmul.mubr.bf16.gmra.mxu0 %v4694
      %v4782 = vpop.f32.mrf.mxu0
      %v4783 = vadd.f32 0.0, %v4782
      %v4784 = vpop.f32.mrf.mxu0
      %v4785 = vadd.f32 0.0, %v4784
      %v4786 = vpop.f32.mrf.mxu0
      %v4787 = vadd.f32 0.0, %v4786
      %v4788 = vpop.f32.mrf.mxu0
      %v4789 = vadd.f32 0.0, %v4788
      %4790 = vmatprep.mubr.bf16.mxu0 0
      %4791 = vmatmul.mubr.bf16.gmra.mxu0 %v4697
      %v4792 = vpop.f32.mrf.mxu0
      %v4793 = vadd.f32 0.0, %v4792
      %v4794 = vpop.f32.mrf.mxu0
      %v4795 = vadd.f32 0.0, %v4794
      %v4796 = vpop.f32.mrf.mxu0
      %v4797 = vadd.f32 0.0, %v4796
      %v4798 = vpop.f32.mrf.mxu0
      %v4799 = vadd.f32 0.0, %v4798
      %4800 = vmatprep.mubr.bf16.mxu0 0
      %4801 = vmatmul.mubr.bf16.gmra.mxu0 %v4700
      %v4802 = vpop.f32.mrf.mxu0
      %v4803 = vadd.f32 0.0, %v4802
      %v4804 = vpop.f32.mrf.mxu0
      %v4805 = vadd.f32 0.0, %v4804
      %v4806 = vpop.f32.mrf.mxu0
      %v4807 = vadd.f32 0.0, %v4806
      %v4808 = vpop.f32.mrf.mxu0
      %v4809 = vadd.f32 0.0, %v4808
      %4810 = vmatprep.mubr.bf16.mxu0 0
      %4811 = vmatmul.mubr.bf16.gmra.mxu0 %v4703
      %v4812 = vpop.f32.mrf.mxu0
      %v4813 = vadd.f32 0.0, %v4812
      %v4814 = vpop.f32.mrf.mxu0
      %v4815 = vadd.f32 0.0, %v4814
      %v4816 = vpop.f32.mrf.mxu0
      %v4817 = vadd.f32 0.0, %v4816
      %v4818 = vpop.f32.mrf.mxu0
      %v4819 = vadd.f32 0.0, %v4818
      %4820 = vmatprep.mubr.bf16.mxu0 0
      %4821 = vmatmul.mubr.bf16.gmra.mxu0 %v4706
      %v4822 = vpop.f32.mrf.mxu0
      %v4823 = vadd.f32 0.0, %v4822
      %v4824 = vpop.f32.mrf.mxu0
      %v4825 = vadd.f32 0.0, %v4824
      %v4826 = vpop.f32.mrf.mxu0
      %v4827 = vadd.f32 0.0, %v4826
      %v4828 = vpop.f32.mrf.mxu0
      %v4829 = vadd.f32 0.0, %v4828
      %4830 = vmatprep.mubr.bf16.mxu0 0
      %4831 = vmatmul.mubr.bf16.gmra.mxu0 %v4709
      %v4832 = vpop.f32.mrf.mxu0
      %v4833 = vadd.f32 0.0, %v4832
      %v4834 = vpop.f32.mrf.mxu0
      %v4835 = vadd.f32 0.0, %v4834
      %v4836 = vpop.f32.mrf.mxu0
      %v4837 = vadd.f32 0.0, %v4836
      %v4838 = vpop.f32.mrf.mxu0
      %v4839 = vadd.f32 0.0, %v4838
      %4840 = vmatprep.mubr.bf16.mxu0 0
      %4841 = vmatmul.mubr.bf16.gmra.mxu0 %v4712
      %v4842 = vpop.f32.mrf.mxu0
      %v4843 = vadd.f32 0.0, %v4842
      %v4844 = vpop.f32.mrf.mxu0
      %v4845 = vadd.f32 0.0, %v4844
      %v4846 = vpop.f32.mrf.mxu0
      %v4847 = vadd.f32 0.0, %v4846
      %v4848 = vpop.f32.mrf.mxu0
      %v4849 = vadd.f32 0.0, %v4848
      %4850 = vmatprep.mubr.bf16.mxu0 0
      %4851 = vmatmul.mubr.bf16.gmra.mxu0 %v4715
      %v4852 = vpop.f32.mrf.mxu0
      %v4853 = vadd.f32 0.0, %v4852
      %v4854 = vpop.f32.mrf.mxu0
      %v4855 = vadd.f32 0.0, %v4854
      %v4856 = vpop.f32.mrf.mxu0
      %v4857 = vadd.f32 0.0, %v4856
      %v4858 = vpop.f32.mrf.mxu0
      %v4859 = vadd.f32 0.0, %v4858
      %4860 = vmatprep.mubr.bf16.mxu0 0
      %4861 = vmatmul.mubr.bf16.gmra.mxu0 %v4718
      %v4862 = vpop.f32.mrf.mxu0
      %v4863 = vadd.f32 0.0, %v4862
      %v4864 = vpop.f32.mrf.mxu0
      %v4865 = vadd.f32 0.0, %v4864
      %v4866 = vpop.f32.mrf.mxu0
      %v4867 = vadd.f32 0.0, %v4866
      %v4868 = vpop.f32.mrf.mxu0
      %v4869 = vadd.f32 0.0, %v4868
      %4870 = vmatprep.mubr.bf16.mxu0 0
      %4871 = vmatmul.mubr.bf16.gmra.mxu0 %v4721
      %v4872 = vpop.f32.mrf.mxu0
      %v4873 = vadd.f32 0.0, %v4872
      %v4874 = vpop.f32.mrf.mxu0
      %v4875 = vadd.f32 0.0, %v4874
      %v4876 = vpop.f32.mrf.mxu0
      %v4877 = vadd.f32 0.0, %v4876
      %v4878 = vpop.f32.mrf.mxu0
      %v4879 = vadd.f32 0.0, %v4878
      %4880 = vmatprep.mubr.bf16.mxu0 0
      %4881 = vmatmul.mubr.bf16.gmra.mxu0 %v4724
      %v4882 = vpop.f32.mrf.mxu0
      %v4883 = vadd.f32 0.0, %v4882
      %v4884 = vpop.f32.mrf.mxu0
      %v4885 = vadd.f32 0.0, %v4884
      %v4886 = vpop.f32.mrf.mxu0
      %v4887 = vadd.f32 0.0, %v4886
      %v4888 = vpop.f32.mrf.mxu0
      %v4889 = vadd.f32 0.0, %v4888
      %4890 = vmatprep.mubr.bf16.mxu0 0
      %4891 = vmatmul.mubr.bf16.gmra.mxu0 %v4727
      %v4892 = vpop.f32.mrf.mxu0
      %v4893 = vadd.f32 0.0, %v4892
      %v4894 = vpop.f32.mrf.mxu0
      %v4895 = vadd.f32 0.0, %v4894
      %v4896 = vpop.f32.mrf.mxu0
      %v4897 = vadd.f32 0.0, %v4896
      %v4898 = vpop.f32.mrf.mxu0
      %v4899 = vadd.f32 0.0, %v4898
      %4900 = vmatprep.mubr.bf16.mxu0 0
      %4901 = vmatmul.mubr.bf16.gmra.mxu0 %v4730
      %v4902 = vpop.f32.mrf.mxu0
      %v4903 = vadd.f32 0.0, %v4902
      %v4904 = vpop.f32.mrf.mxu0
      %v4905 = vadd.f32 0.0, %v4904
      %v4906 = vpop.f32.mrf.mxu0
      %v4907 = vadd.f32 0.0, %v4906
      %v4908 = vpop.f32.mrf.mxu0
      %v4909 = vadd.f32 0.0, %v4908
      %4910 = vmatprep.mubr.bf16.mxu0 0
      %4911 = vmatmul.mubr.bf16.gmra.mxu0 %v4733
      %v4912 = vpop.f32.mrf.mxu0
      %v4913 = vadd.f32 0.0, %v4912
      %v4914 = vpop.f32.mrf.mxu0
      %v4915 = vadd.f32 0.0, %v4914
      %v4916 = vpop.f32.mrf.mxu0
      %v4917 = vadd.f32 0.0, %v4916
      %v4918 = vpop.f32.mrf.mxu0
      %v4919 = vadd.f32 0.0, %v4918
      %4920 = vmatprep.mubr.bf16.mxu0 0
      %4921 = vmatmul.mubr.bf16.gmra.mxu0 %v4736
      %v4922 = vpop.f32.mrf.mxu0
      %v4923 = vadd.f32 0.0, %v4922
      %v4924 = vpop.f32.mrf.mxu0
      %v4925 = vadd.f32 0.0, %v4924
      %v4926 = vpop.f32.mrf.mxu0
      %v4927 = vadd.f32 0.0, %v4926
      %v4928 = vpop.f32.mrf.mxu0
      %v4929 = vadd.f32 0.0, %v4928
      %4930 = vdwg.mxu0
      %v4931 = vmul.f32 %v4773, %v320
      %v4932 = vmul.f32 %v4775, %v321
      %v4933 = vmul.f32 %v4777, %v322
      %v4934 = vmul.f32 %v4779, %v323
      %v4935 = vmul.f32 %v4783, %v324
      %v4936 = vmul.f32 %v4785, %v325
      %v4937 = vmul.f32 %v4787, %v326
      %v4938 = vmul.f32 %v4789, %v327
      %v4939 = vmul.f32 %v4793, %v328
      %v4940 = vmul.f32 %v4795, %v329
      %v4941 = vmul.f32 %v4797, %v330
      %v4942 = vmul.f32 %v4799, %v331
      %v4943 = vmul.f32 %v4803, %v332
      %v4944 = vmul.f32 %v4805, %v333
      %v4945 = vmul.f32 %v4807, %v334
      %v4946 = vmul.f32 %v4809, %v335
      %v4947 = vmul.f32 %v4813, %v336
      %v4948 = vmul.f32 %v4815, %v337
      %v4949 = vmul.f32 %v4817, %v338
      %v4950 = vmul.f32 %v4819, %v339
      %v4951 = vmul.f32 %v4823, %v340
      %v4952 = vmul.f32 %v4825, %v341
      %v4953 = vmul.f32 %v4827, %v342
      %v4954 = vmul.f32 %v4829, %v343
      %v4955 = vmul.f32 %v4833, %v344
      %v4956 = vmul.f32 %v4835, %v345
      %v4957 = vmul.f32 %v4837, %v346
      %v4958 = vmul.f32 %v4839, %v347
      %v4959 = vmul.f32 %v4843, %v348
      %v4960 = vmul.f32 %v4845, %v349
      %v4961 = vmul.f32 %v4847, %v350
      %v4962 = vmul.f32 %v4849, %v351
      %v4963 = vmul.f32 %v4853, %v352
      %v4964 = vmul.f32 %v4855, %v353
      %v4965 = vmul.f32 %v4857, %v354
      %v4966 = vmul.f32 %v4859, %v355
      %v4967 = vmul.f32 %v4863, %v356
      %v4968 = vmul.f32 %v4865, %v357
      %v4969 = vmul.f32 %v4867, %v358
      %v4970 = vmul.f32 %v4869, %v359
      %v4971 = vmul.f32 %v4873, %v360
      %v4972 = vmul.f32 %v4875, %v361
      %v4973 = vmul.f32 %v4877, %v362
      %v4974 = vmul.f32 %v4879, %v363
      %v4975 = vmul.f32 %v4883, %v364
      %v4976 = vmul.f32 %v4885, %v365
      %v4977 = vmul.f32 %v4887, %v366
      %v4978 = vmul.f32 %v4889, %v367
      %v4979 = vmul.f32 %v4893, %v368
      %v4980 = vmul.f32 %v4895, %v369
      %v4981 = vmul.f32 %v4897, %v370
      %v4982 = vmul.f32 %v4899, %v371
      %v4983 = vmul.f32 %v4903, %v372
      %v4984 = vmul.f32 %v4905, %v373
      %v4985 = vmul.f32 %v4907, %v374
      %v4986 = vmul.f32 %v4909, %v375
      %v4987 = vmul.f32 %v4913, %v376
      %v4988 = vmul.f32 %v4915, %v377
      %v4989 = vmul.f32 %v4917, %v378
      %v4990 = vmul.f32 %v4919, %v379
      %v4991 = vmul.f32 %v4923, %v380
      %v4992 = vmul.f32 %v4925, %v381
      %v4993 = vmul.f32 %v4927, %v382
      %v4994 = vmul.f32 %v4929, %v383
      %v4995 = vpack.c.bf16 %v4933, %v4931
      %v4996 = vpack.c.bf16 %v4934, %v4932
      %v4997 = vpack.c.bf16 %v4937, %v4935
      %v4998 = vpack.c.bf16 %v4938, %v4936
      %v4999 = vpack.c.bf16 %v4941, %v4939
      %v5000 = vpack.c.bf16 %v4942, %v4940
      %v5001 = vpack.c.bf16 %v4945, %v4943
      %v5002 = vpack.c.bf16 %v4946, %v4944
      %v5003 = vpack.c.bf16 %v4949, %v4947
      %v5004 = vpack.c.bf16 %v4950, %v4948
      %v5005 = vpack.c.bf16 %v4953, %v4951
      %v5006 = vpack.c.bf16 %v4954, %v4952
      %v5007 = vpack.c.bf16 %v4957, %v4955
      %v5008 = vpack.c.bf16 %v4958, %v4956
      %v5009 = vpack.c.bf16 %v4961, %v4959
      %v5010 = vpack.c.bf16 %v4962, %v4960
      %v5011 = vpack.c.bf16 %v4965, %v4963
      %v5012 = vpack.c.bf16 %v4966, %v4964
      %v5013 = vpack.c.bf16 %v4969, %v4967
      %v5014 = vpack.c.bf16 %v4970, %v4968
      %v5015 = vpack.c.bf16 %v4973, %v4971
      %v5016 = vpack.c.bf16 %v4974, %v4972
      %v5017 = vpack.c.bf16 %v4977, %v4975
      %v5018 = vpack.c.bf16 %v4978, %v4976
      %v5019 = vpack.c.bf16 %v4981, %v4979
      %v5020 = vpack.c.bf16 %v4982, %v4980
      %v5021 = vpack.c.bf16 %v4985, %v4983
      %v5022 = vpack.c.bf16 %v4986, %v4984
      %v5023 = vpack.c.bf16 %v4989, %v4987
      %v5024 = vpack.c.bf16 %v4990, %v4988
      %v5025 = vpack.c.bf16 %v4993, %v4991
      %v5026 = vpack.c.bf16 %v4994, %v4992
      %5027 = vmatprep.subr.bf16.mxu0 %v5010
      %5028 = vmatpush1.bf16.msra.mxu0 %v5009
      %5029 = vmatprep.subr.bf16.mxu0 %v5008
      %5030 = vmatpush1.bf16.msra.mxu0 %v5007
      %5031 = vmatprep.subr.bf16.mxu0 %v5006
      %5032 = vmatpush1.bf16.msra.mxu0 %v5005
      %5033 = vmatprep.subr.bf16.mxu0 %v5004
      %5034 = vmatpush1.bf16.msra.mxu0 %v5003
      %5035 = vmatprep.subr.bf16.mxu0 %v5002
      %5036 = vmatpush1.bf16.msra.mxu0 %v5001
      %5037 = vmatprep.subr.bf16.mxu0 %v5000
      %5038 = vmatpush1.bf16.msra.mxu0 %v4999
      %5039 = vmatprep.subr.bf16.mxu0 %v4998
      %5040 = vmatpush1.bf16.msra.mxu0 %v4997
      %5041 = vmatprep.subr.bf16.mxu0 %v4996
      %5042 = vmatpush1.bf16.msra.mxu0 %v4995
      %5043 = vmatprep.subr.bf16.mxu0 %v5026
      %5044 = vmatpush2.bf16.msra.mxu0 %v5025
      %5045 = vmatprep.subr.bf16.mxu0 %v5024
      %5046 = vmatpush2.bf16.msra.mxu0 %v5023
      %5047 = vmatprep.subr.bf16.mxu0 %v5022
      %5048 = vmatpush2.bf16.msra.mxu0 %v5021
      %5049 = vmatprep.subr.bf16.mxu0 %v5020
      %5050 = vmatpush2.bf16.msra.mxu0 %v5019
      %5051 = vmatprep.subr.bf16.mxu0 %v5018
      %5052 = vmatpush2.bf16.msra.mxu0 %v5017
      %5053 = vmatprep.subr.bf16.mxu0 %v5016
      %5054 = vmatpush2.bf16.msra.mxu0 %v5015
      %5055 = vmatprep.subr.bf16.mxu0 %v5014
      %5056 = vmatpush2.bf16.msra.mxu0 %v5013
      %5057 = vmatprep.subr.bf16.mxu0 %v5012
      %5058 = vmatpush2.bf16.msra.mxu0 %v5011
      %5059 = vmatprep.mubr.bf16.mxu0 %v621
      %5060 = vmatmul.mubr.bf16.gmra.mxu0 %v614
      %v5061 = vpop.f32.mrf.mxu0
      %v5062 = vadd.f32 0.0, %v5061
      %v5063 = vpop.f32.mrf.mxu0
      %v5064 = vadd.f32 0.0, %v5063
      %v5065 = vpop.f32.mrf.mxu0
      %v5066 = vpop.f32.mrf.mxu0
      %5067 = vdwg.mxu0
      %v5068 = vmul.f32 %v5062, %v5062
      %v5069 = vmul.f32 %v5064, %v5064
      %v5070 = vpack.c.bf16 %v5068, %v5068
      %v5071 = vpack.c.bf16 %v5069, %v5069
      %v5073 = vsel %vm729, %v5071, 0
      %5075 = vmatprep.subr.bf16.mxu0 0
      %5076 = vmatpush1.bf16.msra.mxu0 %v716
      %5077 = vmatprep.subr.bf16.mxu0 0
      %5078 = vmatpush1.bf16.msra.mxu0 %v715
      %5079 = vmatprep.subr.bf16.mxu0 0
      %5080 = vmatpush1.bf16.msra.mxu0 %v714
      %5081 = vmatprep.subr.bf16.mxu0 0
      %5082 = vmatpush1.bf16.msra.mxu0 %v713
      %5083 = vmatprep.subr.bf16.mxu0 0
      %5084 = vmatpush1.bf16.msra.mxu0 %v712
      %5085 = vmatprep.subr.bf16.mxu0 0
      %5086 = vmatpush1.bf16.msra.mxu0 %v711
      %5087 = vmatprep.subr.bf16.mxu0 0
      %5088 = vmatpush1.bf16.msra.mxu0 %v710
      %5089 = vmatprep.subr.bf16.mxu0 0
      %5090 = vmatpush1.bf16.msra.mxu0 %v709
      %5091 = vmatprep.subr.bf16.mxu0 0
      %5092 = vmatpush2.bf16.msra.mxu0 0
      %5093 = vmatprep.subr.bf16.mxu0 0
      %5094 = vmatpush2.bf16.msra.mxu0 0
      %5095 = vmatprep.subr.bf16.mxu0 0
      %5096 = vmatpush2.bf16.msra.mxu0 0
      %5097 = vmatprep.subr.bf16.mxu0 0
      %5098 = vmatpush2.bf16.msra.mxu0 0
      %5099 = vmatprep.subr.bf16.mxu0 0
      %5100 = vmatpush2.bf16.msra.mxu0 0
      %5101 = vmatprep.subr.bf16.mxu0 0
      %5102 = vmatpush2.bf16.msra.mxu0 0
      %5103 = vmatprep.subr.bf16.mxu0 0
      %5104 = vmatpush2.bf16.msra.mxu0 %v718
      %5105 = vmatprep.subr.bf16.mxu0 0
      %5106 = vmatpush2.bf16.msra.mxu0 %v717
      %5107 = vmatprep.mubr.bf16.mxu0 %v5073
      %5108 = vmatmul.mubr.bf16.gmra.mxu0 %v5070
      %v5109 = vpop.f32.mrf.mxu0
      %v5110 = vadd.f32 0.0, %v5109
      %v5111 = vpop.f32.mrf.mxu0
      %v5112 = vpop.f32.mrf.mxu0
      %v5113 = vpop.f32.mrf.mxu0
      %5114 = vdwg.mxu0
      %v5115 = vrsqrt.pop %v5110
      %v5116 = vmul.f32 %v5110, %v5115
      %vm5117 = vcmp.eq.f32.partialorder %v5110, inf
      %v5118 = vsel %vm5117, %v5110, %v5116
      %vm5119 = vcmp.eq.f32.partialorder %v5110, 0.0
      %v5120 = vand.u32 %v5110, 2147483648
      %v5121 = vsel %vm5119, %v5120, %v5118
      %v5122 = vadd.f32 %v5110, 1.0
      %v5123 = vrcp.pop %v5122
      %v5124 = vmul.f32 %v5121, %v5123
      %v5125 = vpack.c.bf16 %v5124, %v5124
      %v5127 = vsel %vm792, %v5125, 0
      %5129 = vmatprep.subr.bf16.mxu0 0
      %5130 = vmatpush1.bf16.msra.mxu0 0
      %5131 = vmatprep.subr.bf16.mxu0 0
      %5132 = vmatpush1.bf16.msra.mxu0 0
      %5133 = vmatprep.subr.bf16.mxu0 0
      %5134 = vmatpush1.bf16.msra.mxu0 0
      %5135 = vmatprep.subr.bf16.mxu0 0
      %5136 = vmatpush1.bf16.msra.mxu0 0
      %5137 = vmatprep.subr.bf16.mxu0 0
      %5138 = vmatpush1.bf16.msra.mxu0 0
      %5139 = vmatprep.subr.bf16.mxu0 0
      %5140 = vmatpush1.bf16.msra.mxu0 0
      %5141 = vmatprep.subr.bf16.mxu0 0
      %5142 = vmatpush1.bf16.msra.mxu0 0
      %5143 = vmatprep.subr.bf16.mxu0 %v801
      %5144 = vmatpush1.bf16.msra.mxu0 %v798
      %5145 = vmatprep.subr.bf16.mxu0 0
      %5146 = vmatpush2.bf16.msra.mxu0 0
      %5147 = vmatprep.subr.bf16.mxu0 0
      %5148 = vmatpush2.bf16.msra.mxu0 0
      %5149 = vmatprep.subr.bf16.mxu0 0
      %5150 = vmatpush2.bf16.msra.mxu0 0
      %5151 = vmatprep.subr.bf16.mxu0 0
      %5152 = vmatpush2.bf16.msra.mxu0 0
      %5153 = vmatprep.subr.bf16.mxu0 0
      %5154 = vmatpush2.bf16.msra.mxu0 0
      %5155 = vmatprep.subr.bf16.mxu0 0
      %5156 = vmatpush2.bf16.msra.mxu0 0
      %5157 = vmatprep.subr.bf16.mxu0 0
      %5158 = vmatpush2.bf16.msra.mxu0 0
      %5159 = vmatprep.subr.bf16.mxu0 0
      %5160 = vmatpush2.bf16.msra.mxu0 0
      %5161 = vmatprep.mubr.bf16.mxu0 0
      %5162 = vmatmul.mubr.bf16.gmra.mxu0 %v5127
      %v5163 = vpop.f32.mrf.mxu0
      %v5164 = vadd.f32 0.0, %v5163
      %v5165 = vpop.f32.mrf.mxu0
      %v5166 = vadd.f32 0.0, %v5165
      %v5167 = vpop.f32.mrf.mxu0
      %v5168 = vpop.f32.mrf.mxu0
      %5169 = vdwg.mxu0
      %v5170 = vmul.f32 %v5062, %v5164
      %v5171 = vmul.f32 %v5064, %v5166
      %v5174 = vcombine.low %v5170, %v5171
      %v5176 = vunpack.c.l.s4 1983009808
      %v5177 = vunpack.c.0.s8 %v5176
      %v5178 = vlaneseq
      %v5179 = vshrl.u32 %v5178, 7
      %v5180 = vsub.s32 %v5177, %v5179
      %v5181 = vrot.slane %v5174, %v5180
      %vm5183 = vcmask 1041408
      %vm5184 = vcmask 257026
      %vm5185 = vmor %vm5184, %vm5183
      %5186 = vst.msk [vmem:[%s313] sm:$0xf] %vm5185, %v5181
      %5187 = vst.msk [vmem:[%s318] sm:$0xff] %vm792, %v4611
      %5188 = vst.msk [vmem:[%s318 + $0x8] sm:$0xff] %vm792, %v4613
      %5189 = vst.msk [vmem:[%s318 + $0x10] sm:$0xff] %vm792, %v4615
      %5190 = vst.msk [vmem:[%s318 + $0x18] sm:$0xff] %vm792, %v4617
      %5191 = vst.msk [vmem:[%s318 + $0x20] sm:$0xff] %vm792, %v4619
      %5192 = vst.msk [vmem:[%s318 + $0x28] sm:$0xff] %vm792, %v4621
      %5193 = vst.msk [vmem:[%s318 + $0x30] sm:$0xff] %vm792, %v4623
      %5194 = vst.msk [vmem:[%s318 + $0x38] sm:$0xff] %vm792, %v4625
      %5195 = vst.msk [vmem:[%s318 + $0x40] sm:$0xff] %vm792, %v4627
      %5196 = vst.msk [vmem:[%s318 + $0x48] sm:$0xff] %vm792, %v4629
      %5197 = vst.msk [vmem:[%s318 + $0x50] sm:$0xff] %vm792, %v4631
      %5198 = vst.msk [vmem:[%s318 + $0x58] sm:$0xff] %vm792, %v4633
      %5199 = vst.msk [vmem:[%s318 + $0x60] sm:$0xff] %vm792, %v4635
      %5200 = vst.msk [vmem:[%s318 + $0x68] sm:$0xff] %vm792, %v4637
      %5201 = vst.msk [vmem:[%s318 + $0x70] sm:$0xff] %vm792, %v4639
      %5202 = vst.msk [vmem:[%s318 + $0x78] sm:$0xff] %vm792, %v4641
      %5203 = vst.msk [vmem:[%s318 + $0x80] sm:$0xff] %vm792, %v4643
      %5204 = vst.msk [vmem:[%s318 + $0x88] sm:$0xff] %vm792, %v4645
      %5205 = vst.msk [vmem:[%s318 + $0x90] sm:$0xff] %vm792, %v4647
      %5206 = vst.msk [vmem:[%s318 + $0x98] sm:$0xff] %vm792, %v4649
      %5207 = vst.msk [vmem:[%s318 + $0xa0] sm:$0xff] %vm792, %v4651
      %5208 = vst.msk [vmem:[%s318 + $0xa8] sm:$0xff] %vm792, %v4653
      %5209 = vst.msk [vmem:[%s318 + $0xb0] sm:$0xff] %vm792, %v4655
      %5210 = vst.msk [vmem:[%s318 + $0xb8] sm:$0xff] %vm792, %v4657
      %5211 = vst.msk [vmem:[%s318 + $0xc0] sm:$0xff] %vm792, %v4659
      %5212 = vst.msk [vmem:[%s318 + $0xc8] sm:$0xff] %vm792, %v4661
      %5213 = vst.msk [vmem:[%s318 + $0xd0] sm:$0xff] %vm792, %v4663
      %5214 = vst.msk [vmem:[%s318 + $0xd8] sm:$0xff] %vm792, %v4665
      %5215 = vst.msk [vmem:[%s318 + $0xe0] sm:$0xff] %vm792, %v4667
      %5216 = vst.msk [vmem:[%s318 + $0xe8] sm:$0xff] %vm792, %v4669
      %5217 = vst.msk [vmem:[%s318 + $0xf0] sm:$0xff] %vm792, %v4671
      %5218 = vst.msk [vmem:[%s318 + $0xf8] sm:$0xff] %vm792, %v4673
      %p5219 = scmp.lt.s32.totalorder %s20, 1
      %s5220 = scalar_select %p5219, %s20, 1
      %s5221 = smul.addr %s5220, 2
      %s5222 = smul.addr %s5221, 2
      %s5223 = scalar_lea.vmem %s7, %s5222
      %p5224 = scmp.lt.s32.totalorder %s20, 1
      %s5225 = scalar_select %p5224, %s20, 1
      %s5226 = smul.addr %s5225, 32
      %s5227 = smul.addr %s5226, 8
      %s5228 = scalar_lea.vmem %s8, %s5227
      // Predicated region
      $region49: #{agreement_routing.1} parent=47 // pred_check
        %p5229 = pneg %p190
      $region50: #{agreement_routing.1} parent=47 // pred_check_branch
        %5231 = sbr.rel (%p5229) target = $region52
      $region51: #{agreement_routing.1} parent=47 // pred_region
        _
      $region52: #{agreement_routing.1} parent=47 // pred_fallthru
        _
      // Predicated region
      $region53: #{agreement_routing.1} parent=47 // pred_check
        %p5232 = pneg %p216
      $region54: #{agreement_routing.1} parent=47 // pred_check_branch
        %5234 = sbr.rel (%p5232) target = $region56
      $region55: #{agreement_routing.1} parent=47 // pred_region
        _
      $region56: #{agreement_routing.1} parent=47 // pred_fallthru
        _
    $region48: #{agreement_routing.1} parent=5 // pred_fallthru
      _
    %p5235 = scmp.le.s32.totalorder 2, %s15
    // Predicated region
    $region57: #{agreement_routing.1} parent=5 // pred_check
      %p5236 = pneg %p5235
    $region58: #{agreement_routing.1} parent=5 // pred_check_branch
      %5238 = sbr.rel (%p5236) target = $region60
    $region59: #{agreement_routing.1} parent=5 // pred_region
      %s5239 = ssub.s32 %s15, 2
      // Predicated region
      $region61: #{agreement_routing.1} parent=59 // pred_check
        %p5240 = pneg %p196
      $region62: #{agreement_routing.1} parent=59 // pred_check_branch
        %5242 = sbr.rel (%p5240) target = $region64
      $region63: #{agreement_routing.1} parent=59 // pred_region
        %p5243 = scmp.lt.s32.totalorder %s21, 1
        %s5244 = scalar_select %p5243, %s21, 1
        %s5245 = smul.addr %s5244, 2
        %s5246 = smul.addr %s5245, 2
        %s5247 = scalar_lea.vmem %s7, %s5246
      $region64: #{agreement_routing.1} parent=59 // pred_fallthru
        _
      // Predicated region
      $region65: #{agreement_routing.1} parent=59 // pred_check
        %p5248 = pneg %p222
      $region66: #{agreement_routing.1} parent=59 // pred_check_branch
        %5250 = sbr.rel (%p5248) target = $region68
      $region67: #{agreement_routing.1} parent=59 // pred_region
        %p5251 = scmp.lt.s32.totalorder %s21, 1
        %s5252 = scalar_select %p5251, %s21, 1
        %s5253 = smul.addr %s5252, 32
        %s5254 = smul.addr %s5253, 8
        %s5255 = scalar_lea.vmem %s8, %s5254
      $region68: #{agreement_routing.1} parent=59 // pred_fallthru
        _
    $region60: #{agreement_routing.1} parent=5 // pred_fallthru
      _
  $region6: #{agreement_routing.1} parent=0 // loop_footer
    %s19 = sadd.s32 1, %s15
  $region7: #{agreement_routing.1} parent=0 // loop_footer_branch
    %14 = sbr.rel target = $region3
  $region8: #{agreement_routing.1} parent=0 // loop_exit
    _

</llo_original>
